<compile_context>
chip_gen: v7x
topology: tpu7x:2x2x1
jax: 0.10.0
libtpu: 0.0.40
codegen_flags: <defaults>
</compile_context>

<pallas_src>
import jax
import jax.numpy as jnp
from jax.experimental import pallas as pl
from jax.experimental.pallas import tpu as pltpu

_GUARD = 128  # left guard width (one lane tile) for the pooling scratches


# ---------------------------------------------------------------------------
# Fused kernel factory
# ---------------------------------------------------------------------------
def _make_kernel(H, W, bt, fc2):
    He, We = H - 2, W - 2              # conv / pool output spatial dims
    Hp, Wp = H + 2, W + 2              # zero-padded input spatial dims
    HpWp = Hp * Wp                     # padded-anchor lane count per image
    S = He * We
    Q = 2 * bt                         # padded-input rows: (batch, modality)
    CH = 16 * bt                       # feature rows: (modality*8+chan, batch)
    GW = _GUARD
    CPW = GW + HpWp + Wp               # guard | padded-anchor data | guard
    inv_S = 1.0 / float(S)

    def kernel(xpf_ref, jprow_ref, wc_ref, bc_ref,
               wse1_ref, bse1_ref, wse2_ref, bse2_ref,
               w1p_ref, b1_ref, w2t_ref, b2_ref,
               out_ref,
               slab_ref, cpad_ref, rpad_ref, scaled_ref):
        neg_inf = jnp.float32(-jnp.inf)

        # Padded-anchor lane coordinates.  The flat lane iota covers every
        # i-based test; the j index comes in as a tiny host-built row so no
        # vector integer div/mod is needed inside the kernel.
        lane = jax.lax.broadcasted_iota(jnp.int32, (CH, HpWp), 1)
        jp = jnp.broadcast_to(jprow_ref[...], (CH, HpWp))
        left_inv = jp == 0
        right_inv = jp == We - 1
        up_inv = lane < Wp
        down_inv = jnp.logical_and(lane >= (He - 1) * Wp, lane < He * Wp)
        valid = jnp.logical_and(lane < He * Wp, jp < We)

        # -- 1. im2col slab: 9 lane-shifted copies of the padded inputs ------
        #    slab[t*Q + q, p] = xpad[q, p + 2*ky*Wp + 2*kx],   t = 3*ky + kx
        for ky in range(3):
            for kx in range(3):
                t = 3 * ky + kx
                off = 2 * ky * Wp + 2 * kx
                slab_ref[t * Q:(t + 1) * Q, :] = xpf_ref[:, off:off + HpWp]

        # -- 2. dilated conv + bias + ReLU: ONE block-diagonal MXU matmul ----
        conv = jnp.dot(wc_ref[...], slab_ref[...],
                       preferred_element_type=jnp.float32)         # (CH, HpWp)
        conv = jnp.maximum(conv + bc_ref[...], 0.0)

        # -- 3. MaxPool2d(3, stride=1, pad=1), separable ----------------------
        #    Neighbor taps are guard-padded lane-shifted reads of one bulk
        #    store; out-of-range taps are replaced by -inf via lane masks.
        cpad_ref[...] = jnp.zeros((CH, CPW), jnp.float32)
        cpad_ref[:, GW:GW + HpWp] = conv
        left = cpad_ref[:, GW - 1:GW - 1 + HpWp]
        right = cpad_ref[:, GW + 1:GW + 1 + HpWp]
        rowmax = jnp.maximum(
            conv, jnp.maximum(jnp.where(left_inv, neg_inf, left),
                              jnp.where(right_inv, neg_inf, right)))

        rpad_ref[...] = jnp.zeros((CH, CPW), jnp.float32)
        rpad_ref[:, GW:GW + HpWp] = rowmax
        up = rpad_ref[:, GW - Wp:GW - Wp + HpWp]
        down = rpad_ref[:, GW + Wp:GW + Wp + HpWp]
        pooled = jnp.maximum(
            rowmax, jnp.maximum(jnp.where(up_inv, neg_inf, up),
                                jnp.where(down_inv, neg_inf, down)))

        # -- 4. SE block: squeeze + two matmuls for the whole chunk ----------
        sq = jnp.sum(jnp.where(valid, pooled, 0.0),
                     axis=1, keepdims=True) * inv_S                 # (CH, 1)
        h = jnp.dot(wse1_ref[...], sq, preferred_element_type=jnp.float32)
        h = jnp.maximum(h + bse1_ref[...], 0.0)                     # (8*bt, 1)
        e = jnp.dot(wse2_ref[...], h, preferred_element_type=jnp.float32)
        e = jax.nn.sigmoid(e + bse2_ref[...])                       # (CH, 1)

        # -- 5. channel scaling + classifier ----------------------------------
        #    w1 was re-laid-out host-side to the kernel's native feature
        #    layout (zero rows at padded positions), so no flatten relayout is
        #    needed: 16 accumulated MXU matmuls straight off the features.
        scaled_ref[...] = pooled * e
        h2 = jnp.zeros((bt, fc2), jnp.float32)
        for k in range(16):                # 2 modalities x 8 conv channels
            h2 = h2 + jnp.dot(scaled_ref[k * bt:(k + 1) * bt, :],
                              w1p_ref[k * HpWp:(k + 1) * HpWp, :],
                              preferred_element_type=jnp.float32)
        h2 = jnp.maximum(h2 + b1_ref[...], 0.0)                     # (bt, fc2)
        out = jnp.dot(h2, w2t_ref[...],
                      preferred_element_type=jnp.float32) + b2_ref[...]
        out_ref[...] = out

    return kernel


# ---------------------------------------------------------------------------
# Full MMDFESI forward (single fused pallas_call)
# ---------------------------------------------------------------------------
def mmdf_esi_forward(params, x_eeg, x_meg):
    B, cin, H, W = x_eeg.shape
    assert cin == 1 and x_meg.shape == x_eeg.shape
    He, We = H - 2, W - 2
    Hp, Wp = H + 2, W + 2
    HpWp = Hp * Wp
    S = He * We
    fc2, fc1 = params["w1"].shape
    out_num = params["w2"].shape[0]
    assert fc1 == 16 * S, "fc1_num must equal 16 * (H-2) * (W-2)"

    f32 = jnp.float32

    # One batch chunk per grid step (add chunks here for large B; keep 2*bt a
    # multiple of 8 so the block shapes stay tile-aligned).
    bt = B
    nchunks = B // bt
    Q = 2 * bt
    ext = 4 * (Wp + 1)                 # largest conv-tap lane offset
    wext = HpWp + ext

    # -------- host-side layout plumbing (zero-pad / flatten / weight prep) --
    def prep(x):                       # (B,1,H,W) -> (B, wext), zero-padded
        xp = jnp.pad(x[:, 0].astype(f32), ((0, 0), (1, 1), (1, 1)))
        return jnp.pad(xp.reshape(B, HpWp), ((0, 0), (0, ext)))

    # padded-input rows q = b*2 + m  (b-major -> batch chunks are contiguous)
    xpf = jnp.stack([prep(x_eeg), prep(x_meg)], axis=1).reshape(2 * B, wext)
    jprow = (jnp.arange(HpWp, dtype=jnp.int32) % Wp).reshape(1, HpWp)

    eye_b = jnp.eye(bt, dtype=f32)
    eye_m = jnp.eye(2, dtype=f32)

    wk = jnp.stack([params["w_eeg"].reshape(8, 9),
                    params["w_meg"].reshape(8, 9)]).astype(f32)     # (2, 8, 9)
    bk = jnp.stack([params["b_eeg"], params["b_meg"]]).astype(f32)  # (2, 8)

    # Block-diagonal conv weight: row (m*8+c)*bt + b, col t*2bt + b'*2 + m'.
    wc6 = (wk[:, :, None, :, None, None]              # (m, c, 1, t, 1, 1)
           * eye_b[None, None, :, None, :, None]      # (1, 1, b, 1, d, 1)
           * eye_m[:, None, None, None, None, :])     # (m, 1, 1, 1, 1, n)
    wc = wc6.reshape(16 * bt, 9 * Q)
    bc = jnp.broadcast_to(bk[:, :, None], (2, 8, bt)).reshape(16 * bt, 1)

    # SE weights, block-diagonal over the chunk (kernel-native column layout).
    wse1b = (params["wse1"][:, None, :, None]
             * eye_b[None, :, None, :]).reshape(8 * bt, 16 * bt)
    bse1b = jnp.broadcast_to(params["bse1"][:, None], (8, bt)).reshape(8 * bt, 1)
    wse2b = (params["wse2"][:, None, :, None]
             * eye_b[None, :, None, :]).reshape(16 * bt, 8 * bt)
    bse2b = jnp.broadcast_to(params["bse2"][:, None], (16, bt)).reshape(16 * bt, 1)

    # Classifier w1 re-laid-out to the kernel's feature layout:
    #   row k*HpWp + (i*Wp + j)  <-  w1[:, k*S + i*We + j]   (zeros elsewhere)
    w1r = params["w1"].reshape(fc2, 16, He, We)
    w1pad = jnp.zeros((fc2, 16, Hp, Wp), f32).at[:, :, :He, :We].set(w1r)
    w1p = w1pad.transpose(1, 2, 3, 0).reshape(16 * HpWp, fc2)
    b1 = params["b1"].reshape(1, fc2)
    w2t = params["w2"].T
    b2 = params["b2"].reshape(1, out_num)

    kernel = _make_kernel(H, W, bt, fc2)
    fixed = lambda c: (0, 0)
    cpw = _GUARD + HpWp + Wp

    out = pl.pallas_call(
        kernel,
        out_shape=jax.ShapeDtypeStruct((B, out_num), f32),
        grid=(nchunks,),
        in_specs=[
            pl.BlockSpec((Q, wext), lambda c: (c, 0)),        # padded inputs
            pl.BlockSpec((1, HpWp), fixed),                   # lane j-index row
            pl.BlockSpec((16 * bt, 9 * Q), fixed),            # conv weight
            pl.BlockSpec((16 * bt, 1), fixed),                # conv bias
            pl.BlockSpec((8 * bt, 16 * bt), fixed),           # SE fc1 weight
            pl.BlockSpec((8 * bt, 1), fixed),                 # SE fc1 bias
            pl.BlockSpec((16 * bt, 8 * bt), fixed),           # SE fc2 weight
            pl.BlockSpec((16 * bt, 1), fixed),                # SE fc2 bias
            pl.BlockSpec((16 * HpWp, fc2), fixed),            # classifier w1
            pl.BlockSpec((1, fc2), fixed),                    # classifier b1
            pl.BlockSpec((fc2, out_num), fixed),              # classifier w2^T
            pl.BlockSpec((1, out_num), fixed),                # classifier b2
        ],
        out_specs=pl.BlockSpec((bt, out_num), lambda c: (c, 0)),
        scratch_shapes=[
            pltpu.VMEM((9 * Q, HpWp), f32),      # im2col slab
            pltpu.VMEM((16 * bt, cpw), f32),     # guard-padded conv rows
            pltpu.VMEM((16 * bt, cpw), f32),     # guard-padded row-max rows
            pltpu.VMEM((16 * bt, HpWp), f32),    # SE-scaled features
        ],
        compiler_params=pltpu.CompilerParams(
            dimension_semantics=("arbitrary",)),
    )(xpf, jprow, wc, bc, wse1b, bse1b, wse2b, bse2b, w1p, b1, w2t, b2)
    return out


# ---------------------------------------------------------------------------
# Parameter init (PyTorch-like uniform fan-in init)
# ---------------------------------------------------------------------------
def init_params(fc1_num, fc2_num, output_num, key):
    ks = jax.random.split(key, 12)

    def u(k, shape, fan_in):
        bound = 1.0 / (fan_in ** 0.5)
        return jax.random.uniform(k, shape, jnp.float32, -bound, bound)

    return dict(
        w_eeg=u(ks[0], (8, 1, 3, 3), 9), b_eeg=u(ks[1], (8,), 9),
        w_meg=u(ks[2], (8, 1, 3, 3), 9), b_meg=u(ks[3], (8,), 9),
        wse1=u(ks[4], (8, 16), 16), bse1=u(ks[5], (8,), 16),
        wse2=u(ks[6], (16, 8), 8), bse2=u(ks[7], (16,), 8),
        w1=u(ks[8], (fc2_num, fc1_num), fc1_num),
        b1=u(ks[9], (fc2_num,), fc1_num),
        w2=u(ks[10], (output_num, fc2_num), fc2_num),
        b2=u(ks[11], (output_num,), fc2_num),
    )


# ---------------------------------------------------------------------------
# Pure-JAX reference (mirrors the PyTorch module) for a correctness check
# ---------------------------------------------------------------------------
def reference_forward(params, x_eeg, x_meg):
    def cnn(x, w, b):
        y = jax.lax.conv_general_dilated(
            x, w, window_strides=(1, 1), padding=((1, 1), (1, 1)),
            rhs_dilation=(2, 2), dimension_numbers=("NCHW", "OIHW", "NCHW"),
            precision=jax.lax.Precision.HIGHEST)
        y = y + b[None, :, None, None]
        y = jnp.maximum(y, 0.0)
        y = jax.lax.reduce_window(
            y, -jnp.inf, jax.lax.max,
            window_dimensions=(1, 1, 3, 3), window_strides=(1, 1, 1, 1),
            padding=((0, 0), (0, 0), (1, 1), (1, 1)))
        return y

    with jax.default_matmul_precision("float32"):
        B = x_eeg.shape[0]
        fe = cnn(x_eeg, params["w_eeg"], params["b_eeg"]).reshape(B, 8, -1)
        fm = cnn(x_meg, params["w_meg"], params["b_meg"]).reshape(B, 8, -1)
        fc = jnp.concatenate([fe, fm], axis=1)
        sq = jnp.mean(fc, axis=2)
        h = jnp.maximum(sq @ params["wse1"].T + params["bse1"], 0.0)
        e = jax.nn.sigmoid(h @ params["wse2"].T + params["bse2"])
        sc = fc * e[:, :, None]
        flat = sc.reshape(B, -1)
        h2 = jnp.maximum(flat @ params["w1"].T + params["b1"], 0.0)
        return h2 @ params["w2"].T + params["b2"]


if __name__ == "__main__":
    # H = W = 10 -> conv/pool output 8x8 -> S = 64 -> fc1_num = 16*64 = 1024
    B, H, W = 2, 10, 10
    fc1_num, fc2_num, output_num = 16 * (H - 2) * (W - 2), 32, 4

    key = jax.random.PRNGKey(0)
    k_in1, k_in2, k_par = jax.random.split(key, 3)
    x_eeg = jax.random.normal(k_in1, (B, 1, H, W), jnp.float32)
    x_meg = jax.random.normal(k_in2, (B, 1, H, W), jnp.float32)
    params = init_params(fc1_num, fc2_num, output_num, k_par)

    out = mmdf_esi_forward(params, x_eeg, x_meg)
    out = jax.block_until_ready(out)
    assert out.shape == (B, output_num)

    ref = jax.block_until_ready(reference_forward(params, x_eeg, x_meg))
    assert jnp.allclose(out, ref, rtol=2e-3, atol=2e-3), (out, ref)

    print("KERNEL_OK")
</pallas_src>

<mosaic_0001>
module attributes {stable_mosaic.version = 11 : i64} {
  func.func @kernel(%arg0: i32, %arg1: memref<4x196xf32, #tpu.memory_space<vmem>>, %arg2: memref<1x144xi32, #tpu.memory_space<vmem>>, %arg3: memref<32x36xf32, #tpu.memory_space<vmem>>, %arg4: memref<32x1xf32, #tpu.memory_space<vmem>>, %arg5: memref<16x32xf32, #tpu.memory_space<vmem>>, %arg6: memref<16x1xf32, #tpu.memory_space<vmem>>, %arg7: memref<32x16xf32, #tpu.memory_space<vmem>>, %arg8: memref<32x1xf32, #tpu.memory_space<vmem>>, %arg9: memref<2304x32xf32, #tpu.memory_space<vmem>>, %arg10: memref<1x32xf32, #tpu.memory_space<vmem>>, %arg11: memref<32x4xf32, #tpu.memory_space<vmem>>, %arg12: memref<1x4xf32, #tpu.memory_space<vmem>>, %arg13: memref<2x4xf32, #tpu.memory_space<vmem>>, %arg14: memref<36x144xf32, #tpu.memory_space<vmem>>, %arg15: memref<32x284xf32, #tpu.memory_space<vmem>>, %arg16: memref<32x284xf32, #tpu.memory_space<vmem>>, %arg17: memref<32x144xf32, #tpu.memory_space<vmem>>) attributes {dimension_semantics = [#tpu.dimension_semantics<arbitrary>], iteration_bounds = array<i64: 1>, scalar_prefetch = 0 : i64, scratch_operands = 4 : i64, tpu.core_type = #tpu.core_type<tc>, window_params = [{transform_indices = @transform_0, window_bounds = array<i64: 4, 196>}, {pipeline_mode = #tpu.pipeline_mode<synchronous>, transform_indices = @transform_1, window_bounds = array<i64: 1, 144>}, {pipeline_mode = #tpu.pipeline_mode<synchronous>, transform_indices = @transform_2, window_bounds = array<i64: 32, 36>}, {pipeline_mode = #tpu.pipeline_mode<synchronous>, transform_indices = @transform_3, window_bounds = array<i64: 32, 1>}, {pipeline_mode = #tpu.pipeline_mode<synchronous>, transform_indices = @transform_4, window_bounds = array<i64: 16, 32>}, {pipeline_mode = #tpu.pipeline_mode<synchronous>, transform_indices = @transform_5, window_bounds = array<i64: 16, 1>}, {pipeline_mode = #tpu.pipeline_mode<synchronous>, transform_indices = @transform_6, window_bounds = array<i64: 32, 16>}, {pipeline_mode = #tpu.pipeline_mode<synchronous>, transform_indices = @transform_7, window_bounds = array<i64: 32, 1>}, {pipeline_mode = #tpu.pipeline_mode<synchronous>, transform_indices = @transform_8, window_bounds = array<i64: 2304, 32>}, {pipeline_mode = #tpu.pipeline_mode<synchronous>, transform_indices = @transform_9, window_bounds = array<i64: 1, 32>}, {pipeline_mode = #tpu.pipeline_mode<synchronous>, transform_indices = @transform_10, window_bounds = array<i64: 32, 4>}, {pipeline_mode = #tpu.pipeline_mode<synchronous>, transform_indices = @transform_11, window_bounds = array<i64: 1, 4>}, {transform_indices = @transform_12, window_bounds = array<i64: 2, 4>}]} {
    %0 = tpu.iota {dimensions = array<i32: 1>} : vector<32x144xi32>
    %c0 = arith.constant 0 : index
    %c0_0 = arith.constant 0 : index
    %1 = vector.load %arg2[%c0, %c0_0] : memref<1x144xi32, #tpu.memory_space<vmem>>, vector<1x144xi32>
    %2 = vector.shape_cast %1 : vector<1x144xi32> to vector<1x144xi32>
    %3 = vector.broadcast %2 : vector<1x144xi32> to vector<32x144xi32>
    %c0_i32 = arith.constant 0 : i32
    %4 = vector.broadcast %c0_i32 : i32 to vector<32x144xi32>
    %5 = arith.cmpi eq, %3, %4 : vector<32x144xi32>
    %c7_i32 = arith.constant 7 : i32
    %6 = vector.broadcast %c7_i32 : i32 to vector<32x144xi32>
    %7 = arith.cmpi eq, %3, %6 : vector<32x144xi32>
    %c12_i32 = arith.constant 12 : i32
    %8 = vector.broadcast %c12_i32 : i32 to vector<32x144xi32>
    %9 = arith.cmpi slt, %0, %8 : vector<32x144xi32>
    %c84_i32 = arith.constant 84 : i32
    %10 = vector.broadcast %c84_i32 : i32 to vector<32x144xi32>
    %11 = arith.cmpi sge, %0, %10 : vector<32x144xi32>
    %c96_i32 = arith.constant 96 : i32
    %12 = vector.broadcast %c96_i32 : i32 to vector<32x144xi32>
    %13 = arith.cmpi slt, %0, %12 : vector<32x144xi32>
    %14 = arith.andi %11, %13 : vector<32x144xi1>
    %c96_i32_1 = arith.constant 96 : i32
    %15 = vector.broadcast %c96_i32_1 : i32 to vector<32x144xi32>
    %16 = arith.cmpi slt, %0, %15 : vector<32x144xi32>
    %c8_i32 = arith.constant 8 : i32
    %17 = vector.broadcast %c8_i32 : i32 to vector<32x144xi32>
    %18 = arith.cmpi slt, %3, %17 : vector<32x144xi32>
    %19 = arith.andi %16, %18 : vector<32x144xi1>
    %c0_2 = arith.constant 0 : index
    %c0_3 = arith.constant 0 : index
    %20 = vector.load %arg1[%c0_2, %c0_3] : memref<4x196xf32, #tpu.memory_space<vmem>>, vector<4x144xf32>
    %c0_4 = arith.constant 0 : index
    %c0_5 = arith.constant 0 : index
    %21 = vector.load %arg14[%c0_4, %c0_5] : memref<36x144xf32, #tpu.memory_space<vmem>>, vector<4x144xf32>
    tpu.vector_store %arg14[%c0_4, %c0_5], %20 {strides = array<i32>} : memref<36x144xf32, #tpu.memory_space<vmem>>, vector<4x144xf32>,
    %c0_6 = arith.constant 0 : index
    %c2 = arith.constant 2 : index
    %22 = vector.load %arg1[%c0_6, %c2] : memref<4x196xf32, #tpu.memory_space<vmem>>, vector<4x144xf32>
    %c4 = arith.constant 4 : index
    %c0_7 = arith.constant 0 : index
    %23 = vector.load %arg14[%c4, %c0_7] : memref<36x144xf32, #tpu.memory_space<vmem>>, vector<4x144xf32>
    tpu.vector_store %arg14[%c4, %c0_7], %22 {strides = array<i32>} : memref<36x144xf32, #tpu.memory_space<vmem>>, vector<4x144xf32>,
    %c0_8 = arith.constant 0 : index
    %c4_9 = arith.constant 4 : index
    %24 = vector.load %arg1[%c0_8, %c4_9] : memref<4x196xf32, #tpu.memory_space<vmem>>, vector<4x144xf32>
    %c8 = arith.constant 8 : index
    %c0_10 = arith.constant 0 : index
    %25 = vector.load %arg14[%c8, %c0_10] : memref<36x144xf32, #tpu.memory_space<vmem>>, vector<4x144xf32>
    tpu.vector_store %arg14[%c8, %c0_10], %24 {strides = array<i32>} : memref<36x144xf32, #tpu.memory_space<vmem>>, vector<4x144xf32>,
    %c0_11 = arith.constant 0 : index
    %c24 = arith.constant 24 : index
    %26 = vector.load %arg1[%c0_11, %c24] : memref<4x196xf32, #tpu.memory_space<vmem>>, vector<4x144xf32>
    %c12 = arith.constant 12 : index
    %c0_12 = arith.constant 0 : index
    %27 = vector.load %arg14[%c12, %c0_12] : memref<36x144xf32, #tpu.memory_space<vmem>>, vector<4x144xf32>
    tpu.vector_store %arg14[%c12, %c0_12], %26 {strides = array<i32>} : memref<36x144xf32, #tpu.memory_space<vmem>>, vector<4x144xf32>,
    %c0_13 = arith.constant 0 : index
    %c26 = arith.constant 26 : index
    %28 = vector.load %arg1[%c0_13, %c26] : memref<4x196xf32, #tpu.memory_space<vmem>>, vector<4x144xf32>
    %c16 = arith.constant 16 : index
    %c0_14 = arith.constant 0 : index
    %29 = vector.load %arg14[%c16, %c0_14] : memref<36x144xf32, #tpu.memory_space<vmem>>, vector<4x144xf32>
    tpu.vector_store %arg14[%c16, %c0_14], %28 {strides = array<i32>} : memref<36x144xf32, #tpu.memory_space<vmem>>, vector<4x144xf32>,
    %c0_15 = arith.constant 0 : index
    %c28 = arith.constant 28 : index
    %30 = vector.load %arg1[%c0_15, %c28] : memref<4x196xf32, #tpu.memory_space<vmem>>, vector<4x144xf32>
    %c20 = arith.constant 20 : index
    %c0_16 = arith.constant 0 : index
    %31 = vector.load %arg14[%c20, %c0_16] : memref<36x144xf32, #tpu.memory_space<vmem>>, vector<4x144xf32>
    tpu.vector_store %arg14[%c20, %c0_16], %30 {strides = array<i32>} : memref<36x144xf32, #tpu.memory_space<vmem>>, vector<4x144xf32>,
    %c0_17 = arith.constant 0 : index
    %c48 = arith.constant 48 : index
    %32 = vector.load %arg1[%c0_17, %c48] : memref<4x196xf32, #tpu.memory_space<vmem>>, vector<4x144xf32>
    %c24_18 = arith.constant 24 : index
    %c0_19 = arith.constant 0 : index
    %33 = vector.load %arg14[%c24_18, %c0_19] : memref<36x144xf32, #tpu.memory_space<vmem>>, vector<4x144xf32>
    tpu.vector_store %arg14[%c24_18, %c0_19], %32 {strides = array<i32>} : memref<36x144xf32, #tpu.memory_space<vmem>>, vector<4x144xf32>,
    %c0_20 = arith.constant 0 : index
    %c50 = arith.constant 50 : index
    %34 = vector.load %arg1[%c0_20, %c50] : memref<4x196xf32, #tpu.memory_space<vmem>>, vector<4x144xf32>
    %c28_21 = arith.constant 28 : index
    %c0_22 = arith.constant 0 : index
    %35 = vector.load %arg14[%c28_21, %c0_22] : memref<36x144xf32, #tpu.memory_space<vmem>>, vector<4x144xf32>
    tpu.vector_store %arg14[%c28_21, %c0_22], %34 {strides = array<i32>} : memref<36x144xf32, #tpu.memory_space<vmem>>, vector<4x144xf32>,
    %c0_23 = arith.constant 0 : index
    %c52 = arith.constant 52 : index
    %36 = vector.load %arg1[%c0_23, %c52] : memref<4x196xf32, #tpu.memory_space<vmem>>, vector<4x144xf32>
    %c32 = arith.constant 32 : index
    %c0_24 = arith.constant 0 : index
    %37 = vector.load %arg14[%c32, %c0_24] : memref<36x144xf32, #tpu.memory_space<vmem>>, vector<4x144xf32>
    tpu.vector_store %arg14[%c32, %c0_24], %36 {strides = array<i32>} : memref<36x144xf32, #tpu.memory_space<vmem>>, vector<4x144xf32>,
    %c0_25 = arith.constant 0 : index
    %c0_26 = arith.constant 0 : index
    %38 = vector.load %arg3[%c0_25, %c0_26] : memref<32x36xf32, #tpu.memory_space<vmem>>, vector<32x36xf32>
    %c0_27 = arith.constant 0 : index
    %c0_28 = arith.constant 0 : index
    %39 = vector.load %arg14[%c0_27, %c0_28] : memref<36x144xf32, #tpu.memory_space<vmem>>, vector<36x144xf32>
    %cst = arith.constant dense<0.000000e+00> : vector<32x144xf32>
    %40 = tpu.matmul %38, %39, %cst {dimension_numbers = #tpu.dot_dimension_numbers<[1], [0], [0], [1], [0, 0, 1, 1], [], []>} : vector<32x36xf32>, vector<36x144xf32>, vector<32x144xf32> -> vector<32x144xf32>
    %c0_29 = arith.constant 0 : index
    %c0_30 = arith.constant 0 : index
    %41 = vector.load %arg4[%c0_29, %c0_30] : memref<32x1xf32, #tpu.memory_space<vmem>>, vector<32x1xf32>
    %42 = vector.broadcast %41 : vector<32x1xf32> to vector<32x144xf32>
    %43 = arith.addf %40, %42 : vector<32x144xf32>
    %cst_31 = arith.constant 0.000000e+00 : f32
    %44 = vector.broadcast %cst_31 : f32 to vector<32x144xf32>
    %45 = arith.maximumf %43, %44 : vector<32x144xf32>
    %cst_32 = arith.constant 0.000000e+00 : f32
    %46 = vector.broadcast %cst_32 : f32 to vector<32x284xf32>
    %c0_33 = arith.constant 0 : index
    %c0_34 = arith.constant 0 : index
    %47 = vector.load %arg15[%c0_33, %c0_34] : memref<32x284xf32, #tpu.memory_space<vmem>>, vector<32x284xf32>
    tpu.vector_store %arg15[%c0_33, %c0_34], %46 {strides = array<i32>} : memref<32x284xf32, #tpu.memory_space<vmem>>, vector<32x284xf32>,
    %c0_35 = arith.constant 0 : index
    %c128 = arith.constant 128 : index
    %48 = vector.load %arg15[%c0_35, %c128] : memref<32x284xf32, #tpu.memory_space<vmem>>, vector<32x144xf32>
    tpu.vector_store %arg15[%c0_35, %c128], %45 {strides = array<i32>} : memref<32x284xf32, #tpu.memory_space<vmem>>, vector<32x144xf32>,
    %c0_36 = arith.constant 0 : index
    %c127 = arith.constant 127 : index
    %49 = vector.load %arg15[%c0_36, %c127] : memref<32x284xf32, #tpu.memory_space<vmem>>, vector<32x144xf32>
    %c0_37 = arith.constant 0 : index
    %c129 = arith.constant 129 : index
    %50 = vector.load %arg15[%c0_37, %c129] : memref<32x284xf32, #tpu.memory_space<vmem>>, vector<32x144xf32>
    %cst_38 = arith.constant 0xFF800000 : f32
    %51 = vector.broadcast %cst_38 : f32 to vector<32x144xf32>
    %52 = arith.select %5, %51, %49 : vector<32x144xi1>, vector<32x144xf32>
    %cst_39 = arith.constant 0xFF800000 : f32
    %53 = vector.broadcast %cst_39 : f32 to vector<32x144xf32>
    %54 = arith.select %7, %53, %50 : vector<32x144xi1>, vector<32x144xf32>
    %55 = arith.maximumf %52, %54 : vector<32x144xf32>
    %56 = arith.maximumf %45, %55 : vector<32x144xf32>
    %cst_40 = arith.constant 0.000000e+00 : f32
    %57 = vector.broadcast %cst_40 : f32 to vector<32x284xf32>
    %c0_41 = arith.constant 0 : index
    %c0_42 = arith.constant 0 : index
    %58 = vector.load %arg16[%c0_41, %c0_42] : memref<32x284xf32, #tpu.memory_space<vmem>>, vector<32x284xf32>
    tpu.vector_store %arg16[%c0_41, %c0_42], %57 {strides = array<i32>} : memref<32x284xf32, #tpu.memory_space<vmem>>, vector<32x284xf32>,
    %c0_43 = arith.constant 0 : index
    %c128_44 = arith.constant 128 : index
    %59 = vector.load %arg16[%c0_43, %c128_44] : memref<32x284xf32, #tpu.memory_space<vmem>>, vector<32x144xf32>
    tpu.vector_store %arg16[%c0_43, %c128_44], %56 {strides = array<i32>} : memref<32x284xf32, #tpu.memory_space<vmem>>, vector<32x144xf32>,
    %c0_45 = arith.constant 0 : index
    %c116 = arith.constant 116 : index
    %60 = vector.load %arg16[%c0_45, %c116] : memref<32x284xf32, #tpu.memory_space<vmem>>, vector<32x144xf32>
    %c0_46 = arith.constant 0 : index
    %c140 = arith.constant 140 : index
    %61 = vector.load %arg16[%c0_46, %c140] : memref<32x284xf32, #tpu.memory_space<vmem>>, vector<32x144xf32>
    %cst_47 = arith.constant 0xFF800000 : f32
    %62 = vector.broadcast %cst_47 : f32 to vector<32x144xf32>
    %63 = arith.select %9, %62, %60 : vector<32x144xi1>, vector<32x144xf32>
    %cst_48 = arith.constant 0xFF800000 : f32
    %64 = vector.broadcast %cst_48 : f32 to vector<32x144xf32>
    %65 = arith.select %14, %64, %61 : vector<32x144xi1>, vector<32x144xf32>
    %66 = arith.maximumf %63, %65 : vector<32x144xf32>
    %67 = arith.maximumf %56, %66 : vector<32x144xf32>
    %cst_49 = arith.constant 0.000000e+00 : f32
    %68 = vector.broadcast %cst_49 : f32 to vector<32x144xf32>
    %69 = arith.select %19, %67, %68 : vector<32x144xi1>, vector<32x144xf32>
    %cst_50 = arith.constant dense<0.000000e+00> : vector<32xf32>
    %70 = vector.multi_reduction <add>, %69, %cst_50 [1] : vector<32x144xf32> to vector<32xf32>
    %71 = vector.shape_cast %70 : vector<32xf32> to vector<32x1xf32>
    %cst_51 = arith.constant 1.562500e-02 : f32
    %72 = vector.broadcast %cst_51 : f32 to vector<32x1xf32>
    %73 = arith.mulf %71, %72 : vector<32x1xf32>
    %c0_52 = arith.constant 0 : index
    %c0_53 = arith.constant 0 : index
    %74 = vector.load %arg5[%c0_52, %c0_53] : memref<16x32xf32, #tpu.memory_space<vmem>>, vector<16x32xf32>
    %cst_54 = arith.constant dense<0.000000e+00> : vector<16x1xf32>
    %75 = tpu.matmul %74, %73, %cst_54 {dimension_numbers = #tpu.dot_dimension_numbers<[1], [0], [0], [1], [0, 0, 1, 1], [], []>} : vector<16x32xf32>, vector<32x1xf32>, vector<16x1xf32> -> vector<16x1xf32>
    %c0_55 = arith.constant 0 : index
    %c0_56 = arith.constant 0 : index
    %76 = vector.load %arg6[%c0_55, %c0_56] : memref<16x1xf32, #tpu.memory_space<vmem>>, vector<16x1xf32>
    %77 = arith.addf %75, %76 : vector<16x1xf32>
    %cst_57 = arith.constant 0.000000e+00 : f32
    %78 = vector.broadcast %cst_57 : f32 to vector<16x1xf32>
    %79 = arith.maximumf %77, %78 : vector<16x1xf32>
    %c0_58 = arith.constant 0 : index
    %c0_59 = arith.constant 0 : index
    %80 = vector.load %arg7[%c0_58, %c0_59] : memref<32x16xf32, #tpu.memory_space<vmem>>, vector<32x16xf32>
    %cst_60 = arith.constant dense<0.000000e+00> : vector<32x1xf32>
    %81 = tpu.matmul %80, %79, %cst_60 {dimension_numbers = #tpu.dot_dimension_numbers<[1], [0], [0], [1], [0, 0, 1, 1], [], []>} : vector<32x16xf32>, vector<16x1xf32>, vector<32x1xf32> -> vector<32x1xf32>
    %c0_61 = arith.constant 0 : index
    %c0_62 = arith.constant 0 : index
    %82 = vector.load %arg8[%c0_61, %c0_62] : memref<32x1xf32, #tpu.memory_space<vmem>>, vector<32x1xf32>
    %83 = arith.addf %81, %82 : vector<32x1xf32>
    %84 = arith.negf %83 : vector<32x1xf32>
    %85 = math.exp %84 : vector<32x1xf32>
    %cst_63 = arith.constant 1.000000e+00 : f32
    %86 = vector.broadcast %cst_63 : f32 to vector<32x1xf32>
    %87 = arith.addf %86, %85 : vector<32x1xf32>
    %88 = arith.divf %86, %87 : vector<32x1xf32>
    %89 = vector.broadcast %88 : vector<32x1xf32> to vector<32x144xf32>
    %90 = arith.mulf %67, %89 : vector<32x144xf32>
    %c0_64 = arith.constant 0 : index
    %c0_65 = arith.constant 0 : index
    %91 = vector.load %arg17[%c0_64, %c0_65] : memref<32x144xf32, #tpu.memory_space<vmem>>, vector<32x144xf32>
    tpu.vector_store %arg17[%c0_64, %c0_65], %90 {strides = array<i32>} : memref<32x144xf32, #tpu.memory_space<vmem>>, vector<32x144xf32>,
    %cst_66 = arith.constant 0.000000e+00 : f32
    %92 = vector.broadcast %cst_66 : f32 to vector<2x32xf32>
    %c0_67 = arith.constant 0 : index
    %c0_68 = arith.constant 0 : index
    %93 = vector.load %arg17[%c0_67, %c0_68] : memref<32x144xf32, #tpu.memory_space<vmem>>, vector<2x144xf32>
    %c0_69 = arith.constant 0 : index
    %c0_70 = arith.constant 0 : index
    %94 = vector.load %arg9[%c0_69, %c0_70] : memref<2304x32xf32, #tpu.memory_space<vmem>>, vector<144x32xf32>
    %cst_71 = arith.constant dense<0.000000e+00> : vector<2x32xf32>
    %95 = tpu.matmul %93, %94, %cst_71 {dimension_numbers = #tpu.dot_dimension_numbers<[1], [0], [0], [1], [0, 0, 1, 1], [], []>} : vector<2x144xf32>, vector<144x32xf32>, vector<2x32xf32> -> vector<2x32xf32>
    %96 = arith.addf %92, %95 : vector<2x32xf32>
    %c2_72 = arith.constant 2 : index
    %c0_73 = arith.constant 0 : index
    %97 = vector.load %arg17[%c2_72, %c0_73] : memref<32x144xf32, #tpu.memory_space<vmem>>, vector<2x144xf32>
    %c144 = arith.constant 144 : index
    %c0_74 = arith.constant 0 : index
    %98 = vector.load %arg9[%c144, %c0_74] : memref<2304x32xf32, #tpu.memory_space<vmem>>, vector<144x32xf32>
    %cst_75 = arith.constant dense<0.000000e+00> : vector<2x32xf32>
    %99 = tpu.matmul %97, %98, %cst_75 {dimension_numbers = #tpu.dot_dimension_numbers<[1], [0], [0], [1], [0, 0, 1, 1], [], []>} : vector<2x144xf32>, vector<144x32xf32>, vector<2x32xf32> -> vector<2x32xf32>
    %100 = arith.addf %96, %99 : vector<2x32xf32>
    %c4_76 = arith.constant 4 : index
    %c0_77 = arith.constant 0 : index
    %101 = vector.load %arg17[%c4_76, %c0_77] : memref<32x144xf32, #tpu.memory_space<vmem>>, vector<2x144xf32>
    %c288 = arith.constant 288 : index
    %c0_78 = arith.constant 0 : index
    %102 = vector.load %arg9[%c288, %c0_78] : memref<2304x32xf32, #tpu.memory_space<vmem>>, vector<144x32xf32>
    %cst_79 = arith.constant dense<0.000000e+00> : vector<2x32xf32>
    %103 = tpu.matmul %101, %102, %cst_79 {dimension_numbers = #tpu.dot_dimension_numbers<[1], [0], [0], [1], [0, 0, 1, 1], [], []>} : vector<2x144xf32>, vector<144x32xf32>, vector<2x32xf32> -> vector<2x32xf32>
    %104 = arith.addf %100, %103 : vector<2x32xf32>
    %c6 = arith.constant 6 : index
    %c0_80 = arith.constant 0 : index
    %105 = vector.load %arg17[%c6, %c0_80] : memref<32x144xf32, #tpu.memory_space<vmem>>, vector<2x144xf32>
    %c432 = arith.constant 432 : index
    %c0_81 = arith.constant 0 : index
    %106 = vector.load %arg9[%c432, %c0_81] : memref<2304x32xf32, #tpu.memory_space<vmem>>, vector<144x32xf32>
    %cst_82 = arith.constant dense<0.000000e+00> : vector<2x32xf32>
    %107 = tpu.matmul %105, %106, %cst_82 {dimension_numbers = #tpu.dot_dimension_numbers<[1], [0], [0], [1], [0, 0, 1, 1], [], []>} : vector<2x144xf32>, vector<144x32xf32>, vector<2x32xf32> -> vector<2x32xf32>
    %108 = arith.addf %104, %107 : vector<2x32xf32>
    %c8_83 = arith.constant 8 : index
    %c0_84 = arith.constant 0 : index
    %109 = vector.load %arg17[%c8_83, %c0_84] : memref<32x144xf32, #tpu.memory_space<vmem>>, vector<2x144xf32>
    %c576 = arith.constant 576 : index
    %c0_85 = arith.constant 0 : index
    %110 = vector.load %arg9[%c576, %c0_85] : memref<2304x32xf32, #tpu.memory_space<vmem>>, vector<144x32xf32>
    %cst_86 = arith.constant dense<0.000000e+00> : vector<2x32xf32>
    %111 = tpu.matmul %109, %110, %cst_86 {dimension_numbers = #tpu.dot_dimension_numbers<[1], [0], [0], [1], [0, 0, 1, 1], [], []>} : vector<2x144xf32>, vector<144x32xf32>, vector<2x32xf32> -> vector<2x32xf32>
    %112 = arith.addf %108, %111 : vector<2x32xf32>
    %c10 = arith.constant 10 : index
    %c0_87 = arith.constant 0 : index
    %113 = vector.load %arg17[%c10, %c0_87] : memref<32x144xf32, #tpu.memory_space<vmem>>, vector<2x144xf32>
    %c720 = arith.constant 720 : index
    %c0_88 = arith.constant 0 : index
    %114 = vector.load %arg9[%c720, %c0_88] : memref<2304x32xf32, #tpu.memory_space<vmem>>, vector<144x32xf32>
    %cst_89 = arith.constant dense<0.000000e+00> : vector<2x32xf32>
    %115 = tpu.matmul %113, %114, %cst_89 {dimension_numbers = #tpu.dot_dimension_numbers<[1], [0], [0], [1], [0, 0, 1, 1], [], []>} : vector<2x144xf32>, vector<144x32xf32>, vector<2x32xf32> -> vector<2x32xf32>
    %116 = arith.addf %112, %115 : vector<2x32xf32>
    %c12_90 = arith.constant 12 : index
    %c0_91 = arith.constant 0 : index
    %117 = vector.load %arg17[%c12_90, %c0_91] : memref<32x144xf32, #tpu.memory_space<vmem>>, vector<2x144xf32>
    %c864 = arith.constant 864 : index
    %c0_92 = arith.constant 0 : index
    %118 = vector.load %arg9[%c864, %c0_92] : memref<2304x32xf32, #tpu.memory_space<vmem>>, vector<144x32xf32>
    %cst_93 = arith.constant dense<0.000000e+00> : vector<2x32xf32>
    %119 = tpu.matmul %117, %118, %cst_93 {dimension_numbers = #tpu.dot_dimension_numbers<[1], [0], [0], [1], [0, 0, 1, 1], [], []>} : vector<2x144xf32>, vector<144x32xf32>, vector<2x32xf32> -> vector<2x32xf32>
    %120 = arith.addf %116, %119 : vector<2x32xf32>
    %c14 = arith.constant 14 : index
    %c0_94 = arith.constant 0 : index
    %121 = vector.load %arg17[%c14, %c0_94] : memref<32x144xf32, #tpu.memory_space<vmem>>, vector<2x144xf32>
    %c1008 = arith.constant 1008 : index
    %c0_95 = arith.constant 0 : index
    %122 = vector.load %arg9[%c1008, %c0_95] : memref<2304x32xf32, #tpu.memory_space<vmem>>, vector<144x32xf32>
    %cst_96 = arith.constant dense<0.000000e+00> : vector<2x32xf32>
    %123 = tpu.matmul %121, %122, %cst_96 {dimension_numbers = #tpu.dot_dimension_numbers<[1], [0], [0], [1], [0, 0, 1, 1], [], []>} : vector<2x144xf32>, vector<144x32xf32>, vector<2x32xf32> -> vector<2x32xf32>
    %124 = arith.addf %120, %123 : vector<2x32xf32>
    %c16_97 = arith.constant 16 : index
    %c0_98 = arith.constant 0 : index
    %125 = vector.load %arg17[%c16_97, %c0_98] : memref<32x144xf32, #tpu.memory_space<vmem>>, vector<2x144xf32>
    %c1152 = arith.constant 1152 : index
    %c0_99 = arith.constant 0 : index
    %126 = vector.load %arg9[%c1152, %c0_99] : memref<2304x32xf32, #tpu.memory_space<vmem>>, vector<144x32xf32>
    %cst_100 = arith.constant dense<0.000000e+00> : vector<2x32xf32>
    %127 = tpu.matmul %125, %126, %cst_100 {dimension_numbers = #tpu.dot_dimension_numbers<[1], [0], [0], [1], [0, 0, 1, 1], [], []>} : vector<2x144xf32>, vector<144x32xf32>, vector<2x32xf32> -> vector<2x32xf32>
    %128 = arith.addf %124, %127 : vector<2x32xf32>
    %c18 = arith.constant 18 : index
    %c0_101 = arith.constant 0 : index
    %129 = vector.load %arg17[%c18, %c0_101] : memref<32x144xf32, #tpu.memory_space<vmem>>, vector<2x144xf32>
    %c1296 = arith.constant 1296 : index
    %c0_102 = arith.constant 0 : index
    %130 = vector.load %arg9[%c1296, %c0_102] : memref<2304x32xf32, #tpu.memory_space<vmem>>, vector<144x32xf32>
    %cst_103 = arith.constant dense<0.000000e+00> : vector<2x32xf32>
    %131 = tpu.matmul %129, %130, %cst_103 {dimension_numbers = #tpu.dot_dimension_numbers<[1], [0], [0], [1], [0, 0, 1, 1], [], []>} : vector<2x144xf32>, vector<144x32xf32>, vector<2x32xf32> -> vector<2x32xf32>
    %132 = arith.addf %128, %131 : vector<2x32xf32>
    %c20_104 = arith.constant 20 : index
    %c0_105 = arith.constant 0 : index
    %133 = vector.load %arg17[%c20_104, %c0_105] : memref<32x144xf32, #tpu.memory_space<vmem>>, vector<2x144xf32>
    %c1440 = arith.constant 1440 : index
    %c0_106 = arith.constant 0 : index
    %134 = vector.load %arg9[%c1440, %c0_106] : memref<2304x32xf32, #tpu.memory_space<vmem>>, vector<144x32xf32>
    %cst_107 = arith.constant dense<0.000000e+00> : vector<2x32xf32>
    %135 = tpu.matmul %133, %134, %cst_107 {dimension_numbers = #tpu.dot_dimension_numbers<[1], [0], [0], [1], [0, 0, 1, 1], [], []>} : vector<2x144xf32>, vector<144x32xf32>, vector<2x32xf32> -> vector<2x32xf32>
    %136 = arith.addf %132, %135 : vector<2x32xf32>
    %c22 = arith.constant 22 : index
    %c0_108 = arith.constant 0 : index
    %137 = vector.load %arg17[%c22, %c0_108] : memref<32x144xf32, #tpu.memory_space<vmem>>, vector<2x144xf32>
    %c1584 = arith.constant 1584 : index
    %c0_109 = arith.constant 0 : index
    %138 = vector.load %arg9[%c1584, %c0_109] : memref<2304x32xf32, #tpu.memory_space<vmem>>, vector<144x32xf32>
    %cst_110 = arith.constant dense<0.000000e+00> : vector<2x32xf32>
    %139 = tpu.matmul %137, %138, %cst_110 {dimension_numbers = #tpu.dot_dimension_numbers<[1], [0], [0], [1], [0, 0, 1, 1], [], []>} : vector<2x144xf32>, vector<144x32xf32>, vector<2x32xf32> -> vector<2x32xf32>
    %140 = arith.addf %136, %139 : vector<2x32xf32>
    %c24_111 = arith.constant 24 : index
    %c0_112 = arith.constant 0 : index
    %141 = vector.load %arg17[%c24_111, %c0_112] : memref<32x144xf32, #tpu.memory_space<vmem>>, vector<2x144xf32>
    %c1728 = arith.constant 1728 : index
    %c0_113 = arith.constant 0 : index
    %142 = vector.load %arg9[%c1728, %c0_113] : memref<2304x32xf32, #tpu.memory_space<vmem>>, vector<144x32xf32>
    %cst_114 = arith.constant dense<0.000000e+00> : vector<2x32xf32>
    %143 = tpu.matmul %141, %142, %cst_114 {dimension_numbers = #tpu.dot_dimension_numbers<[1], [0], [0], [1], [0, 0, 1, 1], [], []>} : vector<2x144xf32>, vector<144x32xf32>, vector<2x32xf32> -> vector<2x32xf32>
    %144 = arith.addf %140, %143 : vector<2x32xf32>
    %c26_115 = arith.constant 26 : index
    %c0_116 = arith.constant 0 : index
    %145 = vector.load %arg17[%c26_115, %c0_116] : memref<32x144xf32, #tpu.memory_space<vmem>>, vector<2x144xf32>
    %c1872 = arith.constant 1872 : index
    %c0_117 = arith.constant 0 : index
    %146 = vector.load %arg9[%c1872, %c0_117] : memref<2304x32xf32, #tpu.memory_space<vmem>>, vector<144x32xf32>
    %cst_118 = arith.constant dense<0.000000e+00> : vector<2x32xf32>
    %147 = tpu.matmul %145, %146, %cst_118 {dimension_numbers = #tpu.dot_dimension_numbers<[1], [0], [0], [1], [0, 0, 1, 1], [], []>} : vector<2x144xf32>, vector<144x32xf32>, vector<2x32xf32> -> vector<2x32xf32>
    %148 = arith.addf %144, %147 : vector<2x32xf32>
    %c28_119 = arith.constant 28 : index
    %c0_120 = arith.constant 0 : index
    %149 = vector.load %arg17[%c28_119, %c0_120] : memref<32x144xf32, #tpu.memory_space<vmem>>, vector<2x144xf32>
    %c2016 = arith.constant 2016 : index
    %c0_121 = arith.constant 0 : index
    %150 = vector.load %arg9[%c2016, %c0_121] : memref<2304x32xf32, #tpu.memory_space<vmem>>, vector<144x32xf32>
    %cst_122 = arith.constant dense<0.000000e+00> : vector<2x32xf32>
    %151 = tpu.matmul %149, %150, %cst_122 {dimension_numbers = #tpu.dot_dimension_numbers<[1], [0], [0], [1], [0, 0, 1, 1], [], []>} : vector<2x144xf32>, vector<144x32xf32>, vector<2x32xf32> -> vector<2x32xf32>
    %152 = arith.addf %148, %151 : vector<2x32xf32>
    %c30 = arith.constant 30 : index
    %c0_123 = arith.constant 0 : index
    %153 = vector.load %arg17[%c30, %c0_123] : memref<32x144xf32, #tpu.memory_space<vmem>>, vector<2x144xf32>
    %c2160 = arith.constant 2160 : index
    %c0_124 = arith.constant 0 : index
    %154 = vector.load %arg9[%c2160, %c0_124] : memref<2304x32xf32, #tpu.memory_space<vmem>>, vector<144x32xf32>
    %cst_125 = arith.constant dense<0.000000e+00> : vector<2x32xf32>
    %155 = tpu.matmul %153, %154, %cst_125 {dimension_numbers = #tpu.dot_dimension_numbers<[1], [0], [0], [1], [0, 0, 1, 1], [], []>} : vector<2x144xf32>, vector<144x32xf32>, vector<2x32xf32> -> vector<2x32xf32>
    %156 = arith.addf %152, %155 : vector<2x32xf32>
    %c0_126 = arith.constant 0 : index
    %c0_127 = arith.constant 0 : index
    %157 = vector.load %arg10[%c0_126, %c0_127] : memref<1x32xf32, #tpu.memory_space<vmem>>, vector<1x32xf32>
    %158 = vector.broadcast %157 : vector<1x32xf32> to vector<2x32xf32>
    %159 = arith.addf %156, %158 : vector<2x32xf32>
    %cst_128 = arith.constant 0.000000e+00 : f32
    %160 = vector.broadcast %cst_128 : f32 to vector<2x32xf32>
    %161 = arith.maximumf %159, %160 : vector<2x32xf32>
    %c0_129 = arith.constant 0 : index
    %c0_130 = arith.constant 0 : index
    %162 = vector.load %arg11[%c0_129, %c0_130] : memref<32x4xf32, #tpu.memory_space<vmem>>, vector<32x4xf32>
    %cst_131 = arith.constant dense<0.000000e+00> : vector<2x4xf32>
    %163 = tpu.matmul %161, %162, %cst_131 {dimension_numbers = #tpu.dot_dimension_numbers<[1], [0], [0], [1], [0, 0, 1, 1], [], []>} : vector<2x32xf32>, vector<32x4xf32>, vector<2x4xf32> -> vector<2x4xf32>
    %c0_132 = arith.constant 0 : index
    %c0_133 = arith.constant 0 : index
    %164 = vector.load %arg12[%c0_132, %c0_133] : memref<1x4xf32, #tpu.memory_space<vmem>>, vector<1x4xf32>
    %165 = vector.broadcast %164 : vector<1x4xf32> to vector<2x4xf32>
    %166 = arith.addf %163, %165 : vector<2x4xf32>
    %c0_134 = arith.constant 0 : index
    %c0_135 = arith.constant 0 : index
    %167 = vector.load %arg13[%c0_134, %c0_135] : memref<2x4xf32, #tpu.memory_space<vmem>>, vector<2x4xf32>
    tpu.vector_store %arg13[%c0_134, %c0_135], %166 {strides = array<i32>} : memref<2x4xf32, #tpu.memory_space<vmem>>, vector<2x4xf32>,
    return
  }
  func.func @transform_0(%arg0: i32) -> (i32, i32) {
    %c0_i32 = arith.constant 0 : i32
    %c0_i32_0 = arith.constant 0 : i32
    return %arg0, %c0_i32 : i32, i32
  }
  func.func @transform_1(%arg0: i32) -> (i32, i32) {
    %c0_i32 = arith.constant 0 : i32
    %c0_i32_0 = arith.constant 0 : i32
    %c0_i32_1 = arith.constant 0 : i32
    return %c0_i32, %c0_i32_0 : i32, i32
  }
  func.func @transform_2(%arg0: i32) -> (i32, i32) {
    %c0_i32 = arith.constant 0 : i32
    %c0_i32_0 = arith.constant 0 : i32
    %c0_i32_1 = arith.constant 0 : i32
    return %c0_i32, %c0_i32_0 : i32, i32
  }
  func.func @transform_3(%arg0: i32) -> (i32, i32) {
    %c0_i32 = arith.constant 0 : i32
    %c0_i32_0 = arith.constant 0 : i32
    %c0_i32_1 = arith.constant 0 : i32
    return %c0_i32, %c0_i32_0 : i32, i32
  }
  func.func @transform_4(%arg0: i32) -> (i32, i32) {
    %c0_i32 = arith.constant 0 : i32
    %c0_i32_0 = arith.constant 0 : i32
    %c0_i32_1 = arith.constant 0 : i32
    return %c0_i32, %c0_i32_0 : i32, i32
  }
  func.func @transform_5(%arg0: i32) -> (i32, i32) {
    %c0_i32 = arith.constant 0 : i32
    %c0_i32_0 = arith.constant 0 : i32
    %c0_i32_1 = arith.constant 0 : i32
    return %c0_i32, %c0_i32_0 : i32, i32
  }
  func.func @transform_6(%arg0: i32) -> (i32, i32) {
    %c0_i32 = arith.constant 0 : i32
    %c0_i32_0 = arith.constant 0 : i32
    %c0_i32_1 = arith.constant 0 : i32
    return %c0_i32, %c0_i32_0 : i32, i32
  }
  func.func @transform_7(%arg0: i32) -> (i32, i32) {
    %c0_i32 = arith.constant 0 : i32
    %c0_i32_0 = arith.constant 0 : i32
    %c0_i32_1 = arith.constant 0 : i32
    return %c0_i32, %c0_i32_0 : i32, i32
  }
  func.func @transform_8(%arg0: i32) -> (i32, i32) {
    %c0_i32 = arith.constant 0 : i32
    %c0_i32_0 = arith.constant 0 : i32
    %c0_i32_1 = arith.constant 0 : i32
    return %c0_i32, %c0_i32_0 : i32, i32
  }
  func.func @transform_9(%arg0: i32) -> (i32, i32) {
    %c0_i32 = arith.constant 0 : i32
    %c0_i32_0 = arith.constant 0 : i32
    %c0_i32_1 = arith.constant 0 : i32
    return %c0_i32, %c0_i32_0 : i32, i32
  }
  func.func @transform_10(%arg0: i32) -> (i32, i32) {
    %c0_i32 = arith.constant 0 : i32
    %c0_i32_0 = arith.constant 0 : i32
    %c0_i32_1 = arith.constant 0 : i32
    return %c0_i32, %c0_i32_0 : i32, i32
  }
  func.func @transform_11(%arg0: i32) -> (i32, i32) {
    %c0_i32 = arith.constant 0 : i32
    %c0_i32_0 = arith.constant 0 : i32
    %c0_i32_1 = arith.constant 0 : i32
    return %c0_i32, %c0_i32_0 : i32, i32
  }
  func.func @transform_12(%arg0: i32) -> (i32, i32) {
    %c0_i32 = arith.constant 0 : i32
    %c0_i32_0 = arith.constant 0 : i32
    return %arg0, %c0_i32 : i32, i32
  }
}

</mosaic_0001>

<llo_original>
// kernel: tpu_custom_call.1
$region0: #{tpu_custom_call.1}
  #allocation0 [shape = 'u32[]', space=smem, size = 0x4, offset = 0x4, fixed_abs, tag = 'smem constant byte address 0x4 - core index']
  #allocation1 [shape = 'u32[144,128]{1,0:T(1,128)}', space=vmem, size = 0x12000, scoped, tag = 'internal scratch']
  #allocation2 [shape = 'f32[36,144]{1,0:T(8,128)}', space=vmem, size = 0xa000, scoped, tag = 'scratch operand']
  #allocation3 [shape = 'f32[32,284]{1,0:T(8,128)}', space=vmem, size = 0xc000, scoped, tag = 'scratch operand']
  #allocation4 [shape = 'f32[32,284]{1,0:T(8,128)}', space=vmem, size = 0xc000, scoped, tag = 'scratch operand']
  #allocation5 [shape = 'f32[32,144]{1,0:T(8,128)}', space=vmem, size = 0x8000, scoped, tag = 'scratch operand']
  %s0 = inlined_call_operand.vmem [shape: f32[4,196], index: 0, kind: input, shape index: {}]
  %s1 = inlined_call_operand.vmem [shape: s32[1,144], index: 1, kind: input, shape index: {}]
  %s2 = inlined_call_operand.vmem [shape: f32[32,36], index: 2, kind: input, shape index: {}]
  %s3 = inlined_call_operand.vmem [shape: f32[32,1], index: 3, kind: input, shape index: {}]
  %s4 = inlined_call_operand.vmem [shape: f32[16,32], index: 4, kind: input, shape index: {}]
  %s5 = inlined_call_operand.vmem [shape: f32[16,1], index: 5, kind: input, shape index: {}]
  %s6 = inlined_call_operand.vmem [shape: f32[32,16], index: 6, kind: input, shape index: {}]
  %s7 = inlined_call_operand.vmem [shape: f32[32,1], index: 7, kind: input, shape index: {}]
  %s8 = inlined_call_operand.vmem [shape: f32[2304,32], index: 8, kind: input, shape index: {}]
  %s9 = inlined_call_operand.vmem [shape: f32[1,32], index: 9, kind: input, shape index: {}]
  %s10 = inlined_call_operand.vmem [shape: f32[32,4], index: 10, kind: input, shape index: {}]
  %s11 = inlined_call_operand.vmem [shape: f32[1,4], index: 11, kind: input, shape index: {}]
  %s12 = inlined_call_operand.hbm [shape: f32[2,4], index: 12, kind: output, shape index: {}]
  %s13 = sld [smem:[#allocation0]]
  $region58: #{tpu_custom_call.1} parent=0
    _
  %s15 = ssub.s32 1, %s13
  %s16 = scalar_select 0, %s15, %s13
  $region1: #{tpu_custom_call.1} parent=0
    #allocation6 [shape = 'u8[1024]{0}', space=vmem, size = 0x400, scoped, tag = 'output window, operand 0, single buffered']
    #allocation7 [shape = 's32[1]{0}', space=sflag, size = 0x4, scoped, tag = 'scoped memory for tpu_custom_call.1']
    %17 = vsyncpa [#allocation7], 0
    // Predicated region
    $region2: #{tpu_custom_call.1} parent=1 // pred_check
      _
    $region3: #{tpu_custom_call.1} parent=1 // pred_check_branch
      %19 = sbr.rel (0) target = $region5
    $region4: #{tpu_custom_call.1} parent=1 // pred_region
      _
    $region5: #{tpu_custom_call.1} parent=1 // pred_fallthru
      _
    // Predicated region
    $region6: #{tpu_custom_call.1} parent=1 // pred_check
      _
    $region7: #{tpu_custom_call.1} parent=1 // pred_check_branch
      %21 = sbr.rel (0) target = $region9
    $region8: #{tpu_custom_call.1} parent=1 // pred_region
      _
    $region9: #{tpu_custom_call.1} parent=1 // pred_fallthru
      _
    // Predicated region
    $region10: #{tpu_custom_call.1} parent=1 // pred_check
      _
    $region11: #{tpu_custom_call.1} parent=1 // pred_check_branch
      %23 = sbr.rel (0) target = $region13
    $region12: #{tpu_custom_call.1} parent=1 // pred_region
      _
    $region13: #{tpu_custom_call.1} parent=1 // pred_fallthru
      _
    // Predicated region
    $region14: #{tpu_custom_call.1} parent=1 // pred_check
      _
    $region15: #{tpu_custom_call.1} parent=1 // pred_check_branch
      %25 = sbr.rel (0) target = $region17
    $region16: #{tpu_custom_call.1} parent=1 // pred_region
      _
    $region17: #{tpu_custom_call.1} parent=1 // pred_fallthru
      _
    // Predicated region
    $region18: #{tpu_custom_call.1} parent=1 // pred_check
      _
    $region19: #{tpu_custom_call.1} parent=1 // pred_check_branch
      %27 = sbr.rel (0) target = $region21
    $region20: #{tpu_custom_call.1} parent=1 // pred_region
      _
    $region21: #{tpu_custom_call.1} parent=1 // pred_fallthru
      _
    // Predicated region
    $region22: #{tpu_custom_call.1} parent=1 // pred_check
      _
    $region23: #{tpu_custom_call.1} parent=1 // pred_check_branch
      %29 = sbr.rel (0) target = $region25
    $region24: #{tpu_custom_call.1} parent=1 // pred_region
      _
    $region25: #{tpu_custom_call.1} parent=1 // pred_fallthru
      _
    // Predicated region
    $region26: #{tpu_custom_call.1} parent=1 // pred_check
      _
    $region27: #{tpu_custom_call.1} parent=1 // pred_check_branch
      %31 = sbr.rel (0) target = $region29
    $region28: #{tpu_custom_call.1} parent=1 // pred_region
      _
    $region29: #{tpu_custom_call.1} parent=1 // pred_fallthru
      _
    // Predicated region
    $region30: #{tpu_custom_call.1} parent=1 // pred_check
      _
    $region31: #{tpu_custom_call.1} parent=1 // pred_check_branch
      %33 = sbr.rel (0) target = $region33
    $region32: #{tpu_custom_call.1} parent=1 // pred_region
      _
    $region33: #{tpu_custom_call.1} parent=1 // pred_fallthru
      _
    // Predicated region
    $region34: #{tpu_custom_call.1} parent=1 // pred_check
      _
    $region35: #{tpu_custom_call.1} parent=1 // pred_check_branch
      %35 = sbr.rel (0) target = $region37
    $region36: #{tpu_custom_call.1} parent=1 // pred_region
      _
    $region37: #{tpu_custom_call.1} parent=1 // pred_fallthru
      _
    // Predicated region
    $region38: #{tpu_custom_call.1} parent=1 // pred_check
      _
    $region39: #{tpu_custom_call.1} parent=1 // pred_check_branch
      %37 = sbr.rel (0) target = $region41
    $region40: #{tpu_custom_call.1} parent=1 // pred_region
      _
    $region41: #{tpu_custom_call.1} parent=1 // pred_fallthru
      _
    // Predicated region
    $region42: #{tpu_custom_call.1} parent=1 // pred_check
      _
    $region43: #{tpu_custom_call.1} parent=1 // pred_check_branch
      %39 = sbr.rel (0) target = $region45
    $region44: #{tpu_custom_call.1} parent=1 // pred_region
      _
    $region45: #{tpu_custom_call.1} parent=1 // pred_fallthru
      _
    // Predicated region
    $region46: #{tpu_custom_call.1} parent=1 // pred_check
      _
    $region47: #{tpu_custom_call.1} parent=1 // pred_check_branch
      %41 = sbr.rel (0) target = $region49
    $region48: #{tpu_custom_call.1} parent=1 // pred_region
      _
    $region49: #{tpu_custom_call.1} parent=1 // pred_fallthru
      _
    %v42 = vlaneseq
    %v43 = vand.u32 %v42, 127
    %v44 = vadd.s32 %v43, 128
    %v45 = vld [vmem:[%s1] sm:$0x3]
    %v46 = vlaneseq
    %v47 = vshrl.u32 %v46, 7
    %v48 = vsub.s32 0, %v47
    %v49 = vrot.slane %v45, %v48
    %v50 = vlaneseq
    %v51 = vshrl.u32 %v50, 7
    %v52 = vsub.s32 1, %v51
    %v53 = vrot.slane %v45, %v52
    %vm54 = vcmp.eq.s32.totalorder %v49, 0
    %vm55 = vcmp.eq.s32.totalorder %v53, 0
    %vm56 = vcmp.eq.s32.totalorder %v49, 7
    %vm57 = vcmp.eq.s32.totalorder %v53, 7
    %vm58 = vcmp.lt.s32.totalorder %v43, 12
    %vm59 = vcmp.lt.s32.totalorder %v44, 12
    %vm60 = vcmp.ge.s32.totalorder %v43, 84
    %vm61 = vcmp.ge.s32.totalorder %v44, 84
    %vm62 = vcmp.lt.s32.totalorder %v43, 96
    %vm63 = vcmp.lt.s32.totalorder %v44, 96
    %vm64 = vmand %vm60, %vm62
    %vm65 = vmand %vm61, %vm63
    %vm66 = vcmp.lt.s32.totalorder %v49, 8
    %vm67 = vcmp.lt.s32.totalorder %v53, 8
    %vm68 = vmand %vm62, %vm66
    %vm69 = vmand %vm63, %vm67
    %v70 = vld [vmem:[%s0] sm:$0xff]
    %v72 = vcombine.high %v70, %v70
    %74 = vst [vmem:[#allocation2] sm:$0xf] %v70
    %vm75 = vcmask 125952
    %76 = vst.msk [vmem:[#allocation2 + $0x8] sm:$0xf] %vm75, %v72
    %v77 = vld [vmem:[%s0] sm:$0xff]
    %v79 = vcombine.low %v77, %v77
    %80 = vrot.lane.b32.xlu0 %v79, 126
    %v81 = vpop.permute.xlu0 %80
    %82 = vrot.lane.b32.xlu0 %v77, 126
    %v83 = vpop.permute.xlu0 %82
    %vm84 = vcmask 1031168
    %v85 = vsel %vm84, %v81, %v83
    %88 = vst [vmem:[#allocation2] sm:$0xf0] %v85
    %vm89 = vcmask 130052
    %90 = vst.msk [vmem:[#allocation2 + $0x8] sm:$0xf0] %vm89, %v83
    %v91 = vld [vmem:[%s0] sm:$0xff]
    %v93 = vcombine.high %v91, %v91
    %94 = vrot.lane.b32.xlu0 %v91, 124
    %v95 = vpop.permute.xlu0 %94
    %96 = vrot.lane.b32.xlu0 %v93, 124
    %v97 = vpop.permute.xlu0 %96
    %vm98 = vcmask 1014784
    %v99 = vsel %vm98, %v95, %v97
    %102 = vst [vmem:[#allocation2 + $0x10] sm:$0xf] %v99
    %103 = vst.msk [vmem:[#allocation2 + $0x18] sm:$0xf] %vm75, %v97
    %v104 = vld [vmem:[%s0] sm:$0xff]
    %v106 = vcombine.low %v104, %v104
    %107 = vrot.lane.b32.xlu0 %v106, 104
    %v108 = vpop.permute.xlu0 %107
    %109 = vrot.lane.b32.xlu0 %v104, 104
    %v110 = vpop.permute.xlu0 %109
    %vm111 = vcmask 850944
    %v112 = vsel %vm111, %v108, %v110
    %115 = vst [vmem:[#allocation2 + $0x10] sm:$0xf0] %v112
    %116 = vst.msk [vmem:[#allocation2 + $0x18] sm:$0xf0] %vm89, %v110
    %v117 = vld [vmem:[%s0] sm:$0xff]
    %v119 = vcombine.high %v117, %v117
    %120 = vrot.lane.b32.xlu0 %v117, 102
    %v121 = vpop.permute.xlu0 %120
    %122 = vrot.lane.b32.xlu0 %v119, 102
    %v123 = vpop.permute.xlu0 %122
    %vm124 = vcmask 834560
    %v125 = vsel %vm124, %v121, %v123
    %128 = vst [vmem:[#allocation2 + $0x20] sm:$0xf] %v125
    %129 = vst.msk [vmem:[#allocation2 + $0x28] sm:$0xf] %vm75, %v123
    %v130 = vld [vmem:[%s0] sm:$0xff]
    %v132 = vcombine.low %v130, %v130
    %133 = vrot.lane.b32.xlu0 %v132, 100
    %v134 = vpop.permute.xlu0 %133
    %135 = vrot.lane.b32.xlu0 %v130, 100
    %v136 = vpop.permute.xlu0 %135
    %vm137 = vcmask 818176
    %v138 = vsel %vm137, %v134, %v136
    %141 = vst [vmem:[#allocation2 + $0x20] sm:$0xf0] %v138
    %142 = vst.msk [vmem:[#allocation2 + $0x28] sm:$0xf0] %vm89, %v136
    %v143 = vld [vmem:[%s0] sm:$0xff]
    %v145 = vcombine.high %v143, %v143
    %146 = vrot.lane.b32.xlu0 %v143, 80
    %v147 = vpop.permute.xlu0 %146
    %148 = vrot.lane.b32.xlu0 %v145, 80
    %v149 = vpop.permute.xlu0 %148
    %vm150 = vcmask 654336
    %v151 = vsel %vm150, %v147, %v149
    %154 = vst [vmem:[#allocation2 + $0x30] sm:$0xf] %v151
    %155 = vst.msk [vmem:[#allocation2 + $0x38] sm:$0xf] %vm75, %v149
    %v156 = vld [vmem:[%s0] sm:$0xff]
    %v158 = vcombine.low %v156, %v156
    %159 = vrot.lane.b32.xlu0 %v158, 78
    %v160 = vpop.permute.xlu0 %159
    %161 = vrot.lane.b32.xlu0 %v156, 78
    %v162 = vpop.permute.xlu0 %161
    %vm163 = vcmask 637952
    %v164 = vsel %vm163, %v160, %v162
    %167 = vst [vmem:[#allocation2 + $0x30] sm:$0xf0] %v164
    %168 = vst.msk [vmem:[#allocation2 + $0x38] sm:$0xf0] %vm89, %v162
    %v169 = vld [vmem:[%s0] sm:$0xff]
    %v171 = vcombine.high %v169, %v169
    %172 = vrot.lane.b32.xlu0 %v169, 76
    %v173 = vpop.permute.xlu0 %172
    %174 = vrot.lane.b32.xlu0 %v171, 76
    %v175 = vpop.permute.xlu0 %174
    %vm176 = vcmask 621568
    %v177 = vsel %vm176, %v173, %v175
    %180 = vst [vmem:[#allocation2 + $0x40] sm:$0xf] %v177
    %181 = vst.msk [vmem:[#allocation2 + $0x48] sm:$0xf] %vm75, %v175
    %v182 = vld [vmem:[%s2] sm:$0xff]
    %v183 = vld [vmem:[%s2 + $0x8] sm:$0xff]
    %v184 = vld [vmem:[%s2 + $0x10] sm:$0xff]
    %v185 = vld [vmem:[%s2 + $0x18] sm:$0xff]
    %v186 = vld [vmem:[#allocation2] sm:$0xff]
    %v187 = vld [vmem:[#allocation2 + $0x8] sm:$0xff]
    %v188 = vld [vmem:[#allocation2 + $0x10] sm:$0xff]
    %v189 = vld [vmem:[#allocation2 + $0x18] sm:$0xff]
    %v190 = vld [vmem:[#allocation2 + $0x20] sm:$0xff]
    %v191 = vld [vmem:[#allocation2 + $0x28] sm:$0xff]
    %v192 = vld [vmem:[#allocation2 + $0x30] sm:$0xff]
    %v193 = vld [vmem:[#allocation2 + $0x38] sm:$0xff]
    %v194 = vld [vmem:[#allocation2 + $0x40] sm:$0xf]
    %v195 = vld [vmem:[#allocation2 + $0x48] sm:$0xf]
    %v196 = vld [vmem:[%s3] sm:$0xff]
    %v197 = vld [vmem:[%s3 + $0x8] sm:$0xff]
    %v198 = vld [vmem:[%s3 + $0x10] sm:$0xff]
    %v199 = vld [vmem:[%s3 + $0x18] sm:$0xff]
    %201 = vset.pattern.permute.xlu0 0
    %202 = vperm.xlu0 %201, %v196
    %v203 = vpop.permute.xlu0 %202
    %206 = vset.pattern.permute.xlu0 0
    %207 = vperm.xlu0 %206, %v197
    %v208 = vpop.permute.xlu0 %207
    %211 = vset.pattern.permute.xlu0 0
    %212 = vperm.xlu0 %211, %v198
    %v213 = vpop.permute.xlu0 %212
    %216 = vset.pattern.permute.xlu0 0
    %217 = vperm.xlu0 %216, %v199
    %v218 = vpop.permute.xlu0 %217
    %vm220 = vcmask 293888
    %v222 = vsel %vm220, %v182, 0
    %v225 = vsel %vm220, %v183, 0
    %v228 = vsel %vm220, %v184, 0
    %v231 = vsel %vm220, %v185, 0
    %vm233 = vcmask 1043456
    %v235 = vsel %vm233, %v194, 0
    %v238 = vsel %vm233, %v195, 0
    %240 = vmatprep.subr.mxu0 %v187
    %241 = vmatpush1.msra.mxu0 %v186
    %242 = vmatprep.subr.mxu0 %v189
    %243 = vmatpush1.msra.mxu0 %v188
    %244 = vmatprep.subr.mxu0 %v191
    %245 = vmatpush1.msra.mxu0 %v190
    %246 = vmatprep.subr.mxu0 %v193
    %247 = vmatpush1.msra.mxu0 %v192
    %248 = vmatprep.subr.mxu0 %v238
    %249 = vmatpush1.msra.mxu0 %v235
    %250 = vmatprep.subr.mxu0 0.0
    %251 = vmatpush1.msra.mxu0 0.0
    %252 = vmatprep.subr.mxu0 0.0
    %253 = vmatpush1.msra.mxu0 0.0
    %254 = vmatprep.subr.mxu0 0.0
    %255 = vmatpush1.msra.mxu0 0.0
    %256 = vmatprep.subr.mxu0 0.0
    %257 = vmatpush1.msra.mxu0 0.0
    %258 = vmatprep.subr.mxu0 0.0
    %259 = vmatpush1.msra.mxu0 0.0
    %260 = vmatprep.subr.mxu0 0.0
    %261 = vmatpush1.msra.mxu0 0.0
    %262 = vmatprep.subr.mxu0 0.0
    %263 = vmatpush1.msra.mxu0 0.0
    %264 = vmatprep.subr.mxu0 0.0
    %265 = vmatpush1.msra.mxu0 0.0
    %266 = vmatprep.subr.mxu0 0.0
    %267 = vmatpush1.msra.mxu0 0.0
    %268 = vmatprep.subr.mxu0 0.0
    %269 = vmatpush1.msra.mxu0 0.0
    %270 = vmatprep.subr.mxu0 0.0
    %271 = vmatpush1.msra.mxu0 0.0
    %272 = vmatprep.subr.mxu0 0.0
    %273 = vmatpush1.msra.mxu0 0.0
    %274 = vmatprep.subr.mxu0 0.0
    %275 = vmatpush1.msra.mxu0 0.0
    %276 = vmatprep.subr.mxu0 0.0
    %277 = vmatpush1.msra.mxu0 0.0
    %278 = vmatprep.subr.mxu0 0.0
    %279 = vmatpush1.msra.mxu0 0.0
    %280 = vmatprep.subr.mxu0 0.0
    %281 = vmatpush1.msra.mxu0 0.0
    %282 = vmatprep.subr.mxu0 0.0
    %283 = vmatpush1.msra.mxu0 0.0
    %284 = vmatprep.subr.mxu0 0.0
    %285 = vmatpush1.msra.mxu0 0.0
    %286 = vmatprep.subr.mxu0 0.0
    %287 = vmatpush1.msra.mxu0 0.0
    %288 = vmatprep.subr.mxu0 0.0
    %289 = vmatpush1.msra.mxu0 0.0
    %290 = vmatprep.subr.mxu0 0.0
    %291 = vmatpush1.msra.mxu0 0.0
    %292 = vmatprep.subr.mxu0 0.0
    %293 = vmatpush1.msra.mxu0 0.0
    %294 = vmatprep.subr.mxu0 0.0
    %295 = vmatpush1.msra.mxu0 0.0
    %296 = vmatprep.subr.mxu0 0.0
    %297 = vmatpush1.msra.mxu0 0.0
    %298 = vmatprep.subr.mxu0 0.0
    %299 = vmatpush1.msra.mxu0 0.0
    %300 = vmatprep.subr.mxu0 0.0
    %301 = vmatpush1.msra.mxu0 0.0
    %302 = vmatprep.subr.mxu0 0.0
    %303 = vmatpush1.msra.mxu0 0.0
    %304 = vmatprep.mubr.f32.mxu0 0.0
    %305 = vmatmul.mubr.f32.gmra.mrb[0].mxu0 %v222
    %v306 = vpop.f32.mrb[0].mxu0
    %v307 = vadd.f32 %v203, %v306
    %v308 = vpop.f32.mrb[0].mxu0
    %v309 = vadd.f32 %v203, %v308
    %310 = vmatprep.mubr.f32.mxu0 0.0
    %311 = vmatmul.mubr.f32.gmra.mrb[0].mxu0 %v225
    %v312 = vpop.f32.mrb[0].mxu0
    %v313 = vadd.f32 %v208, %v312
    %v314 = vpop.f32.mrb[0].mxu0
    %v315 = vadd.f32 %v208, %v314
    %316 = vmatprep.mubr.f32.mxu0 0.0
    %317 = vmatmul.mubr.f32.gmra.mrb[0].mxu0 %v228
    %v318 = vpop.f32.mrb[0].mxu0
    %v319 = vadd.f32 %v213, %v318
    %v320 = vpop.f32.mrb[0].mxu0
    %v321 = vadd.f32 %v213, %v320
    %322 = vmatprep.mubr.f32.mxu0 0.0
    %323 = vmatmul.mubr.f32.gmra.mrb[0].mxu0 %v231
    %v324 = vpop.f32.mrb[0].mxu0
    %v325 = vadd.f32 %v218, %v324
    %v326 = vpop.f32.mrb[0].mxu0
    %v327 = vadd.f32 %v218, %v326
    %328 = vdwg.mxu0
    %v329 = vmax.f32 %v307, 0.0
    %v330 = vmax.f32 %v309, 0.0
    %v331 = vmax.f32 %v313, 0.0
    %v332 = vmax.f32 %v315, 0.0
    %v333 = vmax.f32 %v319, 0.0
    %v334 = vmax.f32 %v321, 0.0
    %v335 = vmax.f32 %v325, 0.0
    %v336 = vmax.f32 %v327, 0.0
    %337 = vst [vmem:[#allocation3] sm:$0xff] 0.0
    %338 = vst [vmem:[#allocation3 + $0x8] sm:$0xff] 0.0
    %vm339 = vcmask 228352
    %340 = vst.msk [vmem:[#allocation3 + $0x10] sm:$0xff] %vm339, 0.0
    %341 = vst [vmem:[#allocation3 + $0x18] sm:$0xff] 0.0
    %342 = vst [vmem:[#allocation3 + $0x20] sm:$0xff] 0.0
    %343 = vst.msk [vmem:[#allocation3 + $0x28] sm:$0xff] %vm339, 0.0
    %344 = vst [vmem:[#allocation3 + $0x30] sm:$0xff] 0.0
    %345 = vst [vmem:[#allocation3 + $0x38] sm:$0xff] 0.0
    %346 = vst.msk [vmem:[#allocation3 + $0x40] sm:$0xff] %vm339, 0.0
    %347 = vst [vmem:[#allocation3 + $0x48] sm:$0xff] 0.0
    %348 = vst [vmem:[#allocation3 + $0x50] sm:$0xff] 0.0
    %349 = vst.msk [vmem:[#allocation3 + $0x58] sm:$0xff] %vm339, 0.0
    %350 = vst [vmem:[#allocation3 + $0x8] sm:$0xff] %v329
    %vm351 = vcmask 130048
    %352 = vst.msk [vmem:[#allocation3 + $0x10] sm:$0xff] %vm351, %v330
    %353 = vst [vmem:[#allocation3 + $0x20] sm:$0xff] %v331
    %354 = vst.msk [vmem:[#allocation3 + $0x28] sm:$0xff] %vm351, %v332
    %355 = vst [vmem:[#allocation3 + $0x38] sm:$0xff] %v333
    %356 = vst.msk [vmem:[#allocation3 + $0x40] sm:$0xff] %vm351, %v334
    %357 = vst [vmem:[#allocation3 + $0x50] sm:$0xff] %v335
    %358 = vst.msk [vmem:[#allocation3 + $0x58] sm:$0xff] %vm351, %v336
    %v359 = vld [vmem:[#allocation3] sm:$0xff]
    %v360 = vld [vmem:[#allocation3 + $0x8] sm:$0xff]
    %v361 = vld [vmem:[#allocation3 + $0x10] sm:$0xff]
    %v362 = vld [vmem:[#allocation3 + $0x18] sm:$0xff]
    %v363 = vld [vmem:[#allocation3 + $0x20] sm:$0xff]
    %v364 = vld [vmem:[#allocation3 + $0x28] sm:$0xff]
    %v365 = vld [vmem:[#allocation3 + $0x30] sm:$0xff]
    %v366 = vld [vmem:[#allocation3 + $0x38] sm:$0xff]
    %v367 = vld [vmem:[#allocation3 + $0x40] sm:$0xff]
    %v368 = vld [vmem:[#allocation3 + $0x48] sm:$0xff]
    %v369 = vld [vmem:[#allocation3 + $0x50] sm:$0xff]
    %v370 = vld [vmem:[#allocation3 + $0x58] sm:$0xff]
    %383 = vrot.lane.b32.xlu0 %v359, 1
    %v384 = vpop.permute.xlu0 %383
    %385 = vrot.lane.b32.xlu0 %v360, 1
    %v386 = vpop.permute.xlu0 %385
    %387 = vrot.lane.b32.xlu0 %v361, 1
    %v388 = vpop.permute.xlu0 %387
    %389 = vrot.lane.b32.xlu0 %v362, 1
    %v390 = vpop.permute.xlu0 %389
    %391 = vrot.lane.b32.xlu0 %v363, 1
    %v392 = vpop.permute.xlu0 %391
    %393 = vrot.lane.b32.xlu0 %v364, 1
    %v394 = vpop.permute.xlu0 %393
    %395 = vrot.lane.b32.xlu0 %v365, 1
    %v396 = vpop.permute.xlu0 %395
    %397 = vrot.lane.b32.xlu0 %v366, 1
    %v398 = vpop.permute.xlu0 %397
    %399 = vrot.lane.b32.xlu0 %v367, 1
    %v400 = vpop.permute.xlu0 %399
    %401 = vrot.lane.b32.xlu0 %v368, 1
    %v402 = vpop.permute.xlu0 %401
    %403 = vrot.lane.b32.xlu0 %v369, 1
    %v404 = vpop.permute.xlu0 %403
    %405 = vrot.lane.b32.xlu0 %v370, 1
    %v406 = vpop.permute.xlu0 %405
    %vm407 = vcmask 7168
    %v408 = vsel %vm407, %v384, %v386
    %v409 = vsel %vm407, %v386, %v388
    %v410 = vsel %vm407, %v390, %v392
    %v411 = vsel %vm407, %v392, %v394
    %v412 = vsel %vm407, %v396, %v398
    %v413 = vsel %vm407, %v398, %v400
    %v414 = vsel %vm407, %v402, %v404
    %v415 = vsel %vm407, %v404, %v406
    %v424 = vsel %vm54, -inf, %v408
    %v425 = vsel %vm55, -inf, %v409
    %v426 = vsel %vm54, -inf, %v410
    %v427 = vsel %vm55, -inf, %v411
    %v428 = vsel %vm54, -inf, %v412
    %v429 = vsel %vm55, -inf, %v413
    %v430 = vsel %vm54, -inf, %v414
    %v431 = vsel %vm55, -inf, %v415
    %432 = vrot.lane.b32.xlu0 %v360, 127
    %v433 = vpop.permute.xlu0 %432
    %434 = vrot.lane.b32.xlu0 %v361, 127
    %v435 = vpop.permute.xlu0 %434
    %436 = vrot.lane.b32.xlu0 %v363, 127
    %v437 = vpop.permute.xlu0 %436
    %438 = vrot.lane.b32.xlu0 %v364, 127
    %v439 = vpop.permute.xlu0 %438
    %440 = vrot.lane.b32.xlu0 %v366, 127
    %v441 = vpop.permute.xlu0 %440
    %442 = vrot.lane.b32.xlu0 %v367, 127
    %v443 = vpop.permute.xlu0 %442
    %444 = vrot.lane.b32.xlu0 %v369, 127
    %v445 = vpop.permute.xlu0 %444
    %446 = vrot.lane.b32.xlu0 %v370, 127
    %v447 = vpop.permute.xlu0 %446
    %vm448 = vcmask 1039360
    %v449 = vsel %vm448, %v433, %v435
    %v450 = vsel %vm448, %v437, %v439
    %v451 = vsel %vm448, %v441, %v443
    %v452 = vsel %vm448, %v445, %v447
    %v461 = vsel %vm56, -inf, %v449
    %v462 = vsel %vm57, -inf, %v435
    %v463 = vsel %vm56, -inf, %v450
    %v464 = vsel %vm57, -inf, %v439
    %v465 = vsel %vm56, -inf, %v451
    %v466 = vsel %vm57, -inf, %v443
    %v467 = vsel %vm56, -inf, %v452
    %v468 = vsel %vm57, -inf, %v447
    %v469 = vmax.f32 %v424, %v461
    %v470 = vmax.f32 %v425, %v462
    %v471 = vmax.f32 %v426, %v463
    %v472 = vmax.f32 %v427, %v464
    %v473 = vmax.f32 %v428, %v465
    %v474 = vmax.f32 %v429, %v466
    %v475 = vmax.f32 %v430, %v467
    %v476 = vmax.f32 %v431, %v468
    %v477 = vmax.f32 %v329, %v469
    %v478 = vmax.f32 %v330, %v470
    %v479 = vmax.f32 %v331, %v471
    %v480 = vmax.f32 %v332, %v472
    %v481 = vmax.f32 %v333, %v473
    %v482 = vmax.f32 %v334, %v474
    %v483 = vmax.f32 %v335, %v475
    %v484 = vmax.f32 %v336, %v476
    %485 = vst [vmem:[#allocation4] sm:$0xff] 0.0
    %486 = vst [vmem:[#allocation4 + $0x8] sm:$0xff] 0.0
    %487 = vst.msk [vmem:[#allocation4 + $0x10] sm:$0xff] %vm339, 0.0
    %488 = vst [vmem:[#allocation4 + $0x18] sm:$0xff] 0.0
    %489 = vst [vmem:[#allocation4 + $0x20] sm:$0xff] 0.0
    %490 = vst.msk [vmem:[#allocation4 + $0x28] sm:$0xff] %vm339, 0.0
    %491 = vst [vmem:[#allocation4 + $0x30] sm:$0xff] 0.0
    %492 = vst [vmem:[#allocation4 + $0x38] sm:$0xff] 0.0
    %493 = vst.msk [vmem:[#allocation4 + $0x40] sm:$0xff] %vm339, 0.0
    %494 = vst [vmem:[#allocation4 + $0x48] sm:$0xff] 0.0
    %495 = vst [vmem:[#allocation4 + $0x50] sm:$0xff] 0.0
    %496 = vst.msk [vmem:[#allocation4 + $0x58] sm:$0xff] %vm339, 0.0
    %497 = vst [vmem:[#allocation4 + $0x8] sm:$0xff] %v477
    %498 = vst.msk [vmem:[#allocation4 + $0x10] sm:$0xff] %vm351, %v478
    %499 = vst [vmem:[#allocation4 + $0x20] sm:$0xff] %v479
    %500 = vst.msk [vmem:[#allocation4 + $0x28] sm:$0xff] %vm351, %v480
    %501 = vst [vmem:[#allocation4 + $0x38] sm:$0xff] %v481
    %502 = vst.msk [vmem:[#allocation4 + $0x40] sm:$0xff] %vm351, %v482
    %503 = vst [vmem:[#allocation4 + $0x50] sm:$0xff] %v483
    %504 = vst.msk [vmem:[#allocation4 + $0x58] sm:$0xff] %vm351, %v484
    %v505 = vld [vmem:[#allocation4] sm:$0xff]
    %v506 = vld [vmem:[#allocation4 + $0x8] sm:$0xff]
    %v507 = vld [vmem:[#allocation4 + $0x10] sm:$0xff]
    %v508 = vld [vmem:[#allocation4 + $0x18] sm:$0xff]
    %v509 = vld [vmem:[#allocation4 + $0x20] sm:$0xff]
    %v510 = vld [vmem:[#allocation4 + $0x28] sm:$0xff]
    %v511 = vld [vmem:[#allocation4 + $0x30] sm:$0xff]
    %v512 = vld [vmem:[#allocation4 + $0x38] sm:$0xff]
    %v513 = vld [vmem:[#allocation4 + $0x40] sm:$0xff]
    %v514 = vld [vmem:[#allocation4 + $0x48] sm:$0xff]
    %v515 = vld [vmem:[#allocation4 + $0x50] sm:$0xff]
    %v516 = vld [vmem:[#allocation4 + $0x58] sm:$0xff]
    %529 = vrot.lane.b32.xlu0 %v505, 12
    %v530 = vpop.permute.xlu0 %529
    %531 = vrot.lane.b32.xlu0 %v506, 12
    %v532 = vpop.permute.xlu0 %531
    %533 = vrot.lane.b32.xlu0 %v507, 12
    %v534 = vpop.permute.xlu0 %533
    %535 = vrot.lane.b32.xlu0 %v508, 12
    %v536 = vpop.permute.xlu0 %535
    %537 = vrot.lane.b32.xlu0 %v509, 12
    %v538 = vpop.permute.xlu0 %537
    %539 = vrot.lane.b32.xlu0 %v510, 12
    %v540 = vpop.permute.xlu0 %539
    %541 = vrot.lane.b32.xlu0 %v511, 12
    %v542 = vpop.permute.xlu0 %541
    %543 = vrot.lane.b32.xlu0 %v512, 12
    %v544 = vpop.permute.xlu0 %543
    %545 = vrot.lane.b32.xlu0 %v513, 12
    %v546 = vpop.permute.xlu0 %545
    %547 = vrot.lane.b32.xlu0 %v514, 12
    %v548 = vpop.permute.xlu0 %547
    %549 = vrot.lane.b32.xlu0 %v515, 12
    %v550 = vpop.permute.xlu0 %549
    %551 = vrot.lane.b32.xlu0 %v516, 12
    %v552 = vpop.permute.xlu0 %551
    %vm553 = vcmask 97280
    %v554 = vsel %vm553, %v530, %v532
    %v555 = vsel %vm553, %v532, %v534
    %v556 = vsel %vm553, %v536, %v538
    %v557 = vsel %vm553, %v538, %v540
    %v558 = vsel %vm553, %v542, %v544
    %v559 = vsel %vm553, %v544, %v546
    %v560 = vsel %vm553, %v548, %v550
    %v561 = vsel %vm553, %v550, %v552
    %v570 = vsel %vm58, -inf, %v554
    %v571 = vsel %vm59, -inf, %v555
    %v572 = vsel %vm58, -inf, %v556
    %v573 = vsel %vm59, -inf, %v557
    %v574 = vsel %vm58, -inf, %v558
    %v575 = vsel %vm59, -inf, %v559
    %v576 = vsel %vm58, -inf, %v560
    %v577 = vsel %vm59, -inf, %v561
    %578 = vrot.lane.b32.xlu0 %v506, 116
    %v579 = vpop.permute.xlu0 %578
    %580 = vrot.lane.b32.xlu0 %v507, 116
    %v581 = vpop.permute.xlu0 %580
    %582 = vrot.lane.b32.xlu0 %v509, 116
    %v583 = vpop.permute.xlu0 %582
    %584 = vrot.lane.b32.xlu0 %v510, 116
    %v585 = vpop.permute.xlu0 %584
    %586 = vrot.lane.b32.xlu0 %v512, 116
    %v587 = vpop.permute.xlu0 %586
    %588 = vrot.lane.b32.xlu0 %v513, 116
    %v589 = vpop.permute.xlu0 %588
    %590 = vrot.lane.b32.xlu0 %v515, 116
    %v591 = vpop.permute.xlu0 %590
    %592 = vrot.lane.b32.xlu0 %v516, 116
    %v593 = vpop.permute.xlu0 %592
    %vm594 = vcmask 949248
    %v595 = vsel %vm594, %v579, %v581
    %v596 = vsel %vm594, %v583, %v585
    %v597 = vsel %vm594, %v587, %v589
    %v598 = vsel %vm594, %v591, %v593
    %v607 = vsel %vm64, -inf, %v595
    %v608 = vsel %vm65, -inf, %v581
    %v609 = vsel %vm64, -inf, %v596
    %v610 = vsel %vm65, -inf, %v585
    %v611 = vsel %vm64, -inf, %v597
    %v612 = vsel %vm65, -inf, %v589
    %v613 = vsel %vm64, -inf, %v598
    %v614 = vsel %vm65, -inf, %v593
    %v615 = vmax.f32 %v570, %v607
    %v616 = vmax.f32 %v571, %v608
    %v617 = vmax.f32 %v572, %v609
    %v618 = vmax.f32 %v573, %v610
    %v619 = vmax.f32 %v574, %v611
    %v620 = vmax.f32 %v575, %v612
    %v621 = vmax.f32 %v576, %v613
    %v622 = vmax.f32 %v577, %v614
    %v623 = vmax.f32 %v477, %v615
    %v624 = vmax.f32 %v478, %v616
    %v625 = vmax.f32 %v479, %v617
    %v626 = vmax.f32 %v480, %v618
    %v627 = vmax.f32 %v481, %v619
    %v628 = vmax.f32 %v482, %v620
    %v629 = vmax.f32 %v483, %v621
    %v630 = vmax.f32 %v484, %v622
    %v631 = vsel %vm68, %v623, 0.0
    %v632 = vsel %vm69, %v624, 0.0
    %v633 = vsel %vm68, %v625, 0.0
    %v634 = vsel %vm69, %v626, 0.0
    %v635 = vsel %vm68, %v627, 0.0
    %v636 = vsel %vm69, %v628, 0.0
    %v637 = vsel %vm68, %v629, 0.0
    %v638 = vsel %vm69, %v630, 0.0
    %v639 = vsel %vm351, %v632, 0.0
    %v640 = vadd.f32 %v631, %v639
    %641 = vadd.xlane.f32.xlu0 %v640
    %v642 = vpop.xlane.xlu0 %641
    %v643 = vsel %vm351, %v634, 0.0
    %v644 = vadd.f32 %v633, %v643
    %645 = vadd.xlane.f32.xlu0 %v644
    %v646 = vpop.xlane.xlu0 %645
    %v647 = vsel %vm351, %v636, 0.0
    %v648 = vadd.f32 %v635, %v647
    %649 = vadd.xlane.f32.xlu0 %v648
    %v650 = vpop.xlane.xlu0 %649
    %v651 = vsel %vm351, %v638, 0.0
    %v652 = vadd.f32 %v637, %v651
    %653 = vadd.xlane.f32.xlu0 %v652
    %v654 = vpop.xlane.xlu0 %653
    %v655 = vmul.f32 %v642, 0.015625
    %v656 = vmul.f32 %v646, 0.015625
    %v657 = vmul.f32 %v650, 0.015625
    %v658 = vmul.f32 %v654, 0.015625
    %v659 = vld [vmem:[%s4] sm:$0xff]
    %v660 = vld [vmem:[%s4 + $0x8] sm:$0xff]
    %v661 = vld [vmem:[%s5] sm:$0xff]
    %v662 = vld [vmem:[%s5 + $0x8] sm:$0xff]
    %vm663 = vcmask 261120
    %v665 = vsel %vm663, %v659, 0
    %v668 = vsel %vm663, %v660, 0
    %670 = vmatprep.subr.mxu0 0.0
    %671 = vmatpush1.msra.mxu0 %v655
    %672 = vmatprep.subr.mxu0 0.0
    %673 = vmatpush1.msra.mxu0 %v656
    %674 = vmatprep.subr.mxu0 0.0
    %675 = vmatpush1.msra.mxu0 %v657
    %676 = vmatprep.subr.mxu0 0.0
    %677 = vmatpush1.msra.mxu0 %v658
    %678 = vmatprep.subr.mxu0 0.0
    %679 = vmatpush1.msra.mxu0 0.0
    %680 = vmatprep.subr.mxu0 0.0
    %681 = vmatpush1.msra.mxu0 0.0
    %682 = vmatprep.subr.mxu0 0.0
    %683 = vmatpush1.msra.mxu0 0.0
    %684 = vmatprep.subr.mxu0 0.0
    %685 = vmatpush1.msra.mxu0 0.0
    %686 = vmatprep.subr.mxu0 0.0
    %687 = vmatpush1.msra.mxu0 0.0
    %688 = vmatprep.subr.mxu0 0.0
    %689 = vmatpush1.msra.mxu0 0.0
    %690 = vmatprep.subr.mxu0 0.0
    %691 = vmatpush1.msra.mxu0 0.0
    %692 = vmatprep.subr.mxu0 0.0
    %693 = vmatpush1.msra.mxu0 0.0
    %694 = vmatprep.subr.mxu0 0.0
    %695 = vmatpush1.msra.mxu0 0.0
    %696 = vmatprep.subr.mxu0 0.0
    %697 = vmatpush1.msra.mxu0 0.0
    %698 = vmatprep.subr.mxu0 0.0
    %699 = vmatpush1.msra.mxu0 0.0
    %700 = vmatprep.subr.mxu0 0.0
    %701 = vmatpush1.msra.mxu0 0.0
    %702 = vmatprep.subr.mxu0 0.0
    %703 = vmatpush1.msra.mxu0 0.0
    %704 = vmatprep.subr.mxu0 0.0
    %705 = vmatpush1.msra.mxu0 0.0
    %706 = vmatprep.subr.mxu0 0.0
    %707 = vmatpush1.msra.mxu0 0.0
    %708 = vmatprep.subr.mxu0 0.0
    %709 = vmatpush1.msra.mxu0 0.0
    %710 = vmatprep.subr.mxu0 0.0
    %711 = vmatpush1.msra.mxu0 0.0
    %712 = vmatprep.subr.mxu0 0.0
    %713 = vmatpush1.msra.mxu0 0.0
    %714 = vmatprep.subr.mxu0 0.0
    %715 = vmatpush1.msra.mxu0 0.0
    %716 = vmatprep.subr.mxu0 0.0
    %717 = vmatpush1.msra.mxu0 0.0
    %718 = vmatprep.subr.mxu0 0.0
    %719 = vmatpush1.msra.mxu0 0.0
    %720 = vmatprep.subr.mxu0 0.0
    %721 = vmatpush1.msra.mxu0 0.0
    %722 = vmatprep.subr.mxu0 0.0
    %723 = vmatpush1.msra.mxu0 0.0
    %724 = vmatprep.subr.mxu0 0.0
    %725 = vmatpush1.msra.mxu0 0.0
    %726 = vmatprep.subr.mxu0 0.0
    %727 = vmatpush1.msra.mxu0 0.0
    %728 = vmatprep.subr.mxu0 0.0
    %729 = vmatpush1.msra.mxu0 0.0
    %730 = vmatprep.subr.mxu0 0.0
    %731 = vmatpush1.msra.mxu0 0.0
    %732 = vmatprep.subr.mxu0 0.0
    %733 = vmatpush1.msra.mxu0 0.0
    %734 = vmatprep.mubr.f32.mxu0 0.0
    %735 = vmatmul.mubr.f32.gmra.mrb[0].mxu0 %v665
    %v736 = vpop.f32.mrb[0].mxu0
    %v737 = vadd.f32 %v661, %v736
    %v738 = vpop.f32.mrb[0].mxu0
    %739 = vmatprep.mubr.f32.mxu0 0.0
    %740 = vmatmul.mubr.f32.gmra.mrb[0].mxu0 %v668
    %v741 = vpop.f32.mrb[0].mxu0
    %v742 = vadd.f32 %v662, %v741
    %v743 = vpop.f32.mrb[0].mxu0
    %744 = vdwg.mxu0
    %v745 = vmax.f32 %v737, 0.0
    %v746 = vmax.f32 %v742, 0.0
    %v747 = vld [vmem:[%s6] sm:$0xff]
    %v748 = vld [vmem:[%s6 + $0x8] sm:$0xff]
    %v749 = vld [vmem:[%s6 + $0x10] sm:$0xff]
    %v750 = vld [vmem:[%s6 + $0x18] sm:$0xff]
    %v751 = vld [vmem:[%s7] sm:$0xff]
    %v752 = vld [vmem:[%s7 + $0x8] sm:$0xff]
    %v753 = vld [vmem:[%s7 + $0x10] sm:$0xff]
    %v754 = vld [vmem:[%s7 + $0x18] sm:$0xff]
    %v756 = vsel %vm351, %v747, 0
    %v759 = vsel %vm351, %v748, 0
    %v762 = vsel %vm351, %v749, 0
    %v765 = vsel %vm351, %v750, 0
    %767 = vmatprep.subr.mxu0 0.0
    %768 = vmatpush1.msra.mxu0 %v745
    %769 = vmatprep.subr.mxu0 0.0
    %770 = vmatpush1.msra.mxu0 %v746
    %771 = vmatprep.subr.mxu0 0.0
    %772 = vmatpush1.msra.mxu0 0.0
    %773 = vmatprep.subr.mxu0 0.0
    %774 = vmatpush1.msra.mxu0 0.0
    %775 = vmatprep.subr.mxu0 0.0
    %776 = vmatpush1.msra.mxu0 0.0
    %777 = vmatprep.subr.mxu0 0.0
    %778 = vmatpush1.msra.mxu0 0.0
    %779 = vmatprep.subr.mxu0 0.0
    %780 = vmatpush1.msra.mxu0 0.0
    %781 = vmatprep.subr.mxu0 0.0
    %782 = vmatpush1.msra.mxu0 0.0
    %783 = vmatprep.subr.mxu0 0.0
    %784 = vmatpush1.msra.mxu0 0.0
    %785 = vmatprep.subr.mxu0 0.0
    %786 = vmatpush1.msra.mxu0 0.0
    %787 = vmatprep.subr.mxu0 0.0
    %788 = vmatpush1.msra.mxu0 0.0
    %789 = vmatprep.subr.mxu0 0.0
    %790 = vmatpush1.msra.mxu0 0.0
    %791 = vmatprep.subr.mxu0 0.0
    %792 = vmatpush1.msra.mxu0 0.0
    %793 = vmatprep.subr.mxu0 0.0
    %794 = vmatpush1.msra.mxu0 0.0
    %795 = vmatprep.subr.mxu0 0.0
    %796 = vmatpush1.msra.mxu0 0.0
    %797 = vmatprep.subr.mxu0 0.0
    %798 = vmatpush1.msra.mxu0 0.0
    %799 = vmatprep.subr.mxu0 0.0
    %800 = vmatpush1.msra.mxu0 0.0
    %801 = vmatprep.subr.mxu0 0.0
    %802 = vmatpush1.msra.mxu0 0.0
    %803 = vmatprep.subr.mxu0 0.0
    %804 = vmatpush1.msra.mxu0 0.0
    %805 = vmatprep.subr.mxu0 0.0
    %806 = vmatpush1.msra.mxu0 0.0
    %807 = vmatprep.subr.mxu0 0.0
    %808 = vmatpush1.msra.mxu0 0.0
    %809 = vmatprep.subr.mxu0 0.0
    %810 = vmatpush1.msra.mxu0 0.0
    %811 = vmatprep.subr.mxu0 0.0
    %812 = vmatpush1.msra.mxu0 0.0
    %813 = vmatprep.subr.mxu0 0.0
    %814 = vmatpush1.msra.mxu0 0.0
    %815 = vmatprep.subr.mxu0 0.0
    %816 = vmatpush1.msra.mxu0 0.0
    %817 = vmatprep.subr.mxu0 0.0
    %818 = vmatpush1.msra.mxu0 0.0
    %819 = vmatprep.subr.mxu0 0.0
    %820 = vmatpush1.msra.mxu0 0.0
    %821 = vmatprep.subr.mxu0 0.0
    %822 = vmatpush1.msra.mxu0 0.0
    %823 = vmatprep.subr.mxu0 0.0
    %824 = vmatpush1.msra.mxu0 0.0
    %825 = vmatprep.subr.mxu0 0.0
    %826 = vmatpush1.msra.mxu0 0.0
    %827 = vmatprep.subr.mxu0 0.0
    %828 = vmatpush1.msra.mxu0 0.0
    %829 = vmatprep.subr.mxu0 0.0
    %830 = vmatpush1.msra.mxu0 0.0
    %831 = vmatprep.mubr.f32.mxu0 0.0
    %832 = vmatmul.mubr.f32.gmra.mrb[0].mxu0 %v756
    %v833 = vpop.f32.mrb[0].mxu0
    %v834 = vadd.f32 %v751, %v833
    %v835 = vpop.f32.mrb[0].mxu0
    %836 = vmatprep.mubr.f32.mxu0 0.0
    %837 = vmatmul.mubr.f32.gmra.mrb[0].mxu0 %v759
    %v838 = vpop.f32.mrb[0].mxu0
    %v839 = vadd.f32 %v752, %v838
    %v840 = vpop.f32.mrb[0].mxu0
    %841 = vmatprep.mubr.f32.mxu0 0.0
    %842 = vmatmul.mubr.f32.gmra.mrb[0].mxu0 %v762
    %v843 = vpop.f32.mrb[0].mxu0
    %v844 = vadd.f32 %v753, %v843
    %v845 = vpop.f32.mrb[0].mxu0
    %846 = vmatprep.mubr.f32.mxu0 0.0
    %847 = vmatmul.mubr.f32.gmra.mrb[0].mxu0 %v765
    %v848 = vpop.f32.mrb[0].mxu0
    %v849 = vadd.f32 %v754, %v848
    %v850 = vpop.f32.mrb[0].mxu0
    %851 = vdwg.mxu0
    %v852 = vxor.u32 %v834, 2147483648
    %v853 = vxor.u32 %v839, 2147483648
    %v854 = vxor.u32 %v844, 2147483648
    %v855 = vxor.u32 %v849, 2147483648
    %v856 = vmul.f32 %v852, 1.442695
    %v857 = vpow.pop %v856
    %v858 = vmul.f32 %v853, 1.442695
    %v859 = vpow.pop %v858
    %v860 = vmul.f32 %v854, 1.442695
    %v861 = vpow.pop %v860
    %v862 = vmul.f32 %v855, 1.442695
    %v863 = vpow.pop %v862
    %v864 = vadd.f32 %v857, 1.0
    %v865 = vadd.f32 %v859, 1.0
    %v866 = vadd.f32 %v861, 1.0
    %v867 = vadd.f32 %v863, 1.0
    %v868 = vrcp.pop %v864
    %v869 = vmul.f32 1.0, %v868
    %v870 = vrcp.pop %v865
    %v871 = vmul.f32 1.0, %v870
    %v872 = vrcp.pop %v866
    %v873 = vmul.f32 1.0, %v872
    %v874 = vrcp.pop %v867
    %v875 = vmul.f32 1.0, %v874
    %877 = vset.pattern.permute.xlu0 0
    %878 = vperm.xlu0 %877, %v869
    %v879 = vpop.permute.xlu0 %878
    %882 = vset.pattern.permute.xlu0 0
    %883 = vperm.xlu0 %882, %v871
    %v884 = vpop.permute.xlu0 %883
    %887 = vset.pattern.permute.xlu0 0
    %888 = vperm.xlu0 %887, %v873
    %v889 = vpop.permute.xlu0 %888
    %892 = vset.pattern.permute.xlu0 0
    %893 = vperm.xlu0 %892, %v875
    %v894 = vpop.permute.xlu0 %893
    %v896 = vmul.f32 %v623, %v879
    %v897 = vmul.f32 %v624, %v879
    %v898 = vmul.f32 %v625, %v884
    %v899 = vmul.f32 %v626, %v884
    %v900 = vmul.f32 %v627, %v889
    %v901 = vmul.f32 %v628, %v889
    %v902 = vmul.f32 %v629, %v894
    %v903 = vmul.f32 %v630, %v894
    %904 = vst [vmem:[#allocation5] sm:$0xff] %v896
    %905 = vst.msk [vmem:[#allocation5 + $0x8] sm:$0xff] %vm351, %v897
    %906 = vst [vmem:[#allocation5 + $0x10] sm:$0xff] %v898
    %907 = vst.msk [vmem:[#allocation5 + $0x18] sm:$0xff] %vm351, %v899
    %908 = vst [vmem:[#allocation5 + $0x20] sm:$0xff] %v900
    %909 = vst.msk [vmem:[#allocation5 + $0x28] sm:$0xff] %vm351, %v901
    %910 = vst [vmem:[#allocation5 + $0x30] sm:$0xff] %v902
    %911 = vst.msk [vmem:[#allocation5 + $0x38] sm:$0xff] %vm351, %v903
    %v912 = vld [vmem:[#allocation5] sm:$0x3]
    %v913 = vld [vmem:[#allocation5 + $0x8] sm:$0x3]
    %v914 = vld [vmem:[%s8] sm:$0xff]
    %v915 = vld [vmem:[%s8 + $0x8] sm:$0xff]
    %v916 = vld [vmem:[%s8 + $0x10] sm:$0xff]
    %v917 = vld [vmem:[%s8 + $0x18] sm:$0xff]
    %v918 = vld [vmem:[%s8 + $0x20] sm:$0xff]
    %v919 = vld [vmem:[%s8 + $0x28] sm:$0xff]
    %v920 = vld [vmem:[%s8 + $0x30] sm:$0xff]
    %v921 = vld [vmem:[%s8 + $0x38] sm:$0xff]
    %v922 = vld [vmem:[%s8 + $0x40] sm:$0xff]
    %v923 = vld [vmem:[%s8 + $0x48] sm:$0xff]
    %v924 = vld [vmem:[%s8 + $0x50] sm:$0xff]
    %v925 = vld [vmem:[%s8 + $0x58] sm:$0xff]
    %v926 = vld [vmem:[%s8 + $0x60] sm:$0xff]
    %v927 = vld [vmem:[%s8 + $0x68] sm:$0xff]
    %v928 = vld [vmem:[%s8 + $0x70] sm:$0xff]
    %v929 = vld [vmem:[%s8 + $0x78] sm:$0xff]
    %v930 = vld [vmem:[%s8 + $0x80] sm:$0xff]
    %v931 = vld [vmem:[%s8 + $0x88] sm:$0xff]
    %v932 = vld [vmem:[#allocation5] sm:$0xc]
    %v933 = vld [vmem:[#allocation5 + $0x8] sm:$0xc]
    %v934 = vld [vmem:[%s8 + $0x90] sm:$0xff]
    %v935 = vld [vmem:[%s8 + $0x98] sm:$0xff]
    %v936 = vld [vmem:[%s8 + $0xa0] sm:$0xff]
    %v937 = vld [vmem:[%s8 + $0xa8] sm:$0xff]
    %v938 = vld [vmem:[%s8 + $0xb0] sm:$0xff]
    %v939 = vld [vmem:[%s8 + $0xb8] sm:$0xff]
    %v940 = vld [vmem:[%s8 + $0xc0] sm:$0xff]
    %v941 = vld [vmem:[%s8 + $0xc8] sm:$0xff]
    %v942 = vld [vmem:[%s8 + $0xd0] sm:$0xff]
    %v943 = vld [vmem:[%s8 + $0xd8] sm:$0xff]
    %v944 = vld [vmem:[%s8 + $0xe0] sm:$0xff]
    %v945 = vld [vmem:[%s8 + $0xe8] sm:$0xff]
    %v946 = vld [vmem:[%s8 + $0xf0] sm:$0xff]
    %v947 = vld [vmem:[%s8 + $0xf8] sm:$0xff]
    %v948 = vld [vmem:[%s8 + $0x100] sm:$0xff]
    %v949 = vld [vmem:[%s8 + $0x108] sm:$0xff]
    %v950 = vld [vmem:[%s8 + $0x110] sm:$0xff]
    %v951 = vld [vmem:[%s8 + $0x118] sm:$0xff]
    %v954 = vrot.slane %v932, 2
    %v955 = vrot.slane %v933, 2
    %v957 = vsel %vm351, %v955, 0
    %959 = vmatprep.subr.mxu0 0.0
    %960 = vmatpush1.msra.mxu0 %v934
    %961 = vmatprep.subr.mxu0 0.0
    %962 = vmatpush1.msra.mxu0 %v935
    %963 = vmatprep.subr.mxu0 0.0
    %964 = vmatpush1.msra.mxu0 %v936
    %965 = vmatprep.subr.mxu0 0.0
    %966 = vmatpush1.msra.mxu0 %v937
    %967 = vmatprep.subr.mxu0 0.0
    %968 = vmatpush1.msra.mxu0 %v938
    %969 = vmatprep.subr.mxu0 0.0
    %970 = vmatpush1.msra.mxu0 %v939
    %971 = vmatprep.subr.mxu0 0.0
    %972 = vmatpush1.msra.mxu0 %v940
    %973 = vmatprep.subr.mxu0 0.0
    %974 = vmatpush1.msra.mxu0 %v941
    %975 = vmatprep.subr.mxu0 0.0
    %976 = vmatpush1.msra.mxu0 %v942
    %977 = vmatprep.subr.mxu0 0.0
    %978 = vmatpush1.msra.mxu0 %v943
    %979 = vmatprep.subr.mxu0 0.0
    %980 = vmatpush1.msra.mxu0 %v944
    %981 = vmatprep.subr.mxu0 0.0
    %982 = vmatpush1.msra.mxu0 %v945
    %983 = vmatprep.subr.mxu0 0.0
    %984 = vmatpush1.msra.mxu0 %v946
    %985 = vmatprep.subr.mxu0 0.0
    %986 = vmatpush1.msra.mxu0 %v947
    %987 = vmatprep.subr.mxu0 0.0
    %988 = vmatpush1.msra.mxu0 %v948
    %989 = vmatprep.subr.mxu0 0.0
    %990 = vmatpush1.msra.mxu0 %v949
    %991 = vmatprep.subr.mxu0 0.0
    %992 = vmatpush1.msra.mxu0 %v950
    %993 = vmatprep.subr.mxu0 0.0
    %994 = vmatpush1.msra.mxu0 %v951
    %995 = vmatprep.subr.mxu0 0.0
    %996 = vmatpush1.msra.mxu0 0.0
    %997 = vmatprep.subr.mxu0 0.0
    %998 = vmatpush1.msra.mxu0 0.0
    %999 = vmatprep.subr.mxu0 0.0
    %1000 = vmatpush1.msra.mxu0 0.0
    %1001 = vmatprep.subr.mxu0 0.0
    %1002 = vmatpush1.msra.mxu0 0.0
    %1003 = vmatprep.subr.mxu0 0.0
    %1004 = vmatpush1.msra.mxu0 0.0
    %1005 = vmatprep.subr.mxu0 0.0
    %1006 = vmatpush1.msra.mxu0 0.0
    %1007 = vmatprep.subr.mxu0 0.0
    %1008 = vmatpush1.msra.mxu0 0.0
    %1009 = vmatprep.subr.mxu0 0.0
    %1010 = vmatpush1.msra.mxu0 0.0
    %1011 = vmatprep.subr.mxu0 0.0
    %1012 = vmatpush1.msra.mxu0 0.0
    %1013 = vmatprep.subr.mxu0 0.0
    %1014 = vmatpush1.msra.mxu0 0.0
    %1015 = vmatprep.subr.mxu0 0.0
    %1016 = vmatpush1.msra.mxu0 0.0
    %1017 = vmatprep.subr.mxu0 0.0
    %1018 = vmatpush1.msra.mxu0 0.0
    %1019 = vmatprep.subr.mxu0 0.0
    %1020 = vmatpush1.msra.mxu0 0.0
    %1021 = vmatprep.subr.mxu0 0.0
    %1022 = vmatpush1.msra.mxu0 0.0
    %1023 = vmatprep.mubr.f32.mxu0 %v957
    %1024 = vmatmul.mubr.f32.gmra.mrb[0].mxu0 %v954
    %v1025 = vpop.f32.mrb[0].mxu0
    %v1026 = vadd.f32 0.0, %v1025
    %v1027 = vpop.f32.mrb[0].mxu0
    %1028 = vdwg.mxu0
    %v1030 = vsel %vm351, %v913, 0
    %1032 = vmatprep.subr.mxu0 0.0
    %1033 = vmatpush1.msra.mxu0 %v914
    %1034 = vmatprep.subr.mxu0 0.0
    %1035 = vmatpush1.msra.mxu0 %v915
    %1036 = vmatprep.subr.mxu0 0.0
    %1037 = vmatpush1.msra.mxu0 %v916
    %1038 = vmatprep.subr.mxu0 0.0
    %1039 = vmatpush1.msra.mxu0 %v917
    %1040 = vmatprep.subr.mxu0 0.0
    %1041 = vmatpush1.msra.mxu0 %v918
    %1042 = vmatprep.subr.mxu0 0.0
    %1043 = vmatpush1.msra.mxu0 %v919
    %1044 = vmatprep.subr.mxu0 0.0
    %1045 = vmatpush1.msra.mxu0 %v920
    %1046 = vmatprep.subr.mxu0 0.0
    %1047 = vmatpush1.msra.mxu0 %v921
    %1048 = vmatprep.subr.mxu0 0.0
    %1049 = vmatpush1.msra.mxu0 %v922
    %1050 = vmatprep.subr.mxu0 0.0
    %1051 = vmatpush1.msra.mxu0 %v923
    %1052 = vmatprep.subr.mxu0 0.0
    %1053 = vmatpush1.msra.mxu0 %v924
    %1054 = vmatprep.subr.mxu0 0.0
    %1055 = vmatpush1.msra.mxu0 %v925
    %1056 = vmatprep.subr.mxu0 0.0
    %1057 = vmatpush1.msra.mxu0 %v926
    %1058 = vmatprep.subr.mxu0 0.0
    %1059 = vmatpush1.msra.mxu0 %v927
    %1060 = vmatprep.subr.mxu0 0.0
    %1061 = vmatpush1.msra.mxu0 %v928
    %1062 = vmatprep.subr.mxu0 0.0
    %1063 = vmatpush1.msra.mxu0 %v929
    %1064 = vmatprep.subr.mxu0 0.0
    %1065 = vmatpush1.msra.mxu0 %v930
    %1066 = vmatprep.subr.mxu0 0.0
    %1067 = vmatpush1.msra.mxu0 %v931
    %1068 = vmatprep.subr.mxu0 0.0
    %1069 = vmatpush1.msra.mxu0 0.0
    %1070 = vmatprep.subr.mxu0 0.0
    %1071 = vmatpush1.msra.mxu0 0.0
    %1072 = vmatprep.subr.mxu0 0.0
    %1073 = vmatpush1.msra.mxu0 0.0
    %1074 = vmatprep.subr.mxu0 0.0
    %1075 = vmatpush1.msra.mxu0 0.0
    %1076 = vmatprep.subr.mxu0 0.0
    %1077 = vmatpush1.msra.mxu0 0.0
    %1078 = vmatprep.subr.mxu0 0.0
    %1079 = vmatpush1.msra.mxu0 0.0
    %1080 = vmatprep.subr.mxu0 0.0
    %1081 = vmatpush1.msra.mxu0 0.0
    %1082 = vmatprep.subr.mxu0 0.0
    %1083 = vmatpush1.msra.mxu0 0.0
    %1084 = vmatprep.subr.mxu0 0.0
    %1085 = vmatpush1.msra.mxu0 0.0
    %1086 = vmatprep.subr.mxu0 0.0
    %1087 = vmatpush1.msra.mxu0 0.0
    %1088 = vmatprep.subr.mxu0 0.0
    %1089 = vmatpush1.msra.mxu0 0.0
    %1090 = vmatprep.subr.mxu0 0.0
    %1091 = vmatpush1.msra.mxu0 0.0
    %1092 = vmatprep.subr.mxu0 0.0
    %1093 = vmatpush1.msra.mxu0 0.0
    %1094 = vmatprep.subr.mxu0 0.0
    %1095 = vmatpush1.msra.mxu0 0.0
    %1096 = vmatprep.mubr.f32.mxu0 %v1030
    %1097 = vmatmul.mubr.f32.gmra.mrb[0].mxu0 %v912
    %v1098 = vpop.f32.mrb[0].mxu0
    %v1099 = vadd.f32 %v1026, %v1098
    %v1100 = vpop.f32.mrb[0].mxu0
    %1101 = vdwg.mxu0
    %v1102 = vld [vmem:[#allocation5] sm:$0x30]
    %v1103 = vld [vmem:[#allocation5 + $0x8] sm:$0x30]
    %v1104 = vld [vmem:[%s8 + $0x120] sm:$0xff]
    %v1105 = vld [vmem:[%s8 + $0x128] sm:$0xff]
    %v1106 = vld [vmem:[%s8 + $0x130] sm:$0xff]
    %v1107 = vld [vmem:[%s8 + $0x138] sm:$0xff]
    %v1108 = vld [vmem:[%s8 + $0x140] sm:$0xff]
    %v1109 = vld [vmem:[%s8 + $0x148] sm:$0xff]
    %v1110 = vld [vmem:[%s8 + $0x150] sm:$0xff]
    %v1111 = vld [vmem:[%s8 + $0x158] sm:$0xff]
    %v1112 = vld [vmem:[%s8 + $0x160] sm:$0xff]
    %v1113 = vld [vmem:[%s8 + $0x168] sm:$0xff]
    %v1114 = vld [vmem:[%s8 + $0x170] sm:$0xff]
    %v1115 = vld [vmem:[%s8 + $0x178] sm:$0xff]
    %v1116 = vld [vmem:[%s8 + $0x180] sm:$0xff]
    %v1117 = vld [vmem:[%s8 + $0x188] sm:$0xff]
    %v1118 = vld [vmem:[%s8 + $0x190] sm:$0xff]
    %v1119 = vld [vmem:[%s8 + $0x198] sm:$0xff]
    %v1120 = vld [vmem:[%s8 + $0x1a0] sm:$0xff]
    %v1121 = vld [vmem:[%s8 + $0x1a8] sm:$0xff]
    %v1124 = vrot.slane %v1102, 4
    %v1125 = vrot.slane %v1103, 4
    %v1127 = vsel %vm351, %v1125, 0
    %1129 = vmatprep.subr.mxu0 0.0
    %1130 = vmatpush1.msra.mxu0 %v1104
    %1131 = vmatprep.subr.mxu0 0.0
    %1132 = vmatpush1.msra.mxu0 %v1105
    %1133 = vmatprep.subr.mxu0 0.0
    %1134 = vmatpush1.msra.mxu0 %v1106
    %1135 = vmatprep.subr.mxu0 0.0
    %1136 = vmatpush1.msra.mxu0 %v1107
    %1137 = vmatprep.subr.mxu0 0.0
    %1138 = vmatpush1.msra.mxu0 %v1108
    %1139 = vmatprep.subr.mxu0 0.0
    %1140 = vmatpush1.msra.mxu0 %v1109
    %1141 = vmatprep.subr.mxu0 0.0
    %1142 = vmatpush1.msra.mxu0 %v1110
    %1143 = vmatprep.subr.mxu0 0.0
    %1144 = vmatpush1.msra.mxu0 %v1111
    %1145 = vmatprep.subr.mxu0 0.0
    %1146 = vmatpush1.msra.mxu0 %v1112
    %1147 = vmatprep.subr.mxu0 0.0
    %1148 = vmatpush1.msra.mxu0 %v1113
    %1149 = vmatprep.subr.mxu0 0.0
    %1150 = vmatpush1.msra.mxu0 %v1114
    %1151 = vmatprep.subr.mxu0 0.0
    %1152 = vmatpush1.msra.mxu0 %v1115
    %1153 = vmatprep.subr.mxu0 0.0
    %1154 = vmatpush1.msra.mxu0 %v1116
    %1155 = vmatprep.subr.mxu0 0.0
    %1156 = vmatpush1.msra.mxu0 %v1117
    %1157 = vmatprep.subr.mxu0 0.0
    %1158 = vmatpush1.msra.mxu0 %v1118
    %1159 = vmatprep.subr.mxu0 0.0
    %1160 = vmatpush1.msra.mxu0 %v1119
    %1161 = vmatprep.subr.mxu0 0.0
    %1162 = vmatpush1.msra.mxu0 %v1120
    %1163 = vmatprep.subr.mxu0 0.0
    %1164 = vmatpush1.msra.mxu0 %v1121
    %1165 = vmatprep.subr.mxu0 0.0
    %1166 = vmatpush1.msra.mxu0 0.0
    %1167 = vmatprep.subr.mxu0 0.0
    %1168 = vmatpush1.msra.mxu0 0.0
    %1169 = vmatprep.subr.mxu0 0.0
    %1170 = vmatpush1.msra.mxu0 0.0
    %1171 = vmatprep.subr.mxu0 0.0
    %1172 = vmatpush1.msra.mxu0 0.0
    %1173 = vmatprep.subr.mxu0 0.0
    %1174 = vmatpush1.msra.mxu0 0.0
    %1175 = vmatprep.subr.mxu0 0.0
    %1176 = vmatpush1.msra.mxu0 0.0
    %1177 = vmatprep.subr.mxu0 0.0
    %1178 = vmatpush1.msra.mxu0 0.0
    %1179 = vmatprep.subr.mxu0 0.0
    %1180 = vmatpush1.msra.mxu0 0.0
    %1181 = vmatprep.subr.mxu0 0.0
    %1182 = vmatpush1.msra.mxu0 0.0
    %1183 = vmatprep.subr.mxu0 0.0
    %1184 = vmatpush1.msra.mxu0 0.0
    %1185 = vmatprep.subr.mxu0 0.0
    %1186 = vmatpush1.msra.mxu0 0.0
    %1187 = vmatprep.subr.mxu0 0.0
    %1188 = vmatpush1.msra.mxu0 0.0
    %1189 = vmatprep.subr.mxu0 0.0
    %1190 = vmatpush1.msra.mxu0 0.0
    %1191 = vmatprep.subr.mxu0 0.0
    %1192 = vmatpush1.msra.mxu0 0.0
    %1193 = vmatprep.mubr.f32.mxu0 %v1127
    %1194 = vmatmul.mubr.f32.gmra.mrb[0].mxu0 %v1124
    %v1195 = vpop.f32.mrb[0].mxu0
    %v1196 = vadd.f32 0.0, %v1195
    %v1197 = vpop.f32.mrb[0].mxu0
    %1198 = vdwg.mxu0
    %v1199 = vadd.f32 %v1099, %v1196
    %v1200 = vld [vmem:[#allocation5] sm:$0xc0]
    %v1201 = vld [vmem:[#allocation5 + $0x8] sm:$0xc0]
    %v1202 = vld [vmem:[%s8 + $0x1b0] sm:$0xff]
    %v1203 = vld [vmem:[%s8 + $0x1b8] sm:$0xff]
    %v1204 = vld [vmem:[%s8 + $0x1c0] sm:$0xff]
    %v1205 = vld [vmem:[%s8 + $0x1c8] sm:$0xff]
    %v1206 = vld [vmem:[%s8 + $0x1d0] sm:$0xff]
    %v1207 = vld [vmem:[%s8 + $0x1d8] sm:$0xff]
    %v1208 = vld [vmem:[%s8 + $0x1e0] sm:$0xff]
    %v1209 = vld [vmem:[%s8 + $0x1e8] sm:$0xff]
    %v1210 = vld [vmem:[%s8 + $0x1f0] sm:$0xff]
    %v1211 = vld [vmem:[%s8 + $0x1f8] sm:$0xff]
    %v1212 = vld [vmem:[%s8 + $0x200] sm:$0xff]
    %v1213 = vld [vmem:[%s8 + $0x208] sm:$0xff]
    %v1214 = vld [vmem:[%s8 + $0x210] sm:$0xff]
    %v1215 = vld [vmem:[%s8 + $0x218] sm:$0xff]
    %v1216 = vld [vmem:[%s8 + $0x220] sm:$0xff]
    %v1217 = vld [vmem:[%s8 + $0x228] sm:$0xff]
    %v1218 = vld [vmem:[%s8 + $0x230] sm:$0xff]
    %v1219 = vld [vmem:[%s8 + $0x238] sm:$0xff]
    %v1222 = vrot.slane %v1200, 6
    %v1223 = vrot.slane %v1201, 6
    %v1225 = vsel %vm351, %v1223, 0
    %1227 = vmatprep.subr.mxu0 0.0
    %1228 = vmatpush1.msra.mxu0 %v1202
    %1229 = vmatprep.subr.mxu0 0.0
    %1230 = vmatpush1.msra.mxu0 %v1203
    %1231 = vmatprep.subr.mxu0 0.0
    %1232 = vmatpush1.msra.mxu0 %v1204
    %1233 = vmatprep.subr.mxu0 0.0
    %1234 = vmatpush1.msra.mxu0 %v1205
    %1235 = vmatprep.subr.mxu0 0.0
    %1236 = vmatpush1.msra.mxu0 %v1206
    %1237 = vmatprep.subr.mxu0 0.0
    %1238 = vmatpush1.msra.mxu0 %v1207
    %1239 = vmatprep.subr.mxu0 0.0
    %1240 = vmatpush1.msra.mxu0 %v1208
    %1241 = vmatprep.subr.mxu0 0.0
    %1242 = vmatpush1.msra.mxu0 %v1209
    %1243 = vmatprep.subr.mxu0 0.0
    %1244 = vmatpush1.msra.mxu0 %v1210
    %1245 = vmatprep.subr.mxu0 0.0
    %1246 = vmatpush1.msra.mxu0 %v1211
    %1247 = vmatprep.subr.mxu0 0.0
    %1248 = vmatpush1.msra.mxu0 %v1212
    %1249 = vmatprep.subr.mxu0 0.0
    %1250 = vmatpush1.msra.mxu0 %v1213
    %1251 = vmatprep.subr.mxu0 0.0
    %1252 = vmatpush1.msra.mxu0 %v1214
    %1253 = vmatprep.subr.mxu0 0.0
    %1254 = vmatpush1.msra.mxu0 %v1215
    %1255 = vmatprep.subr.mxu0 0.0
    %1256 = vmatpush1.msra.mxu0 %v1216
    %1257 = vmatprep.subr.mxu0 0.0
    %1258 = vmatpush1.msra.mxu0 %v1217
    %1259 = vmatprep.subr.mxu0 0.0
    %1260 = vmatpush1.msra.mxu0 %v1218
    %1261 = vmatprep.subr.mxu0 0.0
    %1262 = vmatpush1.msra.mxu0 %v1219
    %1263 = vmatprep.subr.mxu0 0.0
    %1264 = vmatpush1.msra.mxu0 0.0
    %1265 = vmatprep.subr.mxu0 0.0
    %1266 = vmatpush1.msra.mxu0 0.0
    %1267 = vmatprep.subr.mxu0 0.0
    %1268 = vmatpush1.msra.mxu0 0.0
    %1269 = vmatprep.subr.mxu0 0.0
    %1270 = vmatpush1.msra.mxu0 0.0
    %1271 = vmatprep.subr.mxu0 0.0
    %1272 = vmatpush1.msra.mxu0 0.0
    %1273 = vmatprep.subr.mxu0 0.0
    %1274 = vmatpush1.msra.mxu0 0.0
    %1275 = vmatprep.subr.mxu0 0.0
    %1276 = vmatpush1.msra.mxu0 0.0
    %1277 = vmatprep.subr.mxu0 0.0
    %1278 = vmatpush1.msra.mxu0 0.0
    %1279 = vmatprep.subr.mxu0 0.0
    %1280 = vmatpush1.msra.mxu0 0.0
    %1281 = vmatprep.subr.mxu0 0.0
    %1282 = vmatpush1.msra.mxu0 0.0
    %1283 = vmatprep.subr.mxu0 0.0
    %1284 = vmatpush1.msra.mxu0 0.0
    %1285 = vmatprep.subr.mxu0 0.0
    %1286 = vmatpush1.msra.mxu0 0.0
    %1287 = vmatprep.subr.mxu0 0.0
    %1288 = vmatpush1.msra.mxu0 0.0
    %1289 = vmatprep.subr.mxu0 0.0
    %1290 = vmatpush1.msra.mxu0 0.0
    %1291 = vmatprep.mubr.f32.mxu0 %v1225
    %1292 = vmatmul.mubr.f32.gmra.mrb[0].mxu0 %v1222
    %v1293 = vpop.f32.mrb[0].mxu0
    %v1294 = vadd.f32 0.0, %v1293
    %v1295 = vpop.f32.mrb[0].mxu0
    %1296 = vdwg.mxu0
    %v1297 = vadd.f32 %v1199, %v1294
    %v1298 = vld [vmem:[#allocation5 + $0x10] sm:$0x3]
    %v1299 = vld [vmem:[#allocation5 + $0x18] sm:$0x3]
    %v1300 = vld [vmem:[%s8 + $0x240] sm:$0xff]
    %v1301 = vld [vmem:[%s8 + $0x248] sm:$0xff]
    %v1302 = vld [vmem:[%s8 + $0x250] sm:$0xff]
    %v1303 = vld [vmem:[%s8 + $0x258] sm:$0xff]
    %v1304 = vld [vmem:[%s8 + $0x260] sm:$0xff]
    %v1305 = vld [vmem:[%s8 + $0x268] sm:$0xff]
    %v1306 = vld [vmem:[%s8 + $0x270] sm:$0xff]
    %v1307 = vld [vmem:[%s8 + $0x278] sm:$0xff]
    %v1308 = vld [vmem:[%s8 + $0x280] sm:$0xff]
    %v1309 = vld [vmem:[%s8 + $0x288] sm:$0xff]
    %v1310 = vld [vmem:[%s8 + $0x290] sm:$0xff]
    %v1311 = vld [vmem:[%s8 + $0x298] sm:$0xff]
    %v1312 = vld [vmem:[%s8 + $0x2a0] sm:$0xff]
    %v1313 = vld [vmem:[%s8 + $0x2a8] sm:$0xff]
    %v1314 = vld [vmem:[%s8 + $0x2b0] sm:$0xff]
    %v1315 = vld [vmem:[%s8 + $0x2b8] sm:$0xff]
    %v1316 = vld [vmem:[%s8 + $0x2c0] sm:$0xff]
    %v1317 = vld [vmem:[%s8 + $0x2c8] sm:$0xff]
    %v1319 = vsel %vm351, %v1299, 0
    %1321 = vmatprep.subr.mxu0 0.0
    %1322 = vmatpush1.msra.mxu0 %v1300
    %1323 = vmatprep.subr.mxu0 0.0
    %1324 = vmatpush1.msra.mxu0 %v1301
    %1325 = vmatprep.subr.mxu0 0.0
    %1326 = vmatpush1.msra.mxu0 %v1302
    %1327 = vmatprep.subr.mxu0 0.0
    %1328 = vmatpush1.msra.mxu0 %v1303
    %1329 = vmatprep.subr.mxu0 0.0
    %1330 = vmatpush1.msra.mxu0 %v1304
    %1331 = vmatprep.subr.mxu0 0.0
    %1332 = vmatpush1.msra.mxu0 %v1305
    %1333 = vmatprep.subr.mxu0 0.0
    %1334 = vmatpush1.msra.mxu0 %v1306
    %1335 = vmatprep.subr.mxu0 0.0
    %1336 = vmatpush1.msra.mxu0 %v1307
    %1337 = vmatprep.subr.mxu0 0.0
    %1338 = vmatpush1.msra.mxu0 %v1308
    %1339 = vmatprep.subr.mxu0 0.0
    %1340 = vmatpush1.msra.mxu0 %v1309
    %1341 = vmatprep.subr.mxu0 0.0
    %1342 = vmatpush1.msra.mxu0 %v1310
    %1343 = vmatprep.subr.mxu0 0.0
    %1344 = vmatpush1.msra.mxu0 %v1311
    %1345 = vmatprep.subr.mxu0 0.0
    %1346 = vmatpush1.msra.mxu0 %v1312
    %1347 = vmatprep.subr.mxu0 0.0
    %1348 = vmatpush1.msra.mxu0 %v1313
    %1349 = vmatprep.subr.mxu0 0.0
    %1350 = vmatpush1.msra.mxu0 %v1314
    %1351 = vmatprep.subr.mxu0 0.0
    %1352 = vmatpush1.msra.mxu0 %v1315
    %1353 = vmatprep.subr.mxu0 0.0
    %1354 = vmatpush1.msra.mxu0 %v1316
    %1355 = vmatprep.subr.mxu0 0.0
    %1356 = vmatpush1.msra.mxu0 %v1317
    %1357 = vmatprep.subr.mxu0 0.0
    %1358 = vmatpush1.msra.mxu0 0.0
    %1359 = vmatprep.subr.mxu0 0.0
    %1360 = vmatpush1.msra.mxu0 0.0
    %1361 = vmatprep.subr.mxu0 0.0
    %1362 = vmatpush1.msra.mxu0 0.0
    %1363 = vmatprep.subr.mxu0 0.0
    %1364 = vmatpush1.msra.mxu0 0.0
    %1365 = vmatprep.subr.mxu0 0.0
    %1366 = vmatpush1.msra.mxu0 0.0
    %1367 = vmatprep.subr.mxu0 0.0
    %1368 = vmatpush1.msra.mxu0 0.0
    %1369 = vmatprep.subr.mxu0 0.0
    %1370 = vmatpush1.msra.mxu0 0.0
    %1371 = vmatprep.subr.mxu0 0.0
    %1372 = vmatpush1.msra.mxu0 0.0
    %1373 = vmatprep.subr.mxu0 0.0
    %1374 = vmatpush1.msra.mxu0 0.0
    %1375 = vmatprep.subr.mxu0 0.0
    %1376 = vmatpush1.msra.mxu0 0.0
    %1377 = vmatprep.subr.mxu0 0.0
    %1378 = vmatpush1.msra.mxu0 0.0
    %1379 = vmatprep.subr.mxu0 0.0
    %1380 = vmatpush1.msra.mxu0 0.0
    %1381 = vmatprep.subr.mxu0 0.0
    %1382 = vmatpush1.msra.mxu0 0.0
    %1383 = vmatprep.subr.mxu0 0.0
    %1384 = vmatpush1.msra.mxu0 0.0
    %1385 = vmatprep.mubr.f32.mxu0 %v1319
    %1386 = vmatmul.mubr.f32.gmra.mrb[0].mxu0 %v1298
    %v1387 = vpop.f32.mrb[0].mxu0
    %v1388 = vadd.f32 0.0, %v1387
    %v1389 = vpop.f32.mrb[0].mxu0
    %1390 = vdwg.mxu0
    %v1391 = vadd.f32 %v1297, %v1388
    %v1392 = vld [vmem:[#allocation5 + $0x10] sm:$0xc]
    %v1393 = vld [vmem:[#allocation5 + $0x18] sm:$0xc]
    %v1394 = vld [vmem:[%s8 + $0x2d0] sm:$0xff]
    %v1395 = vld [vmem:[%s8 + $0x2d8] sm:$0xff]
    %v1396 = vld [vmem:[%s8 + $0x2e0] sm:$0xff]
    %v1397 = vld [vmem:[%s8 + $0x2e8] sm:$0xff]
    %v1398 = vld [vmem:[%s8 + $0x2f0] sm:$0xff]
    %v1399 = vld [vmem:[%s8 + $0x2f8] sm:$0xff]
    %v1400 = vld [vmem:[%s8 + $0x300] sm:$0xff]
    %v1401 = vld [vmem:[%s8 + $0x308] sm:$0xff]
    %v1402 = vld [vmem:[%s8 + $0x310] sm:$0xff]
    %v1403 = vld [vmem:[%s8 + $0x318] sm:$0xff]
    %v1404 = vld [vmem:[%s8 + $0x320] sm:$0xff]
    %v1405 = vld [vmem:[%s8 + $0x328] sm:$0xff]
    %v1406 = vld [vmem:[%s8 + $0x330] sm:$0xff]
    %v1407 = vld [vmem:[%s8 + $0x338] sm:$0xff]
    %v1408 = vld [vmem:[%s8 + $0x340] sm:$0xff]
    %v1409 = vld [vmem:[%s8 + $0x348] sm:$0xff]
    %v1410 = vld [vmem:[%s8 + $0x350] sm:$0xff]
    %v1411 = vld [vmem:[%s8 + $0x358] sm:$0xff]
    %v1414 = vrot.slane %v1392, 2
    %v1415 = vrot.slane %v1393, 2
    %v1417 = vsel %vm351, %v1415, 0
    %1419 = vmatprep.subr.mxu0 0.0
    %1420 = vmatpush1.msra.mxu0 %v1394
    %1421 = vmatprep.subr.mxu0 0.0
    %1422 = vmatpush1.msra.mxu0 %v1395
    %1423 = vmatprep.subr.mxu0 0.0
    %1424 = vmatpush1.msra.mxu0 %v1396
    %1425 = vmatprep.subr.mxu0 0.0
    %1426 = vmatpush1.msra.mxu0 %v1397
    %1427 = vmatprep.subr.mxu0 0.0
    %1428 = vmatpush1.msra.mxu0 %v1398
    %1429 = vmatprep.subr.mxu0 0.0
    %1430 = vmatpush1.msra.mxu0 %v1399
    %1431 = vmatprep.subr.mxu0 0.0
    %1432 = vmatpush1.msra.mxu0 %v1400
    %1433 = vmatprep.subr.mxu0 0.0
    %1434 = vmatpush1.msra.mxu0 %v1401
    %1435 = vmatprep.subr.mxu0 0.0
    %1436 = vmatpush1.msra.mxu0 %v1402
    %1437 = vmatprep.subr.mxu0 0.0
    %1438 = vmatpush1.msra.mxu0 %v1403
    %1439 = vmatprep.subr.mxu0 0.0
    %1440 = vmatpush1.msra.mxu0 %v1404
    %1441 = vmatprep.subr.mxu0 0.0
    %1442 = vmatpush1.msra.mxu0 %v1405
    %1443 = vmatprep.subr.mxu0 0.0
    %1444 = vmatpush1.msra.mxu0 %v1406
    %1445 = vmatprep.subr.mxu0 0.0
    %1446 = vmatpush1.msra.mxu0 %v1407
    %1447 = vmatprep.subr.mxu0 0.0
    %1448 = vmatpush1.msra.mxu0 %v1408
    %1449 = vmatprep.subr.mxu0 0.0
    %1450 = vmatpush1.msra.mxu0 %v1409
    %1451 = vmatprep.subr.mxu0 0.0
    %1452 = vmatpush1.msra.mxu0 %v1410
    %1453 = vmatprep.subr.mxu0 0.0
    %1454 = vmatpush1.msra.mxu0 %v1411
    %1455 = vmatprep.subr.mxu0 0.0
    %1456 = vmatpush1.msra.mxu0 0.0
    %1457 = vmatprep.subr.mxu0 0.0
    %1458 = vmatpush1.msra.mxu0 0.0
    %1459 = vmatprep.subr.mxu0 0.0
    %1460 = vmatpush1.msra.mxu0 0.0
    %1461 = vmatprep.subr.mxu0 0.0
    %1462 = vmatpush1.msra.mxu0 0.0
    %1463 = vmatprep.subr.mxu0 0.0
    %1464 = vmatpush1.msra.mxu0 0.0
    %1465 = vmatprep.subr.mxu0 0.0
    %1466 = vmatpush1.msra.mxu0 0.0
    %1467 = vmatprep.subr.mxu0 0.0
    %1468 = vmatpush1.msra.mxu0 0.0
    %1469 = vmatprep.subr.mxu0 0.0
    %1470 = vmatpush1.msra.mxu0 0.0
    %1471 = vmatprep.subr.mxu0 0.0
    %1472 = vmatpush1.msra.mxu0 0.0
    %1473 = vmatprep.subr.mxu0 0.0
    %1474 = vmatpush1.msra.mxu0 0.0
    %1475 = vmatprep.subr.mxu0 0.0
    %1476 = vmatpush1.msra.mxu0 0.0
    %1477 = vmatprep.subr.mxu0 0.0
    %1478 = vmatpush1.msra.mxu0 0.0
    %1479 = vmatprep.subr.mxu0 0.0
    %1480 = vmatpush1.msra.mxu0 0.0
    %1481 = vmatprep.subr.mxu0 0.0
    %1482 = vmatpush1.msra.mxu0 0.0
    %1483 = vmatprep.mubr.f32.mxu0 %v1417
    %1484 = vmatmul.mubr.f32.gmra.mrb[0].mxu0 %v1414
    %v1485 = vpop.f32.mrb[0].mxu0
    %v1486 = vadd.f32 0.0, %v1485
    %v1487 = vpop.f32.mrb[0].mxu0
    %1488 = vdwg.mxu0
    %v1489 = vadd.f32 %v1391, %v1486
    %v1490 = vld [vmem:[#allocation5 + $0x10] sm:$0x30]
    %v1491 = vld [vmem:[#allocation5 + $0x18] sm:$0x30]
    %v1492 = vld [vmem:[%s8 + $0x360] sm:$0xff]
    %v1493 = vld [vmem:[%s8 + $0x368] sm:$0xff]
    %v1494 = vld [vmem:[%s8 + $0x370] sm:$0xff]
    %v1495 = vld [vmem:[%s8 + $0x378] sm:$0xff]
    %v1496 = vld [vmem:[%s8 + $0x380] sm:$0xff]
    %v1497 = vld [vmem:[%s8 + $0x388] sm:$0xff]
    %v1498 = vld [vmem:[%s8 + $0x390] sm:$0xff]
    %v1499 = vld [vmem:[%s8 + $0x398] sm:$0xff]
    %v1500 = vld [vmem:[%s8 + $0x3a0] sm:$0xff]
    %v1501 = vld [vmem:[%s8 + $0x3a8] sm:$0xff]
    %v1502 = vld [vmem:[%s8 + $0x3b0] sm:$0xff]
    %v1503 = vld [vmem:[%s8 + $0x3b8] sm:$0xff]
    %v1504 = vld [vmem:[%s8 + $0x3c0] sm:$0xff]
    %v1505 = vld [vmem:[%s8 + $0x3c8] sm:$0xff]
    %v1506 = vld [vmem:[%s8 + $0x3d0] sm:$0xff]
    %v1507 = vld [vmem:[%s8 + $0x3d8] sm:$0xff]
    %v1508 = vld [vmem:[%s8 + $0x3e0] sm:$0xff]
    %v1509 = vld [vmem:[%s8 + $0x3e8] sm:$0xff]
    %v1512 = vrot.slane %v1490, 4
    %v1513 = vrot.slane %v1491, 4
    %v1515 = vsel %vm351, %v1513, 0
    %1517 = vmatprep.subr.mxu0 0.0
    %1518 = vmatpush1.msra.mxu0 %v1492
    %1519 = vmatprep.subr.mxu0 0.0
    %1520 = vmatpush1.msra.mxu0 %v1493
    %1521 = vmatprep.subr.mxu0 0.0
    %1522 = vmatpush1.msra.mxu0 %v1494
    %1523 = vmatprep.subr.mxu0 0.0
    %1524 = vmatpush1.msra.mxu0 %v1495
    %1525 = vmatprep.subr.mxu0 0.0
    %1526 = vmatpush1.msra.mxu0 %v1496
    %1527 = vmatprep.subr.mxu0 0.0
    %1528 = vmatpush1.msra.mxu0 %v1497
    %1529 = vmatprep.subr.mxu0 0.0
    %1530 = vmatpush1.msra.mxu0 %v1498
    %1531 = vmatprep.subr.mxu0 0.0
    %1532 = vmatpush1.msra.mxu0 %v1499
    %1533 = vmatprep.subr.mxu0 0.0
    %1534 = vmatpush1.msra.mxu0 %v1500
    %1535 = vmatprep.subr.mxu0 0.0
    %1536 = vmatpush1.msra.mxu0 %v1501
    %1537 = vmatprep.subr.mxu0 0.0
    %1538 = vmatpush1.msra.mxu0 %v1502
    %1539 = vmatprep.subr.mxu0 0.0
    %1540 = vmatpush1.msra.mxu0 %v1503
    %1541 = vmatprep.subr.mxu0 0.0
    %1542 = vmatpush1.msra.mxu0 %v1504
    %1543 = vmatprep.subr.mxu0 0.0
    %1544 = vmatpush1.msra.mxu0 %v1505
    %1545 = vmatprep.subr.mxu0 0.0
    %1546 = vmatpush1.msra.mxu0 %v1506
    %1547 = vmatprep.subr.mxu0 0.0
    %1548 = vmatpush1.msra.mxu0 %v1507
    %1549 = vmatprep.subr.mxu0 0.0
    %1550 = vmatpush1.msra.mxu0 %v1508
    %1551 = vmatprep.subr.mxu0 0.0
    %1552 = vmatpush1.msra.mxu0 %v1509
    %1553 = vmatprep.subr.mxu0 0.0
    %1554 = vmatpush1.msra.mxu0 0.0
    %1555 = vmatprep.subr.mxu0 0.0
    %1556 = vmatpush1.msra.mxu0 0.0
    %1557 = vmatprep.subr.mxu0 0.0
    %1558 = vmatpush1.msra.mxu0 0.0
    %1559 = vmatprep.subr.mxu0 0.0
    %1560 = vmatpush1.msra.mxu0 0.0
    %1561 = vmatprep.subr.mxu0 0.0
    %1562 = vmatpush1.msra.mxu0 0.0
    %1563 = vmatprep.subr.mxu0 0.0
    %1564 = vmatpush1.msra.mxu0 0.0
    %1565 = vmatprep.subr.mxu0 0.0
    %1566 = vmatpush1.msra.mxu0 0.0
    %1567 = vmatprep.subr.mxu0 0.0
    %1568 = vmatpush1.msra.mxu0 0.0
    %1569 = vmatprep.subr.mxu0 0.0
    %1570 = vmatpush1.msra.mxu0 0.0
    %1571 = vmatprep.subr.mxu0 0.0
    %1572 = vmatpush1.msra.mxu0 0.0
    %1573 = vmatprep.subr.mxu0 0.0
    %1574 = vmatpush1.msra.mxu0 0.0
    %1575 = vmatprep.subr.mxu0 0.0
    %1576 = vmatpush1.msra.mxu0 0.0
    %1577 = vmatprep.subr.mxu0 0.0
    %1578 = vmatpush1.msra.mxu0 0.0
    %1579 = vmatprep.subr.mxu0 0.0
    %1580 = vmatpush1.msra.mxu0 0.0
    %1581 = vmatprep.mubr.f32.mxu0 %v1515
    %1582 = vmatmul.mubr.f32.gmra.mrb[0].mxu0 %v1512
    %v1583 = vpop.f32.mrb[0].mxu0
    %v1584 = vadd.f32 0.0, %v1583
    %v1585 = vpop.f32.mrb[0].mxu0
    %1586 = vdwg.mxu0
    %v1587 = vadd.f32 %v1489, %v1584
    %v1588 = vld [vmem:[#allocation5 + $0x10] sm:$0xc0]
    %v1589 = vld [vmem:[#allocation5 + $0x18] sm:$0xc0]
    %v1590 = vld [vmem:[%s8 + $0x3f0] sm:$0xff]
    %v1591 = vld [vmem:[%s8 + $0x3f8] sm:$0xff]
    %v1592 = vld [vmem:[%s8 + $0x400] sm:$0xff]
    %v1593 = vld [vmem:[%s8 + $0x408] sm:$0xff]
    %v1594 = vld [vmem:[%s8 + $0x410] sm:$0xff]
    %v1595 = vld [vmem:[%s8 + $0x418] sm:$0xff]
    %v1596 = vld [vmem:[%s8 + $0x420] sm:$0xff]
    %v1597 = vld [vmem:[%s8 + $0x428] sm:$0xff]
    %v1598 = vld [vmem:[%s8 + $0x430] sm:$0xff]
    %v1599 = vld [vmem:[%s8 + $0x438] sm:$0xff]
    %v1600 = vld [vmem:[%s8 + $0x440] sm:$0xff]
    %v1601 = vld [vmem:[%s8 + $0x448] sm:$0xff]
    %v1602 = vld [vmem:[%s8 + $0x450] sm:$0xff]
    %v1603 = vld [vmem:[%s8 + $0x458] sm:$0xff]
    %v1604 = vld [vmem:[%s8 + $0x460] sm:$0xff]
    %v1605 = vld [vmem:[%s8 + $0x468] sm:$0xff]
    %v1606 = vld [vmem:[%s8 + $0x470] sm:$0xff]
    %v1607 = vld [vmem:[%s8 + $0x478] sm:$0xff]
    %v1610 = vrot.slane %v1588, 6
    %v1611 = vrot.slane %v1589, 6
    %v1613 = vsel %vm351, %v1611, 0
    %1615 = vmatprep.subr.mxu0 0.0
    %1616 = vmatpush1.msra.mxu0 %v1590
    %1617 = vmatprep.subr.mxu0 0.0
    %1618 = vmatpush1.msra.mxu0 %v1591
    %1619 = vmatprep.subr.mxu0 0.0
    %1620 = vmatpush1.msra.mxu0 %v1592
    %1621 = vmatprep.subr.mxu0 0.0
    %1622 = vmatpush1.msra.mxu0 %v1593
    %1623 = vmatprep.subr.mxu0 0.0
    %1624 = vmatpush1.msra.mxu0 %v1594
    %1625 = vmatprep.subr.mxu0 0.0
    %1626 = vmatpush1.msra.mxu0 %v1595
    %1627 = vmatprep.subr.mxu0 0.0
    %1628 = vmatpush1.msra.mxu0 %v1596
    %1629 = vmatprep.subr.mxu0 0.0
    %1630 = vmatpush1.msra.mxu0 %v1597
    %1631 = vmatprep.subr.mxu0 0.0
    %1632 = vmatpush1.msra.mxu0 %v1598
    %1633 = vmatprep.subr.mxu0 0.0
    %1634 = vmatpush1.msra.mxu0 %v1599
    %1635 = vmatprep.subr.mxu0 0.0
    %1636 = vmatpush1.msra.mxu0 %v1600
    %1637 = vmatprep.subr.mxu0 0.0
    %1638 = vmatpush1.msra.mxu0 %v1601
    %1639 = vmatprep.subr.mxu0 0.0
    %1640 = vmatpush1.msra.mxu0 %v1602
    %1641 = vmatprep.subr.mxu0 0.0
    %1642 = vmatpush1.msra.mxu0 %v1603
    %1643 = vmatprep.subr.mxu0 0.0
    %1644 = vmatpush1.msra.mxu0 %v1604
    %1645 = vmatprep.subr.mxu0 0.0
    %1646 = vmatpush1.msra.mxu0 %v1605
    %1647 = vmatprep.subr.mxu0 0.0
    %1648 = vmatpush1.msra.mxu0 %v1606
    %1649 = vmatprep.subr.mxu0 0.0
    %1650 = vmatpush1.msra.mxu0 %v1607
    %1651 = vmatprep.subr.mxu0 0.0
    %1652 = vmatpush1.msra.mxu0 0.0
    %1653 = vmatprep.subr.mxu0 0.0
    %1654 = vmatpush1.msra.mxu0 0.0
    %1655 = vmatprep.subr.mxu0 0.0
    %1656 = vmatpush1.msra.mxu0 0.0
    %1657 = vmatprep.subr.mxu0 0.0
    %1658 = vmatpush1.msra.mxu0 0.0
    %1659 = vmatprep.subr.mxu0 0.0
    %1660 = vmatpush1.msra.mxu0 0.0
    %1661 = vmatprep.subr.mxu0 0.0
    %1662 = vmatpush1.msra.mxu0 0.0
    %1663 = vmatprep.subr.mxu0 0.0
    %1664 = vmatpush1.msra.mxu0 0.0
    %1665 = vmatprep.subr.mxu0 0.0
    %1666 = vmatpush1.msra.mxu0 0.0
    %1667 = vmatprep.subr.mxu0 0.0
    %1668 = vmatpush1.msra.mxu0 0.0
    %1669 = vmatprep.subr.mxu0 0.0
    %1670 = vmatpush1.msra.mxu0 0.0
    %1671 = vmatprep.subr.mxu0 0.0
    %1672 = vmatpush1.msra.mxu0 0.0
    %1673 = vmatprep.subr.mxu0 0.0
    %1674 = vmatpush1.msra.mxu0 0.0
    %1675 = vmatprep.subr.mxu0 0.0
    %1676 = vmatpush1.msra.mxu0 0.0
    %1677 = vmatprep.subr.mxu0 0.0
    %1678 = vmatpush1.msra.mxu0 0.0
    %1679 = vmatprep.mubr.f32.mxu0 %v1613
    %1680 = vmatmul.mubr.f32.gmra.mrb[0].mxu0 %v1610
    %v1681 = vpop.f32.mrb[0].mxu0
    %v1682 = vadd.f32 0.0, %v1681
    %v1683 = vpop.f32.mrb[0].mxu0
    %1684 = vdwg.mxu0
    %v1685 = vadd.f32 %v1587, %v1682
    %v1686 = vld [vmem:[#allocation5 + $0x20] sm:$0x3]
    %v1687 = vld [vmem:[#allocation5 + $0x28] sm:$0x3]
    %v1688 = vld [vmem:[%s8 + $0x480] sm:$0xff]
    %v1689 = vld [vmem:[%s8 + $0x488] sm:$0xff]
    %v1690 = vld [vmem:[%s8 + $0x490] sm:$0xff]
    %v1691 = vld [vmem:[%s8 + $0x498] sm:$0xff]
    %v1692 = vld [vmem:[%s8 + $0x4a0] sm:$0xff]
    %v1693 = vld [vmem:[%s8 + $0x4a8] sm:$0xff]
    %v1694 = vld [vmem:[%s8 + $0x4b0] sm:$0xff]
    %v1695 = vld [vmem:[%s8 + $0x4b8] sm:$0xff]
    %v1696 = vld [vmem:[%s8 + $0x4c0] sm:$0xff]
    %v1697 = vld [vmem:[%s8 + $0x4c8] sm:$0xff]
    %v1698 = vld [vmem:[%s8 + $0x4d0] sm:$0xff]
    %v1699 = vld [vmem:[%s8 + $0x4d8] sm:$0xff]
    %v1700 = vld [vmem:[%s8 + $0x4e0] sm:$0xff]
    %v1701 = vld [vmem:[%s8 + $0x4e8] sm:$0xff]
    %v1702 = vld [vmem:[%s8 + $0x4f0] sm:$0xff]
    %v1703 = vld [vmem:[%s8 + $0x4f8] sm:$0xff]
    %v1704 = vld [vmem:[%s8 + $0x500] sm:$0xff]
    %v1705 = vld [vmem:[%s8 + $0x508] sm:$0xff]
    %v1707 = vsel %vm351, %v1687, 0
    %1709 = vmatprep.subr.mxu0 0.0
    %1710 = vmatpush1.msra.mxu0 %v1688
    %1711 = vmatprep.subr.mxu0 0.0
    %1712 = vmatpush1.msra.mxu0 %v1689
    %1713 = vmatprep.subr.mxu0 0.0
    %1714 = vmatpush1.msra.mxu0 %v1690
    %1715 = vmatprep.subr.mxu0 0.0
    %1716 = vmatpush1.msra.mxu0 %v1691
    %1717 = vmatprep.subr.mxu0 0.0
    %1718 = vmatpush1.msra.mxu0 %v1692
    %1719 = vmatprep.subr.mxu0 0.0
    %1720 = vmatpush1.msra.mxu0 %v1693
    %1721 = vmatprep.subr.mxu0 0.0
    %1722 = vmatpush1.msra.mxu0 %v1694
    %1723 = vmatprep.subr.mxu0 0.0
    %1724 = vmatpush1.msra.mxu0 %v1695
    %1725 = vmatprep.subr.mxu0 0.0
    %1726 = vmatpush1.msra.mxu0 %v1696
    %1727 = vmatprep.subr.mxu0 0.0
    %1728 = vmatpush1.msra.mxu0 %v1697
    %1729 = vmatprep.subr.mxu0 0.0
    %1730 = vmatpush1.msra.mxu0 %v1698
    %1731 = vmatprep.subr.mxu0 0.0
    %1732 = vmatpush1.msra.mxu0 %v1699
    %1733 = vmatprep.subr.mxu0 0.0
    %1734 = vmatpush1.msra.mxu0 %v1700
    %1735 = vmatprep.subr.mxu0 0.0
    %1736 = vmatpush1.msra.mxu0 %v1701
    %1737 = vmatprep.subr.mxu0 0.0
    %1738 = vmatpush1.msra.mxu0 %v1702
    %1739 = vmatprep.subr.mxu0 0.0
    %1740 = vmatpush1.msra.mxu0 %v1703
    %1741 = vmatprep.subr.mxu0 0.0
    %1742 = vmatpush1.msra.mxu0 %v1704
    %1743 = vmatprep.subr.mxu0 0.0
    %1744 = vmatpush1.msra.mxu0 %v1705
    %1745 = vmatprep.subr.mxu0 0.0
    %1746 = vmatpush1.msra.mxu0 0.0
    %1747 = vmatprep.subr.mxu0 0.0
    %1748 = vmatpush1.msra.mxu0 0.0
    %1749 = vmatprep.subr.mxu0 0.0
    %1750 = vmatpush1.msra.mxu0 0.0
    %1751 = vmatprep.subr.mxu0 0.0
    %1752 = vmatpush1.msra.mxu0 0.0
    %1753 = vmatprep.subr.mxu0 0.0
    %1754 = vmatpush1.msra.mxu0 0.0
    %1755 = vmatprep.subr.mxu0 0.0
    %1756 = vmatpush1.msra.mxu0 0.0
    %1757 = vmatprep.subr.mxu0 0.0
    %1758 = vmatpush1.msra.mxu0 0.0
    %1759 = vmatprep.subr.mxu0 0.0
    %1760 = vmatpush1.msra.mxu0 0.0
    %1761 = vmatprep.subr.mxu0 0.0
    %1762 = vmatpush1.msra.mxu0 0.0
    %1763 = vmatprep.subr.mxu0 0.0
    %1764 = vmatpush1.msra.mxu0 0.0
    %1765 = vmatprep.subr.mxu0 0.0
    %1766 = vmatpush1.msra.mxu0 0.0
    %1767 = vmatprep.subr.mxu0 0.0
    %1768 = vmatpush1.msra.mxu0 0.0
    %1769 = vmatprep.subr.mxu0 0.0
    %1770 = vmatpush1.msra.mxu0 0.0
    %1771 = vmatprep.subr.mxu0 0.0
    %1772 = vmatpush1.msra.mxu0 0.0
    %1773 = vmatprep.mubr.f32.mxu0 %v1707
    %1774 = vmatmul.mubr.f32.gmra.mrb[0].mxu0 %v1686
    %v1775 = vpop.f32.mrb[0].mxu0
    %v1776 = vadd.f32 0.0, %v1775
    %v1777 = vpop.f32.mrb[0].mxu0
    %1778 = vdwg.mxu0
    %v1779 = vadd.f32 %v1685, %v1776
    %v1780 = vld [vmem:[#allocation5 + $0x20] sm:$0xc]
    %v1781 = vld [vmem:[#allocation5 + $0x28] sm:$0xc]
    %v1782 = vld [vmem:[%s8 + $0x510] sm:$0xff]
    %v1783 = vld [vmem:[%s8 + $0x518] sm:$0xff]
    %v1784 = vld [vmem:[%s8 + $0x520] sm:$0xff]
    %v1785 = vld [vmem:[%s8 + $0x528] sm:$0xff]
    %v1786 = vld [vmem:[%s8 + $0x530] sm:$0xff]
    %v1787 = vld [vmem:[%s8 + $0x538] sm:$0xff]
    %v1788 = vld [vmem:[%s8 + $0x540] sm:$0xff]
    %v1789 = vld [vmem:[%s8 + $0x548] sm:$0xff]
    %v1790 = vld [vmem:[%s8 + $0x550] sm:$0xff]
    %v1791 = vld [vmem:[%s8 + $0x558] sm:$0xff]
    %v1792 = vld [vmem:[%s8 + $0x560] sm:$0xff]
    %v1793 = vld [vmem:[%s8 + $0x568] sm:$0xff]
    %v1794 = vld [vmem:[%s8 + $0x570] sm:$0xff]
    %v1795 = vld [vmem:[%s8 + $0x578] sm:$0xff]
    %v1796 = vld [vmem:[%s8 + $0x580] sm:$0xff]
    %v1797 = vld [vmem:[%s8 + $0x588] sm:$0xff]
    %v1798 = vld [vmem:[%s8 + $0x590] sm:$0xff]
    %v1799 = vld [vmem:[%s8 + $0x598] sm:$0xff]
    %v1802 = vrot.slane %v1780, 2
    %v1803 = vrot.slane %v1781, 2
    %v1805 = vsel %vm351, %v1803, 0
    %1807 = vmatprep.subr.mxu0 0.0
    %1808 = vmatpush1.msra.mxu0 %v1782
    %1809 = vmatprep.subr.mxu0 0.0
    %1810 = vmatpush1.msra.mxu0 %v1783
    %1811 = vmatprep.subr.mxu0 0.0
    %1812 = vmatpush1.msra.mxu0 %v1784
    %1813 = vmatprep.subr.mxu0 0.0
    %1814 = vmatpush1.msra.mxu0 %v1785
    %1815 = vmatprep.subr.mxu0 0.0
    %1816 = vmatpush1.msra.mxu0 %v1786
    %1817 = vmatprep.subr.mxu0 0.0
    %1818 = vmatpush1.msra.mxu0 %v1787
    %1819 = vmatprep.subr.mxu0 0.0
    %1820 = vmatpush1.msra.mxu0 %v1788
    %1821 = vmatprep.subr.mxu0 0.0
    %1822 = vmatpush1.msra.mxu0 %v1789
    %1823 = vmatprep.subr.mxu0 0.0
    %1824 = vmatpush1.msra.mxu0 %v1790
    %1825 = vmatprep.subr.mxu0 0.0
    %1826 = vmatpush1.msra.mxu0 %v1791
    %1827 = vmatprep.subr.mxu0 0.0
    %1828 = vmatpush1.msra.mxu0 %v1792
    %1829 = vmatprep.subr.mxu0 0.0
    %1830 = vmatpush1.msra.mxu0 %v1793
    %1831 = vmatprep.subr.mxu0 0.0
    %1832 = vmatpush1.msra.mxu0 %v1794
    %1833 = vmatprep.subr.mxu0 0.0
    %1834 = vmatpush1.msra.mxu0 %v1795
    %1835 = vmatprep.subr.mxu0 0.0
    %1836 = vmatpush1.msra.mxu0 %v1796
    %1837 = vmatprep.subr.mxu0 0.0
    %1838 = vmatpush1.msra.mxu0 %v1797
    %1839 = vmatprep.subr.mxu0 0.0
    %1840 = vmatpush1.msra.mxu0 %v1798
    %1841 = vmatprep.subr.mxu0 0.0
    %1842 = vmatpush1.msra.mxu0 %v1799
    %1843 = vmatprep.subr.mxu0 0.0
    %1844 = vmatpush1.msra.mxu0 0.0
    %1845 = vmatprep.subr.mxu0 0.0
    %1846 = vmatpush1.msra.mxu0 0.0
    %1847 = vmatprep.subr.mxu0 0.0
    %1848 = vmatpush1.msra.mxu0 0.0
    %1849 = vmatprep.subr.mxu0 0.0
    %1850 = vmatpush1.msra.mxu0 0.0
    %1851 = vmatprep.subr.mxu0 0.0
    %1852 = vmatpush1.msra.mxu0 0.0
    %1853 = vmatprep.subr.mxu0 0.0
    %1854 = vmatpush1.msra.mxu0 0.0
    %1855 = vmatprep.subr.mxu0 0.0
    %1856 = vmatpush1.msra.mxu0 0.0
    %1857 = vmatprep.subr.mxu0 0.0
    %1858 = vmatpush1.msra.mxu0 0.0
    %1859 = vmatprep.subr.mxu0 0.0
    %1860 = vmatpush1.msra.mxu0 0.0
    %1861 = vmatprep.subr.mxu0 0.0
    %1862 = vmatpush1.msra.mxu0 0.0
    %1863 = vmatprep.subr.mxu0 0.0
    %1864 = vmatpush1.msra.mxu0 0.0
    %1865 = vmatprep.subr.mxu0 0.0
    %1866 = vmatpush1.msra.mxu0 0.0
    %1867 = vmatprep.subr.mxu0 0.0
    %1868 = vmatpush1.msra.mxu0 0.0
    %1869 = vmatprep.subr.mxu0 0.0
    %1870 = vmatpush1.msra.mxu0 0.0
    %1871 = vmatprep.mubr.f32.mxu0 %v1805
    %1872 = vmatmul.mubr.f32.gmra.mrb[0].mxu0 %v1802
    %v1873 = vpop.f32.mrb[0].mxu0
    %v1874 = vadd.f32 0.0, %v1873
    %v1875 = vpop.f32.mrb[0].mxu0
    %1876 = vdwg.mxu0
    %v1877 = vadd.f32 %v1779, %v1874
    %v1878 = vld [vmem:[#allocation5 + $0x20] sm:$0x30]
    %v1879 = vld [vmem:[#allocation5 + $0x28] sm:$0x30]
    %v1880 = vld [vmem:[%s8 + $0x5a0] sm:$0xff]
    %v1881 = vld [vmem:[%s8 + $0x5a8] sm:$0xff]
    %v1882 = vld [vmem:[%s8 + $0x5b0] sm:$0xff]
    %v1883 = vld [vmem:[%s8 + $0x5b8] sm:$0xff]
    %v1884 = vld [vmem:[%s8 + $0x5c0] sm:$0xff]
    %v1885 = vld [vmem:[%s8 + $0x5c8] sm:$0xff]
    %v1886 = vld [vmem:[%s8 + $0x5d0] sm:$0xff]
    %v1887 = vld [vmem:[%s8 + $0x5d8] sm:$0xff]
    %v1888 = vld [vmem:[%s8 + $0x5e0] sm:$0xff]
    %v1889 = vld [vmem:[%s8 + $0x5e8] sm:$0xff]
    %v1890 = vld [vmem:[%s8 + $0x5f0] sm:$0xff]
    %v1891 = vld [vmem:[%s8 + $0x5f8] sm:$0xff]
    %v1892 = vld [vmem:[%s8 + $0x600] sm:$0xff]
    %v1893 = vld [vmem:[%s8 + $0x608] sm:$0xff]
    %v1894 = vld [vmem:[%s8 + $0x610] sm:$0xff]
    %v1895 = vld [vmem:[%s8 + $0x618] sm:$0xff]
    %v1896 = vld [vmem:[%s8 + $0x620] sm:$0xff]
    %v1897 = vld [vmem:[%s8 + $0x628] sm:$0xff]
    %v1900 = vrot.slane %v1878, 4
    %v1901 = vrot.slane %v1879, 4
    %v1903 = vsel %vm351, %v1901, 0
    %1905 = vmatprep.subr.mxu0 0.0
    %1906 = vmatpush1.msra.mxu0 %v1880
    %1907 = vmatprep.subr.mxu0 0.0
    %1908 = vmatpush1.msra.mxu0 %v1881
    %1909 = vmatprep.subr.mxu0 0.0
    %1910 = vmatpush1.msra.mxu0 %v1882
    %1911 = vmatprep.subr.mxu0 0.0
    %1912 = vmatpush1.msra.mxu0 %v1883
    %1913 = vmatprep.subr.mxu0 0.0
    %1914 = vmatpush1.msra.mxu0 %v1884
    %1915 = vmatprep.subr.mxu0 0.0
    %1916 = vmatpush1.msra.mxu0 %v1885
    %1917 = vmatprep.subr.mxu0 0.0
    %1918 = vmatpush1.msra.mxu0 %v1886
    %1919 = vmatprep.subr.mxu0 0.0
    %1920 = vmatpush1.msra.mxu0 %v1887
    %1921 = vmatprep.subr.mxu0 0.0
    %1922 = vmatpush1.msra.mxu0 %v1888
    %1923 = vmatprep.subr.mxu0 0.0
    %1924 = vmatpush1.msra.mxu0 %v1889
    %1925 = vmatprep.subr.mxu0 0.0
    %1926 = vmatpush1.msra.mxu0 %v1890
    %1927 = vmatprep.subr.mxu0 0.0
    %1928 = vmatpush1.msra.mxu0 %v1891
    %1929 = vmatprep.subr.mxu0 0.0
    %1930 = vmatpush1.msra.mxu0 %v1892
    %1931 = vmatprep.subr.mxu0 0.0
    %1932 = vmatpush1.msra.mxu0 %v1893
    %1933 = vmatprep.subr.mxu0 0.0
    %1934 = vmatpush1.msra.mxu0 %v1894
    %1935 = vmatprep.subr.mxu0 0.0
    %1936 = vmatpush1.msra.mxu0 %v1895
    %1937 = vmatprep.subr.mxu0 0.0
    %1938 = vmatpush1.msra.mxu0 %v1896
    %1939 = vmatprep.subr.mxu0 0.0
    %1940 = vmatpush1.msra.mxu0 %v1897
    %1941 = vmatprep.subr.mxu0 0.0
    %1942 = vmatpush1.msra.mxu0 0.0
    %1943 = vmatprep.subr.mxu0 0.0
    %1944 = vmatpush1.msra.mxu0 0.0
    %1945 = vmatprep.subr.mxu0 0.0
    %1946 = vmatpush1.msra.mxu0 0.0
    %1947 = vmatprep.subr.mxu0 0.0
    %1948 = vmatpush1.msra.mxu0 0.0
    %1949 = vmatprep.subr.mxu0 0.0
    %1950 = vmatpush1.msra.mxu0 0.0
    %1951 = vmatprep.subr.mxu0 0.0
    %1952 = vmatpush1.msra.mxu0 0.0
    %1953 = vmatprep.subr.mxu0 0.0
    %1954 = vmatpush1.msra.mxu0 0.0
    %1955 = vmatprep.subr.mxu0 0.0
    %1956 = vmatpush1.msra.mxu0 0.0
    %1957 = vmatprep.subr.mxu0 0.0
    %1958 = vmatpush1.msra.mxu0 0.0
    %1959 = vmatprep.subr.mxu0 0.0
    %1960 = vmatpush1.msra.mxu0 0.0
    %1961 = vmatprep.subr.mxu0 0.0
    %1962 = vmatpush1.msra.mxu0 0.0
    %1963 = vmatprep.subr.mxu0 0.0
    %1964 = vmatpush1.msra.mxu0 0.0
    %1965 = vmatprep.subr.mxu0 0.0
    %1966 = vmatpush1.msra.mxu0 0.0
    %1967 = vmatprep.subr.mxu0 0.0
    %1968 = vmatpush1.msra.mxu0 0.0
    %1969 = vmatprep.mubr.f32.mxu0 %v1903
    %1970 = vmatmul.mubr.f32.gmra.mrb[0].mxu0 %v1900
    %v1971 = vpop.f32.mrb[0].mxu0
    %v1972 = vadd.f32 0.0, %v1971
    %v1973 = vpop.f32.mrb[0].mxu0
    %1974 = vdwg.mxu0
    %v1975 = vadd.f32 %v1877, %v1972
    %v1976 = vld [vmem:[#allocation5 + $0x20] sm:$0xc0]
    %v1977 = vld [vmem:[#allocation5 + $0x28] sm:$0xc0]
    %v1978 = vld [vmem:[%s8 + $0x630] sm:$0xff]
    %v1979 = vld [vmem:[%s8 + $0x638] sm:$0xff]
    %v1980 = vld [vmem:[%s8 + $0x640] sm:$0xff]
    %v1981 = vld [vmem:[%s8 + $0x648] sm:$0xff]
    %v1982 = vld [vmem:[%s8 + $0x650] sm:$0xff]
    %v1983 = vld [vmem:[%s8 + $0x658] sm:$0xff]
    %v1984 = vld [vmem:[%s8 + $0x660] sm:$0xff]
    %v1985 = vld [vmem:[%s8 + $0x668] sm:$0xff]
    %v1986 = vld [vmem:[%s8 + $0x670] sm:$0xff]
    %v1987 = vld [vmem:[%s8 + $0x678] sm:$0xff]
    %v1988 = vld [vmem:[%s8 + $0x680] sm:$0xff]
    %v1989 = vld [vmem:[%s8 + $0x688] sm:$0xff]
    %v1990 = vld [vmem:[%s8 + $0x690] sm:$0xff]
    %v1991 = vld [vmem:[%s8 + $0x698] sm:$0xff]
    %v1992 = vld [vmem:[%s8 + $0x6a0] sm:$0xff]
    %v1993 = vld [vmem:[%s8 + $0x6a8] sm:$0xff]
    %v1994 = vld [vmem:[%s8 + $0x6b0] sm:$0xff]
    %v1995 = vld [vmem:[%s8 + $0x6b8] sm:$0xff]
    %v1998 = vrot.slane %v1976, 6
    %v1999 = vrot.slane %v1977, 6
    %v2001 = vsel %vm351, %v1999, 0
    %2003 = vmatprep.subr.mxu0 0.0
    %2004 = vmatpush1.msra.mxu0 %v1978
    %2005 = vmatprep.subr.mxu0 0.0
    %2006 = vmatpush1.msra.mxu0 %v1979
    %2007 = vmatprep.subr.mxu0 0.0
    %2008 = vmatpush1.msra.mxu0 %v1980
    %2009 = vmatprep.subr.mxu0 0.0
    %2010 = vmatpush1.msra.mxu0 %v1981
    %2011 = vmatprep.subr.mxu0 0.0
    %2012 = vmatpush1.msra.mxu0 %v1982
    %2013 = vmatprep.subr.mxu0 0.0
    %2014 = vmatpush1.msra.mxu0 %v1983
    %2015 = vmatprep.subr.mxu0 0.0
    %2016 = vmatpush1.msra.mxu0 %v1984
    %2017 = vmatprep.subr.mxu0 0.0
    %2018 = vmatpush1.msra.mxu0 %v1985
    %2019 = vmatprep.subr.mxu0 0.0
    %2020 = vmatpush1.msra.mxu0 %v1986
    %2021 = vmatprep.subr.mxu0 0.0
    %2022 = vmatpush1.msra.mxu0 %v1987
    %2023 = vmatprep.subr.mxu0 0.0
    %2024 = vmatpush1.msra.mxu0 %v1988
    %2025 = vmatprep.subr.mxu0 0.0
    %2026 = vmatpush1.msra.mxu0 %v1989
    %2027 = vmatprep.subr.mxu0 0.0
    %2028 = vmatpush1.msra.mxu0 %v1990
    %2029 = vmatprep.subr.mxu0 0.0
    %2030 = vmatpush1.msra.mxu0 %v1991
    %2031 = vmatprep.subr.mxu0 0.0
    %2032 = vmatpush1.msra.mxu0 %v1992
    %2033 = vmatprep.subr.mxu0 0.0
    %2034 = vmatpush1.msra.mxu0 %v1993
    %2035 = vmatprep.subr.mxu0 0.0
    %2036 = vmatpush1.msra.mxu0 %v1994
    %2037 = vmatprep.subr.mxu0 0.0
    %2038 = vmatpush1.msra.mxu0 %v1995
    %2039 = vmatprep.subr.mxu0 0.0
    %2040 = vmatpush1.msra.mxu0 0.0
    %2041 = vmatprep.subr.mxu0 0.0
    %2042 = vmatpush1.msra.mxu0 0.0
    %2043 = vmatprep.subr.mxu0 0.0
    %2044 = vmatpush1.msra.mxu0 0.0
    %2045 = vmatprep.subr.mxu0 0.0
    %2046 = vmatpush1.msra.mxu0 0.0
    %2047 = vmatprep.subr.mxu0 0.0
    %2048 = vmatpush1.msra.mxu0 0.0
    %2049 = vmatprep.subr.mxu0 0.0
    %2050 = vmatpush1.msra.mxu0 0.0
    %2051 = vmatprep.subr.mxu0 0.0
    %2052 = vmatpush1.msra.mxu0 0.0
    %2053 = vmatprep.subr.mxu0 0.0
    %2054 = vmatpush1.msra.mxu0 0.0
    %2055 = vmatprep.subr.mxu0 0.0
    %2056 = vmatpush1.msra.mxu0 0.0
    %2057 = vmatprep.subr.mxu0 0.0
    %2058 = vmatpush1.msra.mxu0 0.0
    %2059 = vmatprep.subr.mxu0 0.0
    %2060 = vmatpush1.msra.mxu0 0.0
    %2061 = vmatprep.subr.mxu0 0.0
    %2062 = vmatpush1.msra.mxu0 0.0
    %2063 = vmatprep.subr.mxu0 0.0
    %2064 = vmatpush1.msra.mxu0 0.0
    %2065 = vmatprep.subr.mxu0 0.0
    %2066 = vmatpush1.msra.mxu0 0.0
    %2067 = vmatprep.mubr.f32.mxu0 %v2001
    %2068 = vmatmul.mubr.f32.gmra.mrb[0].mxu0 %v1998
    %v2069 = vpop.f32.mrb[0].mxu0
    %v2070 = vadd.f32 0.0, %v2069
    %v2071 = vpop.f32.mrb[0].mxu0
    %2072 = vdwg.mxu0
    %v2073 = vadd.f32 %v1975, %v2070
    %v2074 = vld [vmem:[#allocation5 + $0x30] sm:$0x3]
    %v2075 = vld [vmem:[#allocation5 + $0x38] sm:$0x3]
    %v2076 = vld [vmem:[%s8 + $0x6c0] sm:$0xff]
    %v2077 = vld [vmem:[%s8 + $0x6c8] sm:$0xff]
    %v2078 = vld [vmem:[%s8 + $0x6d0] sm:$0xff]
    %v2079 = vld [vmem:[%s8 + $0x6d8] sm:$0xff]
    %v2080 = vld [vmem:[%s8 + $0x6e0] sm:$0xff]
    %v2081 = vld [vmem:[%s8 + $0x6e8] sm:$0xff]
    %v2082 = vld [vmem:[%s8 + $0x6f0] sm:$0xff]
    %v2083 = vld [vmem:[%s8 + $0x6f8] sm:$0xff]
    %v2084 = vld [vmem:[%s8 + $0x700] sm:$0xff]
    %v2085 = vld [vmem:[%s8 + $0x708] sm:$0xff]
    %v2086 = vld [vmem:[%s8 + $0x710] sm:$0xff]
    %v2087 = vld [vmem:[%s8 + $0x718] sm:$0xff]
    %v2088 = vld [vmem:[%s8 + $0x720] sm:$0xff]
    %v2089 = vld [vmem:[%s8 + $0x728] sm:$0xff]
    %v2090 = vld [vmem:[%s8 + $0x730] sm:$0xff]
    %v2091 = vld [vmem:[%s8 + $0x738] sm:$0xff]
    %v2092 = vld [vmem:[%s8 + $0x740] sm:$0xff]
    %v2093 = vld [vmem:[%s8 + $0x748] sm:$0xff]
    %v2095 = vsel %vm351, %v2075, 0
    %2097 = vmatprep.subr.mxu0 0.0
    %2098 = vmatpush1.msra.mxu0 %v2076
    %2099 = vmatprep.subr.mxu0 0.0
    %2100 = vmatpush1.msra.mxu0 %v2077
    %2101 = vmatprep.subr.mxu0 0.0
    %2102 = vmatpush1.msra.mxu0 %v2078
    %2103 = vmatprep.subr.mxu0 0.0
    %2104 = vmatpush1.msra.mxu0 %v2079
    %2105 = vmatprep.subr.mxu0 0.0
    %2106 = vmatpush1.msra.mxu0 %v2080
    %2107 = vmatprep.subr.mxu0 0.0
    %2108 = vmatpush1.msra.mxu0 %v2081
    %2109 = vmatprep.subr.mxu0 0.0
    %2110 = vmatpush1.msra.mxu0 %v2082
    %2111 = vmatprep.subr.mxu0 0.0
    %2112 = vmatpush1.msra.mxu0 %v2083
    %2113 = vmatprep.subr.mxu0 0.0
    %2114 = vmatpush1.msra.mxu0 %v2084
    %2115 = vmatprep.subr.mxu0 0.0
    %2116 = vmatpush1.msra.mxu0 %v2085
    %2117 = vmatprep.subr.mxu0 0.0
    %2118 = vmatpush1.msra.mxu0 %v2086
    %2119 = vmatprep.subr.mxu0 0.0
    %2120 = vmatpush1.msra.mxu0 %v2087
    %2121 = vmatprep.subr.mxu0 0.0
    %2122 = vmatpush1.msra.mxu0 %v2088
    %2123 = vmatprep.subr.mxu0 0.0
    %2124 = vmatpush1.msra.mxu0 %v2089
    %2125 = vmatprep.subr.mxu0 0.0
    %2126 = vmatpush1.msra.mxu0 %v2090
    %2127 = vmatprep.subr.mxu0 0.0
    %2128 = vmatpush1.msra.mxu0 %v2091
    %2129 = vmatprep.subr.mxu0 0.0
    %2130 = vmatpush1.msra.mxu0 %v2092
    %2131 = vmatprep.subr.mxu0 0.0
    %2132 = vmatpush1.msra.mxu0 %v2093
    %2133 = vmatprep.subr.mxu0 0.0
    %2134 = vmatpush1.msra.mxu0 0.0
    %2135 = vmatprep.subr.mxu0 0.0
    %2136 = vmatpush1.msra.mxu0 0.0
    %2137 = vmatprep.subr.mxu0 0.0
    %2138 = vmatpush1.msra.mxu0 0.0
    %2139 = vmatprep.subr.mxu0 0.0
    %2140 = vmatpush1.msra.mxu0 0.0
    %2141 = vmatprep.subr.mxu0 0.0
    %2142 = vmatpush1.msra.mxu0 0.0
    %2143 = vmatprep.subr.mxu0 0.0
    %2144 = vmatpush1.msra.mxu0 0.0
    %2145 = vmatprep.subr.mxu0 0.0
    %2146 = vmatpush1.msra.mxu0 0.0
    %2147 = vmatprep.subr.mxu0 0.0
    %2148 = vmatpush1.msra.mxu0 0.0
    %2149 = vmatprep.subr.mxu0 0.0
    %2150 = vmatpush1.msra.mxu0 0.0
    %2151 = vmatprep.subr.mxu0 0.0
    %2152 = vmatpush1.msra.mxu0 0.0
    %2153 = vmatprep.subr.mxu0 0.0
    %2154 = vmatpush1.msra.mxu0 0.0
    %2155 = vmatprep.subr.mxu0 0.0
    %2156 = vmatpush1.msra.mxu0 0.0
    %2157 = vmatprep.subr.mxu0 0.0
    %2158 = vmatpush1.msra.mxu0 0.0
    %2159 = vmatprep.subr.mxu0 0.0
    %2160 = vmatpush1.msra.mxu0 0.0
    %2161 = vmatprep.mubr.f32.mxu0 %v2095
    %2162 = vmatmul.mubr.f32.gmra.mrb[0].mxu0 %v2074
    %v2163 = vpop.f32.mrb[0].mxu0
    %v2164 = vadd.f32 0.0, %v2163
    %v2165 = vpop.f32.mrb[0].mxu0
    %2166 = vdwg.mxu0
    %v2167 = vadd.f32 %v2073, %v2164
    %v2168 = vld [vmem:[#allocation5 + $0x30] sm:$0xc]
    %v2169 = vld [vmem:[#allocation5 + $0x38] sm:$0xc]
    %v2170 = vld [vmem:[%s8 + $0x750] sm:$0xff]
    %v2171 = vld [vmem:[%s8 + $0x758] sm:$0xff]
    %v2172 = vld [vmem:[%s8 + $0x760] sm:$0xff]
    %v2173 = vld [vmem:[%s8 + $0x768] sm:$0xff]
    %v2174 = vld [vmem:[%s8 + $0x770] sm:$0xff]
    %v2175 = vld [vmem:[%s8 + $0x778] sm:$0xff]
    %v2176 = vld [vmem:[%s8 + $0x780] sm:$0xff]
    %v2177 = vld [vmem:[%s8 + $0x788] sm:$0xff]
    %v2178 = vld [vmem:[%s8 + $0x790] sm:$0xff]
    %v2179 = vld [vmem:[%s8 + $0x798] sm:$0xff]
    %v2180 = vld [vmem:[%s8 + $0x7a0] sm:$0xff]
    %v2181 = vld [vmem:[%s8 + $0x7a8] sm:$0xff]
    %v2182 = vld [vmem:[%s8 + $0x7b0] sm:$0xff]
    %v2183 = vld [vmem:[%s8 + $0x7b8] sm:$0xff]
    %v2184 = vld [vmem:[%s8 + $0x7c0] sm:$0xff]
    %v2185 = vld [vmem:[%s8 + $0x7c8] sm:$0xff]
    %v2186 = vld [vmem:[%s8 + $0x7d0] sm:$0xff]
    %v2187 = vld [vmem:[%s8 + $0x7d8] sm:$0xff]
    %v2190 = vrot.slane %v2168, 2
    %v2191 = vrot.slane %v2169, 2
    %v2193 = vsel %vm351, %v2191, 0
    %2195 = vmatprep.subr.mxu0 0.0
    %2196 = vmatpush1.msra.mxu0 %v2170
    %2197 = vmatprep.subr.mxu0 0.0
    %2198 = vmatpush1.msra.mxu0 %v2171
    %2199 = vmatprep.subr.mxu0 0.0
    %2200 = vmatpush1.msra.mxu0 %v2172
    %2201 = vmatprep.subr.mxu0 0.0
    %2202 = vmatpush1.msra.mxu0 %v2173
    %2203 = vmatprep.subr.mxu0 0.0
    %2204 = vmatpush1.msra.mxu0 %v2174
    %2205 = vmatprep.subr.mxu0 0.0
    %2206 = vmatpush1.msra.mxu0 %v2175
    %2207 = vmatprep.subr.mxu0 0.0
    %2208 = vmatpush1.msra.mxu0 %v2176
    %2209 = vmatprep.subr.mxu0 0.0
    %2210 = vmatpush1.msra.mxu0 %v2177
    %2211 = vmatprep.subr.mxu0 0.0
    %2212 = vmatpush1.msra.mxu0 %v2178
    %2213 = vmatprep.subr.mxu0 0.0
    %2214 = vmatpush1.msra.mxu0 %v2179
    %2215 = vmatprep.subr.mxu0 0.0
    %2216 = vmatpush1.msra.mxu0 %v2180
    %2217 = vmatprep.subr.mxu0 0.0
    %2218 = vmatpush1.msra.mxu0 %v2181
    %2219 = vmatprep.subr.mxu0 0.0
    %2220 = vmatpush1.msra.mxu0 %v2182
    %2221 = vmatprep.subr.mxu0 0.0
    %2222 = vmatpush1.msra.mxu0 %v2183
    %2223 = vmatprep.subr.mxu0 0.0
    %2224 = vmatpush1.msra.mxu0 %v2184
    %2225 = vmatprep.subr.mxu0 0.0
    %2226 = vmatpush1.msra.mxu0 %v2185
    %2227 = vmatprep.subr.mxu0 0.0
    %2228 = vmatpush1.msra.mxu0 %v2186
    %2229 = vmatprep.subr.mxu0 0.0
    %2230 = vmatpush1.msra.mxu0 %v2187
    %2231 = vmatprep.subr.mxu0 0.0
    %2232 = vmatpush1.msra.mxu0 0.0
    %2233 = vmatprep.subr.mxu0 0.0
    %2234 = vmatpush1.msra.mxu0 0.0
    %2235 = vmatprep.subr.mxu0 0.0
    %2236 = vmatpush1.msra.mxu0 0.0
    %2237 = vmatprep.subr.mxu0 0.0
    %2238 = vmatpush1.msra.mxu0 0.0
    %2239 = vmatprep.subr.mxu0 0.0
    %2240 = vmatpush1.msra.mxu0 0.0
    %2241 = vmatprep.subr.mxu0 0.0
    %2242 = vmatpush1.msra.mxu0 0.0
    %2243 = vmatprep.subr.mxu0 0.0
    %2244 = vmatpush1.msra.mxu0 0.0
    %2245 = vmatprep.subr.mxu0 0.0
    %2246 = vmatpush1.msra.mxu0 0.0
    %2247 = vmatprep.subr.mxu0 0.0
    %2248 = vmatpush1.msra.mxu0 0.0
    %2249 = vmatprep.subr.mxu0 0.0
    %2250 = vmatpush1.msra.mxu0 0.0
    %2251 = vmatprep.subr.mxu0 0.0
    %2252 = vmatpush1.msra.mxu0 0.0
    %2253 = vmatprep.subr.mxu0 0.0
    %2254 = vmatpush1.msra.mxu0 0.0
    %2255 = vmatprep.subr.mxu0 0.0
    %2256 = vmatpush1.msra.mxu0 0.0
    %2257 = vmatprep.subr.mxu0 0.0
    %2258 = vmatpush1.msra.mxu0 0.0
    %2259 = vmatprep.mubr.f32.mxu0 %v2193
    %2260 = vmatmul.mubr.f32.gmra.mrb[0].mxu0 %v2190
    %v2261 = vpop.f32.mrb[0].mxu0
    %v2262 = vadd.f32 0.0, %v2261
    %v2263 = vpop.f32.mrb[0].mxu0
    %2264 = vdwg.mxu0
    %v2265 = vadd.f32 %v2167, %v2262
    %v2266 = vld [vmem:[#allocation5 + $0x30] sm:$0x30]
    %v2267 = vld [vmem:[#allocation5 + $0x38] sm:$0x30]
    %v2268 = vld [vmem:[%s8 + $0x7e0] sm:$0xff]
    %v2269 = vld [vmem:[%s8 + $0x7e8] sm:$0xff]
    %v2270 = vld [vmem:[%s8 + $0x7f0] sm:$0xff]
    %v2271 = vld [vmem:[%s8 + $0x7f8] sm:$0xff]
    %v2272 = vld [vmem:[%s8 + $0x800] sm:$0xff]
    %v2273 = vld [vmem:[%s8 + $0x808] sm:$0xff]
    %v2274 = vld [vmem:[%s8 + $0x810] sm:$0xff]
    %v2275 = vld [vmem:[%s8 + $0x818] sm:$0xff]
    %v2276 = vld [vmem:[%s8 + $0x820] sm:$0xff]
    %v2277 = vld [vmem:[%s8 + $0x828] sm:$0xff]
    %v2278 = vld [vmem:[%s8 + $0x830] sm:$0xff]
    %v2279 = vld [vmem:[%s8 + $0x838] sm:$0xff]
    %v2280 = vld [vmem:[%s8 + $0x840] sm:$0xff]
    %v2281 = vld [vmem:[%s8 + $0x848] sm:$0xff]
    %v2282 = vld [vmem:[%s8 + $0x850] sm:$0xff]
    %v2283 = vld [vmem:[%s8 + $0x858] sm:$0xff]
    %v2284 = vld [vmem:[%s8 + $0x860] sm:$0xff]
    %v2285 = vld [vmem:[%s8 + $0x868] sm:$0xff]
    %v2288 = vrot.slane %v2266, 4
    %v2289 = vrot.slane %v2267, 4
    %v2291 = vsel %vm351, %v2289, 0
    %2293 = vmatprep.subr.mxu0 0.0
    %2294 = vmatpush1.msra.mxu0 %v2268
    %2295 = vmatprep.subr.mxu0 0.0
    %2296 = vmatpush1.msra.mxu0 %v2269
    %2297 = vmatprep.subr.mxu0 0.0
    %2298 = vmatpush1.msra.mxu0 %v2270
    %2299 = vmatprep.subr.mxu0 0.0
    %2300 = vmatpush1.msra.mxu0 %v2271
    %2301 = vmatprep.subr.mxu0 0.0
    %2302 = vmatpush1.msra.mxu0 %v2272
    %2303 = vmatprep.subr.mxu0 0.0
    %2304 = vmatpush1.msra.mxu0 %v2273
    %2305 = vmatprep.subr.mxu0 0.0
    %2306 = vmatpush1.msra.mxu0 %v2274
    %2307 = vmatprep.subr.mxu0 0.0
    %2308 = vmatpush1.msra.mxu0 %v2275
    %2309 = vmatprep.subr.mxu0 0.0
    %2310 = vmatpush1.msra.mxu0 %v2276
    %2311 = vmatprep.subr.mxu0 0.0
    %2312 = vmatpush1.msra.mxu0 %v2277
    %2313 = vmatprep.subr.mxu0 0.0
    %2314 = vmatpush1.msra.mxu0 %v2278
    %2315 = vmatprep.subr.mxu0 0.0
    %2316 = vmatpush1.msra.mxu0 %v2279
    %2317 = vmatprep.subr.mxu0 0.0
    %2318 = vmatpush1.msra.mxu0 %v2280
    %2319 = vmatprep.subr.mxu0 0.0
    %2320 = vmatpush1.msra.mxu0 %v2281
    %2321 = vmatprep.subr.mxu0 0.0
    %2322 = vmatpush1.msra.mxu0 %v2282
    %2323 = vmatprep.subr.mxu0 0.0
    %2324 = vmatpush1.msra.mxu0 %v2283
    %2325 = vmatprep.subr.mxu0 0.0
    %2326 = vmatpush1.msra.mxu0 %v2284
    %2327 = vmatprep.subr.mxu0 0.0
    %2328 = vmatpush1.msra.mxu0 %v2285
    %2329 = vmatprep.subr.mxu0 0.0
    %2330 = vmatpush1.msra.mxu0 0.0
    %2331 = vmatprep.subr.mxu0 0.0
    %2332 = vmatpush1.msra.mxu0 0.0
    %2333 = vmatprep.subr.mxu0 0.0
    %2334 = vmatpush1.msra.mxu0 0.0
    %2335 = vmatprep.subr.mxu0 0.0
    %2336 = vmatpush1.msra.mxu0 0.0
    %2337 = vmatprep.subr.mxu0 0.0
    %2338 = vmatpush1.msra.mxu0 0.0
    %2339 = vmatprep.subr.mxu0 0.0
    %2340 = vmatpush1.msra.mxu0 0.0
    %2341 = vmatprep.subr.mxu0 0.0
    %2342 = vmatpush1.msra.mxu0 0.0
    %2343 = vmatprep.subr.mxu0 0.0
    %2344 = vmatpush1.msra.mxu0 0.0
    %2345 = vmatprep.subr.mxu0 0.0
    %2346 = vmatpush1.msra.mxu0 0.0
    %2347 = vmatprep.subr.mxu0 0.0
    %2348 = vmatpush1.msra.mxu0 0.0
    %2349 = vmatprep.subr.mxu0 0.0
    %2350 = vmatpush1.msra.mxu0 0.0
    %2351 = vmatprep.subr.mxu0 0.0
    %2352 = vmatpush1.msra.mxu0 0.0
    %2353 = vmatprep.subr.mxu0 0.0
    %2354 = vmatpush1.msra.mxu0 0.0
    %2355 = vmatprep.subr.mxu0 0.0
    %2356 = vmatpush1.msra.mxu0 0.0
    %2357 = vmatprep.mubr.f32.mxu0 %v2291
    %2358 = vmatmul.mubr.f32.gmra.mrb[0].mxu0 %v2288
    %v2359 = vpop.f32.mrb[0].mxu0
    %v2360 = vadd.f32 0.0, %v2359
    %v2361 = vpop.f32.mrb[0].mxu0
    %2362 = vdwg.mxu0
    %v2363 = vadd.f32 %v2265, %v2360
    %v2364 = vld [vmem:[#allocation5 + $0x30] sm:$0xc0]
    %v2365 = vld [vmem:[#allocation5 + $0x38] sm:$0xc0]
    %v2366 = vld [vmem:[%s8 + $0x870] sm:$0xff]
    %v2367 = vld [vmem:[%s8 + $0x878] sm:$0xff]
    %v2368 = vld [vmem:[%s8 + $0x880] sm:$0xff]
    %v2369 = vld [vmem:[%s8 + $0x888] sm:$0xff]
    %v2370 = vld [vmem:[%s8 + $0x890] sm:$0xff]
    %v2371 = vld [vmem:[%s8 + $0x898] sm:$0xff]
    %v2372 = vld [vmem:[%s8 + $0x8a0] sm:$0xff]
    %v2373 = vld [vmem:[%s8 + $0x8a8] sm:$0xff]
    %v2374 = vld [vmem:[%s8 + $0x8b0] sm:$0xff]
    %v2375 = vld [vmem:[%s8 + $0x8b8] sm:$0xff]
    %v2376 = vld [vmem:[%s8 + $0x8c0] sm:$0xff]
    %v2377 = vld [vmem:[%s8 + $0x8c8] sm:$0xff]
    %v2378 = vld [vmem:[%s8 + $0x8d0] sm:$0xff]
    %v2379 = vld [vmem:[%s8 + $0x8d8] sm:$0xff]
    %v2380 = vld [vmem:[%s8 + $0x8e0] sm:$0xff]
    %v2381 = vld [vmem:[%s8 + $0x8e8] sm:$0xff]
    %v2382 = vld [vmem:[%s8 + $0x8f0] sm:$0xff]
    %v2383 = vld [vmem:[%s8 + $0x8f8] sm:$0xff]
    %v2386 = vrot.slane %v2364, 6
    %v2387 = vrot.slane %v2365, 6
    %v2389 = vsel %vm351, %v2387, 0
    %2391 = vmatprep.subr.mxu0 0.0
    %2392 = vmatpush1.msra.mxu0 %v2366
    %2393 = vmatprep.subr.mxu0 0.0
    %2394 = vmatpush1.msra.mxu0 %v2367
    %2395 = vmatprep.subr.mxu0 0.0
    %2396 = vmatpush1.msra.mxu0 %v2368
    %2397 = vmatprep.subr.mxu0 0.0
    %2398 = vmatpush1.msra.mxu0 %v2369
    %2399 = vmatprep.subr.mxu0 0.0
    %2400 = vmatpush1.msra.mxu0 %v2370
    %2401 = vmatprep.subr.mxu0 0.0
    %2402 = vmatpush1.msra.mxu0 %v2371
    %2403 = vmatprep.subr.mxu0 0.0
    %2404 = vmatpush1.msra.mxu0 %v2372
    %2405 = vmatprep.subr.mxu0 0.0
    %2406 = vmatpush1.msra.mxu0 %v2373
    %2407 = vmatprep.subr.mxu0 0.0
    %2408 = vmatpush1.msra.mxu0 %v2374
    %2409 = vmatprep.subr.mxu0 0.0
    %2410 = vmatpush1.msra.mxu0 %v2375
    %2411 = vmatprep.subr.mxu0 0.0
    %2412 = vmatpush1.msra.mxu0 %v2376
    %2413 = vmatprep.subr.mxu0 0.0
    %2414 = vmatpush1.msra.mxu0 %v2377
    %2415 = vmatprep.subr.mxu0 0.0
    %2416 = vmatpush1.msra.mxu0 %v2378
    %2417 = vmatprep.subr.mxu0 0.0
    %2418 = vmatpush1.msra.mxu0 %v2379
    %2419 = vmatprep.subr.mxu0 0.0
    %2420 = vmatpush1.msra.mxu0 %v2380
    %2421 = vmatprep.subr.mxu0 0.0
    %2422 = vmatpush1.msra.mxu0 %v2381
    %2423 = vmatprep.subr.mxu0 0.0
    %2424 = vmatpush1.msra.mxu0 %v2382
    %2425 = vmatprep.subr.mxu0 0.0
    %2426 = vmatpush1.msra.mxu0 %v2383
    %2427 = vmatprep.subr.mxu0 0.0
    %2428 = vmatpush1.msra.mxu0 0.0
    %2429 = vmatprep.subr.mxu0 0.0
    %2430 = vmatpush1.msra.mxu0 0.0
    %2431 = vmatprep.subr.mxu0 0.0
    %2432 = vmatpush1.msra.mxu0 0.0
    %2433 = vmatprep.subr.mxu0 0.0
    %2434 = vmatpush1.msra.mxu0 0.0
    %2435 = vmatprep.subr.mxu0 0.0
    %2436 = vmatpush1.msra.mxu0 0.0
    %2437 = vmatprep.subr.mxu0 0.0
    %2438 = vmatpush1.msra.mxu0 0.0
    %2439 = vmatprep.subr.mxu0 0.0
    %2440 = vmatpush1.msra.mxu0 0.0
    %2441 = vmatprep.subr.mxu0 0.0
    %2442 = vmatpush1.msra.mxu0 0.0
    %2443 = vmatprep.subr.mxu0 0.0
    %2444 = vmatpush1.msra.mxu0 0.0
    %2445 = vmatprep.subr.mxu0 0.0
    %2446 = vmatpush1.msra.mxu0 0.0
    %2447 = vmatprep.subr.mxu0 0.0
    %2448 = vmatpush1.msra.mxu0 0.0
    %2449 = vmatprep.subr.mxu0 0.0
    %2450 = vmatpush1.msra.mxu0 0.0
    %2451 = vmatprep.subr.mxu0 0.0
    %2452 = vmatpush1.msra.mxu0 0.0
    %2453 = vmatprep.subr.mxu0 0.0
    %2454 = vmatpush1.msra.mxu0 0.0
    %2455 = vmatprep.mubr.f32.mxu0 %v2389
    %2456 = vmatmul.mubr.f32.gmra.mrb[0].mxu0 %v2386
    %v2457 = vpop.f32.mrb[0].mxu0
    %v2458 = vadd.f32 0.0, %v2457
    %v2459 = vpop.f32.mrb[0].mxu0
    %2460 = vdwg.mxu0
    %v2461 = vadd.f32 %v2363, %v2458
    %v2462 = vld [vmem:[%s9] sm:$0x1]
    %v2464 = vlaneseq
    %v2465 = vshrl.u32 %v2464, 7
    %v2466 = vsub.s32 0, %v2465
    %v2467 = vrot.slane %v2462, %v2466
    %v2469 = vadd.f32 %v2461, %v2467
    %v2470 = vmax.f32 %v2469, 0.0
    %v2471 = vld [vmem:[%s10] sm:$0xff]
    %v2472 = vld [vmem:[%s10 + $0x8] sm:$0xff]
    %v2473 = vld [vmem:[%s10 + $0x10] sm:$0xff]
    %v2474 = vld [vmem:[%s10 + $0x18] sm:$0xff]
    %v2475 = vld [vmem:[%s11] sm:$0x1]
    %v2477 = vlaneseq
    %v2478 = vshrl.u32 %v2477, 7
    %v2479 = vsub.s32 0, %v2478
    %v2480 = vrot.slane %v2475, %v2479
    %v2483 = vsel %vm663, %v2470, 0
    %2485 = vmatprep.subr.mxu0 0.0
    %2486 = vmatpush1.msra.mxu0 %v2471
    %2487 = vmatprep.subr.mxu0 0.0
    %2488 = vmatpush1.msra.mxu0 %v2472
    %2489 = vmatprep.subr.mxu0 0.0
    %2490 = vmatpush1.msra.mxu0 %v2473
    %2491 = vmatprep.subr.mxu0 0.0
    %2492 = vmatpush1.msra.mxu0 %v2474
    %2493 = vmatprep.subr.mxu0 0.0
    %2494 = vmatpush1.msra.mxu0 0.0
    %2495 = vmatprep.subr.mxu0 0.0
    %2496 = vmatpush1.msra.mxu0 0.0
    %2497 = vmatprep.subr.mxu0 0.0
    %2498 = vmatpush1.msra.mxu0 0.0
    %2499 = vmatprep.subr.mxu0 0.0
    %2500 = vmatpush1.msra.mxu0 0.0
    %2501 = vmatprep.subr.mxu0 0.0
    %2502 = vmatpush1.msra.mxu0 0.0
    %2503 = vmatprep.subr.mxu0 0.0
    %2504 = vmatpush1.msra.mxu0 0.0
    %2505 = vmatprep.subr.mxu0 0.0
    %2506 = vmatpush1.msra.mxu0 0.0
    %2507 = vmatprep.subr.mxu0 0.0
    %2508 = vmatpush1.msra.mxu0 0.0
    %2509 = vmatprep.subr.mxu0 0.0
    %2510 = vmatpush1.msra.mxu0 0.0
    %2511 = vmatprep.subr.mxu0 0.0
    %2512 = vmatpush1.msra.mxu0 0.0
    %2513 = vmatprep.subr.mxu0 0.0
    %2514 = vmatpush1.msra.mxu0 0.0
    %2515 = vmatprep.subr.mxu0 0.0
    %2516 = vmatpush1.msra.mxu0 0.0
    %2517 = vmatprep.subr.mxu0 0.0
    %2518 = vmatpush1.msra.mxu0 0.0
    %2519 = vmatprep.subr.mxu0 0.0
    %2520 = vmatpush1.msra.mxu0 0.0
    %2521 = vmatprep.subr.mxu0 0.0
    %2522 = vmatpush1.msra.mxu0 0.0
    %2523 = vmatprep.subr.mxu0 0.0
    %2524 = vmatpush1.msra.mxu0 0.0
    %2525 = vmatprep.subr.mxu0 0.0
    %2526 = vmatpush1.msra.mxu0 0.0
    %2527 = vmatprep.subr.mxu0 0.0
    %2528 = vmatpush1.msra.mxu0 0.0
    %2529 = vmatprep.subr.mxu0 0.0
    %2530 = vmatpush1.msra.mxu0 0.0
    %2531 = vmatprep.subr.mxu0 0.0
    %2532 = vmatpush1.msra.mxu0 0.0
    %2533 = vmatprep.subr.mxu0 0.0
    %2534 = vmatpush1.msra.mxu0 0.0
    %2535 = vmatprep.subr.mxu0 0.0
    %2536 = vmatpush1.msra.mxu0 0.0
    %2537 = vmatprep.subr.mxu0 0.0
    %2538 = vmatpush1.msra.mxu0 0.0
    %2539 = vmatprep.subr.mxu0 0.0
    %2540 = vmatpush1.msra.mxu0 0.0
    %2541 = vmatprep.subr.mxu0 0.0
    %2542 = vmatpush1.msra.mxu0 0.0
    %2543 = vmatprep.subr.mxu0 0.0
    %2544 = vmatpush1.msra.mxu0 0.0
    %2545 = vmatprep.subr.mxu0 0.0
    %2546 = vmatpush1.msra.mxu0 0.0
    %2547 = vmatprep.subr.mxu0 0.0
    %2548 = vmatpush1.msra.mxu0 0.0
    %2549 = vmatprep.mubr.f32.mxu0 0.0
    %2550 = vmatmul.mubr.f32.gmra.mrb[0].mxu0 %v2483
    %v2551 = vpop.f32.mrb[0].mxu0
    %v2552 = vadd.f32 %v2480, %v2551
    %v2553 = vpop.f32.mrb[0].mxu0
    %2554 = vdwg.mxu0
    %vm2555 = vcmask 25600
    %2556 = vst.msk [vmem:[#allocation6] sm:$0x3] %vm2555, %v2552
    // Predicated region
    $region50: #{tpu_custom_call.1} parent=1 // pred_check
      _
    $region51: #{tpu_custom_call.1} parent=1 // pred_check_branch
      %2558 = sbr.rel (0) target = $region53
    $region52: #{tpu_custom_call.1} parent=1 // pred_region
      %s2560 = ssub.s32 32, 32
      %2561 = vsyncadd [#allocation7], %s2560
      %s2563 = sshll.u32 [#allocation6], 4
      %s2564 = int_to_ptr.vmem [resolvable:$true] %s2563
      %2566 = dma.vmem_to_hbm [thread:$0]  %s2564, 32, %s12, [#allocation7]
    $region53: #{tpu_custom_call.1} parent=1 // pred_fallthru
      _
    // Predicated region
    $region54: #{tpu_custom_call.1} parent=1 // pred_check
      _
    $region55: #{tpu_custom_call.1} parent=1 // pred_check_branch
      %2568 = sbr.rel (0) target = $region57
    $region56: #{tpu_custom_call.1} parent=1 // pred_region
      %2569 = dma.done [#allocation7], 32
    $region57: #{tpu_custom_call.1} parent=1 // pred_fallthru
      _
    %2570 = vsyncpa [#allocation7], 1

</llo_original>
